<compile_context>
chip_gen: v5e
topology: v5e:2x2
jax: 0.10.0
libtpu: 0.0.40
codegen_flags: <defaults>
</compile_context>

<pallas_src>
import functools
import math

import jax
import jax.numpy as jnp
from jax.experimental import pallas as pl
from jax.experimental.pallas import tpu as pltpu


def _round_up(n: int, m: int) -> int:
    return ((n + m - 1) // m) * m


def gru_cell_kernel(x_ref, h_ref, wx_ref, wh_ref, b_ref, bhn_ref, hy_ref,
                    *, mm_dtype, precision):
    """One (batch-tile, column-tile) block of the GRU cell.

    x_ref  : (Bt, D)        input tile (streamed once per batch step)
    h_ref  : (Bt, Hp)       previous hidden state tile, float32 (full K for matmul)
    wx_ref : (3, D, Nt)     x->gate weights (transposed, padded), gates stacked [r, i, n]
    wh_ref : (3, Hp, Nt)    h->gate weights (transposed, K rows zero-padded)
    b_ref  : (3, 1, Nt)     biases: [bx_r+bh_r, bx_i+bh_i, bx_n]  (float32)
    bhn_ref: (1, Nt)        bh_n (kept separate: h_n is scaled by the reset gate)
    hy_ref : (Bt, Nt)       output hidden-state tile (lane-dense store)
    """
    Nt = hy_ref.shape[-1]
    j = pl.program_id(1)
    col0 = pl.multiple_of(j * Nt, Nt)

    # Matmul operands in compute dtype; h for the final blend stays float32.
    x_mm = x_ref[...].astype(mm_dtype)
    h_mm = h_ref[...].astype(mm_dtype)
    h_blend = h_ref[:, pl.ds(col0, Nt)].astype(jnp.float32)

    def mm(a, w):
        return jnp.dot(a, w, preferred_element_type=jnp.float32,
                       precision=precision)

    resetgate = jax.nn.sigmoid(mm(x_mm, wx_ref[0]) + mm(h_mm, wh_ref[0]) + b_ref[0])
    inputgate = jax.nn.sigmoid(mm(x_mm, wx_ref[1]) + mm(h_mm, wh_ref[1]) + b_ref[1])
    i_n = mm(x_mm, wx_ref[2]) + b_ref[2]
    h_n = mm(h_mm, wh_ref[2]) + bhn_ref[...]
    newgate = jnp.tanh(i_n + resetgate * h_n)

    hy = newgate + inputgate * (h_blend - newgate)
    hy_ref[...] = hy.astype(hy_ref.dtype)


def gru_cell(x, h, wx, bx, wh, bh, *, batch_tile=512, col_tile=512,
             compute_dtype=jnp.bfloat16):
    """GRUCell forward matching the PyTorch module.

    x : (B, D)   h : (B, H)
    wx: (3H, D)  bx: (3H,)   -- nn.Linear(input_size, 3H)
    wh: (3H, H)  bh: (3H,)   -- nn.Linear(hidden_size, 3H)

    batch_tile   : max rows of x/h streamed per grid step.
    col_tile     : max gate columns per grid step (N-tiling for large H).
    compute_dtype: MXU operand dtype (bf16 default).  None => exact f32 path.
    """
    B, D = x.shape
    _, H = h.shape
    out_dtype = x.dtype

    # ---- column (N) tiling over the lane-padded hidden dim ----
    Hp = _round_up(H, 128)
    Nt_max = min(Hp, _round_up(col_tile, 128))
    n_col = pl.cdiv(Hp, Nt_max)
    Nt = _round_up(pl.cdiv(Hp, n_col), 128)
    Hp = n_col * Nt

    # ---- batch tiling: >=2 grid steps when possible (v7x megacore) ----
    if B <= 8:
        Bt = _round_up(B, 8)
    else:
        Bt = min(batch_tile, _round_up(B, 8))
        if _round_up(B, Bt) // Bt < 2:
            align = 256 if B > 512 else 8
            Bt = min(Bt, _round_up(pl.cdiv(B, 2), align))
        Bt = max(Bt, 8)
    Bp = _round_up(B, Bt)

    w_dtype = jnp.float32 if compute_dtype is None else compute_dtype
    precision = (jax.lax.Precision.HIGHEST if compute_dtype is None
                 else jax.lax.Precision.DEFAULT)

    # ---- parameter re-layout (one-time transform in a real model) ----
    wx_f, wh_f = wx.astype(jnp.float32), wh.astype(jnp.float32)
    bx_f, bh_f = bx.astype(jnp.float32), bh.astype(jnp.float32)

    def gate_wx(g):  # (D, Hp), output columns lane-padded
        return jnp.pad(wx_f[g * H:(g + 1) * H, :].T, ((0, 0), (0, Hp - H)))

    def gate_wh(g):  # (Hp, Hp); zero-padded K rows keep padded h columns inert
        return jnp.pad(wh_f[g * H:(g + 1) * H, :].T, ((0, Hp - H), (0, Hp - H)))

    w_x = jnp.stack([gate_wx(0), gate_wx(1), gate_wx(2)]).astype(w_dtype)  # (3, D, Hp)
    w_h = jnp.stack([gate_wh(0), gate_wh(1), gate_wh(2)]).astype(w_dtype)  # (3, Hp, Hp)

    def pad_b(v):
        return jnp.pad(v, (0, Hp - H)).reshape(1, Hp)

    b = jnp.stack([pad_b(bx_f[0:H] + bh_f[0:H]),          # r: pre-summed
                   pad_b(bx_f[H:2 * H] + bh_f[H:2 * H]),   # i: pre-summed
                   pad_b(bx_f[2 * H:3 * H])])              # n: x-side bias only
    b_hn = pad_b(bh_f[2 * H:3 * H])                        # (1, Hp)

    # Activations stream in their own (f32) dtype; matmul operands are cast
    # in-kernel so the final blend uses the un-rounded h.
    x_p = jnp.pad(x, ((0, Bp - B), (0, 0)))
    h_p = jnp.pad(h, ((0, Bp - B), (0, Hp - H)))

    # ---- VMEM budget hint: resident weight blocks + double-buffered stream tiles ----
    w_bytes = ((3 * D * Nt + 3 * Hp * Nt) * jnp.dtype(w_dtype).itemsize
               + (3 * Nt + Nt) * 4)
    act_bytes = (Bt * D * x_p.dtype.itemsize + Bt * Hp * h_p.dtype.itemsize
                 + Bt * Nt * jnp.dtype(out_dtype).itemsize)
    vmem_bytes = int(1.25 * (w_bytes * (1 if n_col == 1 else 2) + 2 * act_bytes))
    vmem_bytes = min(max(vmem_bytes + (4 << 20), 32 << 20), 128 << 20)

    kernel = functools.partial(gru_cell_kernel, mm_dtype=w_dtype,
                               precision=precision)

    row = lambda i, j: (i, 0)        # activation tiles: constant over column steps
    colw = lambda i, j: (0, 0, j)    # weight/bias tiles: stream over column steps
    colb = lambda i, j: (0, j)

    def run(w_mode):
        return pl.pallas_call(
            kernel,
            out_shape=jax.ShapeDtypeStruct((Bp, Hp), out_dtype),
            grid_spec=pltpu.PrefetchScalarGridSpec(
                num_scalar_prefetch=0,
                grid=(Bp // Bt, n_col),
                in_specs=[
                    pl.BlockSpec((Bt, D), row),                               # x
                    pl.BlockSpec((Bt, Hp), row),                              # h (f32)
                    pl.BlockSpec((3, D, Nt), colw, pipeline_mode=w_mode),     # w_x
                    pl.BlockSpec((3, Hp, Nt), colw, pipeline_mode=w_mode),    # w_h
                    pl.BlockSpec((3, 1, Nt), colw, pipeline_mode=w_mode),     # b
                    pl.BlockSpec((1, Nt), colb, pipeline_mode=w_mode),        # b_hn
                ],
                out_specs=pl.BlockSpec((Bt, Nt), lambda i, j: (i, j)),
            ),
            compiler_params=pltpu.CompilerParams(
                dimension_semantics=("parallel", "parallel"),
                vmem_limit_bytes=vmem_bytes,
            ),
        )(x_p, h_p, w_x, w_h, b, b_hn)

    if n_col == 1:
        # Constant-index weights: single-buffer them (halves their VMEM use).
        try:
            out = run(pl.Buffered(1))
        except Exception:
            # TODO(synk): pl.Buffered(1) unsupported on this jax build; fall back.
            out = run(None)
    else:
        out = run(None)

    return out[:B, :H]


def gru_cell_ref(x, h, wx, bx, wh, bh):
    """Pure-JAX reference mirroring the PyTorch module exactly."""
    H = h.shape[-1]
    prec = jax.lax.Precision.HIGHEST
    gate_x = jnp.dot(x, wx.T, precision=prec) + bx
    gate_h = jnp.dot(h, wh.T, precision=prec) + bh
    i_r, i_i, i_n = gate_x[:, 0:H], gate_x[:, H:2 * H], gate_x[:, 2 * H:3 * H]
    h_r, h_i, h_n = gate_h[:, 0:H], gate_h[:, H:2 * H], gate_h[:, 2 * H:3 * H]
    resetgate = jax.nn.sigmoid(i_r + h_r)
    inputgate = jax.nn.sigmoid(i_i + h_i)
    newgate = jnp.tanh(i_n + resetgate * h_n)
    return newgate + inputgate * (h - newgate)


if __name__ == "__main__":
    key = jax.random.PRNGKey(0)
    keys = jax.random.split(key, 8)

    def init_params(k, input_size, hidden_size):
        k_wx, k_bx, k_wh, k_bh = jax.random.split(k, 4)
        bound_x = 1.0 / math.sqrt(input_size)
        bound_h = 1.0 / math.sqrt(hidden_size)
        wx = jax.random.uniform(k_wx, (3 * hidden_size, input_size),
                                jnp.float32, -bound_x, bound_x)
        bx = jax.random.uniform(k_bx, (3 * hidden_size,),
                                jnp.float32, -bound_x, bound_x)
        wh = jax.random.uniform(k_wh, (3 * hidden_size, hidden_size),
                                jnp.float32, -bound_h, bound_h)
        bh = jax.random.uniform(k_bh, (3 * hidden_size,),
                                jnp.float32, -bound_h, bound_h)
        return wx, bx, wh, bh

    # Case 1: single-tile grid, exact f32 path (Buffered(1) resident weights).
    D, H = 16, 32
    wx, bx, wh, bh = init_params(keys[0], D, H)
    x = jax.random.normal(keys[1], (8, D), jnp.float32)
    h = jax.random.normal(keys[2], (8, H), jnp.float32)
    hy = gru_cell(x, h, wx, bx, wh, bh, compute_dtype=None)
    jax.block_until_ready(hy)
    hy_ref = gru_cell_ref(x, h, wx, bx, wh, bh)
    assert hy.shape == (8, H)
    assert jnp.allclose(hy, hy_ref, atol=1e-4, rtol=1e-4), "f32 mismatch (B=8)"

    # Case 2: multi-step batch grid, f32 path + default bf16 MXU path.
    x2 = jax.random.normal(keys[3], (24, D), jnp.float32)
    h2 = jax.random.normal(keys[4], (24, H), jnp.float32)
    hy2 = gru_cell(x2, h2, wx, bx, wh, bh, batch_tile=8, compute_dtype=None)
    hy2_bf16 = gru_cell(x2, h2, wx, bx, wh, bh, batch_tile=8)  # bf16 default
    jax.block_until_ready((hy2, hy2_bf16))
    hy2_ref = gru_cell_ref(x2, h2, wx, bx, wh, bh)
    assert hy2.shape == (24, H)
    assert jnp.allclose(hy2, hy2_ref, atol=1e-4, rtol=1e-4), "f32 mismatch (B=24)"
    assert jnp.allclose(hy2_bf16, hy2_ref, atol=5e-2, rtol=5e-2), "bf16 mismatch (B=24)"

    # Case 3: column-tiled grid (H=160 -> Hp=256 split into 2x128-col tiles)
    #         plus a 2-step batch grid (B=16 -> 2 tiles of 8).
    D3, H3 = 16, 160
    wx3, bx3, wh3, bh3 = init_params(keys[5], D3, H3)
    x3 = jax.random.normal(keys[6], (16, D3), jnp.float32)
    h3 = jax.random.normal(keys[7], (16, H3), jnp.float32)
    hy3 = gru_cell(x3, h3, wx3, bx3, wh3, bh3, col_tile=128, compute_dtype=None)
    jax.block_until_ready(hy3)
    hy3_ref = gru_cell_ref(x3, h3, wx3, bx3, wh3, bh3)
    assert hy3.shape == (16, H3)
    assert jnp.allclose(hy3, hy3_ref, atol=1e-4, rtol=1e-4), "f32 mismatch (col-tiled)"

    print("KERNEL_OK")
</pallas_src>

<mosaic_0001>
module attributes {stable_mosaic.version = 11 : i64} {
  func.func @gru_cell_kernel(%arg0: i32, %arg1: i32, %arg2: memref<8x16xf32, #tpu.memory_space<vmem>>, %arg3: memref<8x128xf32, #tpu.memory_space<vmem>>, %arg4: memref<3x16x128xf32, #tpu.memory_space<vmem>>, %arg5: memref<3x128x128xf32, #tpu.memory_space<vmem>>, %arg6: memref<3x1x128xf32, #tpu.memory_space<vmem>>, %arg7: memref<1x128xf32, #tpu.memory_space<vmem>>, %arg8: memref<8x128xf32, #tpu.memory_space<vmem>>) attributes {dimension_semantics = [#tpu.dimension_semantics<parallel>, #tpu.dimension_semantics<parallel>], iteration_bounds = array<i64: 1, 1>, scalar_prefetch = 0 : i64, scratch_operands = 0 : i64, tpu.core_type = #tpu.core_type<tc>, window_params = [{transform_indices = @transform_0, window_bounds = array<i64: 8, 16>}, {transform_indices = @transform_1, window_bounds = array<i64: 8, 128>}, {pipeline_mode = #tpu.pipeline_mode<synchronous>, transform_indices = @transform_2, window_bounds = array<i64: 3, 16, 128>}, {pipeline_mode = #tpu.pipeline_mode<synchronous>, transform_indices = @transform_3, window_bounds = array<i64: 3, 128, 128>}, {pipeline_mode = #tpu.pipeline_mode<synchronous>, transform_indices = @transform_4, window_bounds = array<i64: 3, 1, 128>}, {pipeline_mode = #tpu.pipeline_mode<synchronous>, transform_indices = @transform_5, window_bounds = array<i64: 1, 128>}, {transform_indices = @transform_6, window_bounds = array<i64: 8, 128>}]} {
    %c128_i32 = arith.constant 128 : i32
    %0 = arith.muli %arg1, %c128_i32 : i32
    %1 = tpu.assume_multiple %0, 128 : i32
    %c0 = arith.constant 0 : index
    %c0_0 = arith.constant 0 : index
    %2 = vector.load %arg2[%c0, %c0_0] : memref<8x16xf32, #tpu.memory_space<vmem>>, vector<8x16xf32>
    %c0_1 = arith.constant 0 : index
    %c0_2 = arith.constant 0 : index
    %3 = vector.load %arg3[%c0_1, %c0_2] : memref<8x128xf32, #tpu.memory_space<vmem>>, vector<8x128xf32>
    %c0_3 = arith.constant 0 : index
    %4 = arith.index_cast %1 : i32 to index
    %5 = vector.load %arg3[%c0_3, %4] : memref<8x128xf32, #tpu.memory_space<vmem>>, vector<8x128xf32>
    %c0_4 = arith.constant 0 : index
    %c0_5 = arith.constant 0 : index
    %c0_6 = arith.constant 0 : index
    %6 = vector.load %arg4[%c0_4, %c0_5, %c0_6] : memref<3x16x128xf32, #tpu.memory_space<vmem>>, vector<1x16x128xf32>
    %7 = vector.shape_cast %6 : vector<1x16x128xf32> to vector<16x128xf32>
    %cst = arith.constant dense<0.000000e+00> : vector<8x128xf32>
    %8 = tpu.matmul %2, %7, %cst {dimension_numbers = #tpu.dot_dimension_numbers<[1], [0], [0], [1], [0, 0, 1, 1], [], []>, precision = #tpu.contract_precision<fp32>} : vector<8x16xf32>, vector<16x128xf32>, vector<8x128xf32> -> vector<8x128xf32>
    %c0_7 = arith.constant 0 : index
    %c0_8 = arith.constant 0 : index
    %c0_9 = arith.constant 0 : index
    %9 = vector.load %arg5[%c0_7, %c0_8, %c0_9] : memref<3x128x128xf32, #tpu.memory_space<vmem>>, vector<1x128x128xf32>
    %10 = vector.shape_cast %9 : vector<1x128x128xf32> to vector<128x128xf32>
    %cst_10 = arith.constant dense<0.000000e+00> : vector<8x128xf32>
    %11 = tpu.matmul %3, %10, %cst_10 {dimension_numbers = #tpu.dot_dimension_numbers<[1], [0], [0], [1], [0, 0, 1, 1], [], []>, precision = #tpu.contract_precision<fp32>} : vector<8x128xf32>, vector<128x128xf32>, vector<8x128xf32> -> vector<8x128xf32>
    %12 = arith.addf %8, %11 : vector<8x128xf32>
    %c0_11 = arith.constant 0 : index
    %c0_12 = arith.constant 0 : index
    %c0_13 = arith.constant 0 : index
    %13 = vector.load %arg6[%c0_11, %c0_12, %c0_13] : memref<3x1x128xf32, #tpu.memory_space<vmem>>, vector<1x1x128xf32>
    %14 = vector.shape_cast %13 : vector<1x1x128xf32> to vector<1x128xf32>
    %15 = vector.broadcast %14 : vector<1x128xf32> to vector<8x128xf32>
    %16 = arith.addf %12, %15 : vector<8x128xf32>
    %17 = arith.negf %16 : vector<8x128xf32>
    %18 = math.exp %17 : vector<8x128xf32>
    %cst_14 = arith.constant 1.000000e+00 : f32
    %19 = vector.broadcast %cst_14 : f32 to vector<8x128xf32>
    %20 = arith.addf %19, %18 : vector<8x128xf32>
    %21 = arith.divf %19, %20 : vector<8x128xf32>
    %c1 = arith.constant 1 : index
    %c0_15 = arith.constant 0 : index
    %c0_16 = arith.constant 0 : index
    %22 = vector.load %arg4[%c1, %c0_15, %c0_16] : memref<3x16x128xf32, #tpu.memory_space<vmem>>, vector<1x16x128xf32>
    %23 = vector.shape_cast %22 : vector<1x16x128xf32> to vector<16x128xf32>
    %cst_17 = arith.constant dense<0.000000e+00> : vector<8x128xf32>
    %24 = tpu.matmul %2, %23, %cst_17 {dimension_numbers = #tpu.dot_dimension_numbers<[1], [0], [0], [1], [0, 0, 1, 1], [], []>, precision = #tpu.contract_precision<fp32>} : vector<8x16xf32>, vector<16x128xf32>, vector<8x128xf32> -> vector<8x128xf32>
    %c1_18 = arith.constant 1 : index
    %c0_19 = arith.constant 0 : index
    %c0_20 = arith.constant 0 : index
    %25 = vector.load %arg5[%c1_18, %c0_19, %c0_20] : memref<3x128x128xf32, #tpu.memory_space<vmem>>, vector<1x128x128xf32>
    %26 = vector.shape_cast %25 : vector<1x128x128xf32> to vector<128x128xf32>
    %cst_21 = arith.constant dense<0.000000e+00> : vector<8x128xf32>
    %27 = tpu.matmul %3, %26, %cst_21 {dimension_numbers = #tpu.dot_dimension_numbers<[1], [0], [0], [1], [0, 0, 1, 1], [], []>, precision = #tpu.contract_precision<fp32>} : vector<8x128xf32>, vector<128x128xf32>, vector<8x128xf32> -> vector<8x128xf32>
    %28 = arith.addf %24, %27 : vector<8x128xf32>
    %c1_22 = arith.constant 1 : index
    %c0_23 = arith.constant 0 : index
    %c0_24 = arith.constant 0 : index
    %29 = vector.load %arg6[%c1_22, %c0_23, %c0_24] : memref<3x1x128xf32, #tpu.memory_space<vmem>>, vector<1x1x128xf32>
    %30 = vector.shape_cast %29 : vector<1x1x128xf32> to vector<1x128xf32>
    %31 = vector.broadcast %30 : vector<1x128xf32> to vector<8x128xf32>
    %32 = arith.addf %28, %31 : vector<8x128xf32>
    %33 = arith.negf %32 : vector<8x128xf32>
    %34 = math.exp %33 : vector<8x128xf32>
    %cst_25 = arith.constant 1.000000e+00 : f32
    %35 = vector.broadcast %cst_25 : f32 to vector<8x128xf32>
    %36 = arith.addf %35, %34 : vector<8x128xf32>
    %37 = arith.divf %35, %36 : vector<8x128xf32>
    %c2 = arith.constant 2 : index
    %c0_26 = arith.constant 0 : index
    %c0_27 = arith.constant 0 : index
    %38 = vector.load %arg4[%c2, %c0_26, %c0_27] : memref<3x16x128xf32, #tpu.memory_space<vmem>>, vector<1x16x128xf32>
    %39 = vector.shape_cast %38 : vector<1x16x128xf32> to vector<16x128xf32>
    %cst_28 = arith.constant dense<0.000000e+00> : vector<8x128xf32>
    %40 = tpu.matmul %2, %39, %cst_28 {dimension_numbers = #tpu.dot_dimension_numbers<[1], [0], [0], [1], [0, 0, 1, 1], [], []>, precision = #tpu.contract_precision<fp32>} : vector<8x16xf32>, vector<16x128xf32>, vector<8x128xf32> -> vector<8x128xf32>
    %c2_29 = arith.constant 2 : index
    %c0_30 = arith.constant 0 : index
    %c0_31 = arith.constant 0 : index
    %41 = vector.load %arg6[%c2_29, %c0_30, %c0_31] : memref<3x1x128xf32, #tpu.memory_space<vmem>>, vector<1x1x128xf32>
    %42 = vector.shape_cast %41 : vector<1x1x128xf32> to vector<1x128xf32>
    %43 = vector.broadcast %42 : vector<1x128xf32> to vector<8x128xf32>
    %44 = arith.addf %40, %43 : vector<8x128xf32>
    %c2_32 = arith.constant 2 : index
    %c0_33 = arith.constant 0 : index
    %c0_34 = arith.constant 0 : index
    %45 = vector.load %arg5[%c2_32, %c0_33, %c0_34] : memref<3x128x128xf32, #tpu.memory_space<vmem>>, vector<1x128x128xf32>
    %46 = vector.shape_cast %45 : vector<1x128x128xf32> to vector<128x128xf32>
    %cst_35 = arith.constant dense<0.000000e+00> : vector<8x128xf32>
    %47 = tpu.matmul %3, %46, %cst_35 {dimension_numbers = #tpu.dot_dimension_numbers<[1], [0], [0], [1], [0, 0, 1, 1], [], []>, precision = #tpu.contract_precision<fp32>} : vector<8x128xf32>, vector<128x128xf32>, vector<8x128xf32> -> vector<8x128xf32>
    %c0_36 = arith.constant 0 : index
    %c0_37 = arith.constant 0 : index
    %48 = vector.load %arg7[%c0_36, %c0_37] : memref<1x128xf32, #tpu.memory_space<vmem>>, vector<1x128xf32>
    %49 = vector.broadcast %48 : vector<1x128xf32> to vector<8x128xf32>
    %50 = arith.addf %47, %49 : vector<8x128xf32>
    %51 = arith.mulf %21, %50 : vector<8x128xf32>
    %52 = arith.addf %44, %51 : vector<8x128xf32>
    %53 = math.tanh %52 : vector<8x128xf32>
    %54 = arith.subf %5, %53 : vector<8x128xf32>
    %55 = arith.mulf %37, %54 : vector<8x128xf32>
    %56 = arith.addf %53, %55 : vector<8x128xf32>
    %c0_38 = arith.constant 0 : index
    %c0_39 = arith.constant 0 : index
    %57 = vector.load %arg8[%c0_38, %c0_39] : memref<8x128xf32, #tpu.memory_space<vmem>>, vector<8x128xf32>
    tpu.vector_store %arg8[%c0_38, %c0_39], %56 {strides = array<i32>} : memref<8x128xf32, #tpu.memory_space<vmem>>, vector<8x128xf32>,
    return
  }
  func.func @transform_0(%arg0: i32, %arg1: i32) -> (i32, i32) {
    %c0_i32 = arith.constant 0 : i32
    %c0_i32_0 = arith.constant 0 : i32
    return %arg0, %c0_i32 : i32, i32
  }
  func.func @transform_1(%arg0: i32, %arg1: i32) -> (i32, i32) {
    %c0_i32 = arith.constant 0 : i32
    %c0_i32_0 = arith.constant 0 : i32
    return %arg0, %c0_i32 : i32, i32
  }
  func.func @transform_2(%arg0: i32, %arg1: i32) -> (i32, i32, i32) {
    %c0_i32 = arith.constant 0 : i32
    %c0_i32_0 = arith.constant 0 : i32
    %c0_i32_1 = arith.constant 0 : i32
    return %c0_i32, %c0_i32_0, %arg1 : i32, i32, i32
  }
  func.func @transform_3(%arg0: i32, %arg1: i32) -> (i32, i32, i32) {
    %c0_i32 = arith.constant 0 : i32
    %c0_i32_0 = arith.constant 0 : i32
    %c0_i32_1 = arith.constant 0 : i32
    return %c0_i32, %c0_i32_0, %arg1 : i32, i32, i32
  }
  func.func @transform_4(%arg0: i32, %arg1: i32) -> (i32, i32, i32) {
    %c0_i32 = arith.constant 0 : i32
    %c0_i32_0 = arith.constant 0 : i32
    %c0_i32_1 = arith.constant 0 : i32
    return %c0_i32, %c0_i32_0, %arg1 : i32, i32, i32
  }
  func.func @transform_5(%arg0: i32, %arg1: i32) -> (i32, i32) {
    %c0_i32 = arith.constant 0 : i32
    %c0_i32_0 = arith.constant 0 : i32
    return %c0_i32, %arg1 : i32, i32
  }
  func.func @transform_6(%arg0: i32, %arg1: i32) -> (i32, i32) {
    %c0_i32 = arith.constant 0 : i32
    return %arg0, %arg1 : i32, i32
  }
}

module attributes {stable_mosaic.version = 11 : i64} {
  func.func @gru_cell_kernel(%arg0: i32, %arg1: i32, %arg2: memref<8x16xf32, #tpu.memory_space<vmem>>, %arg3: memref<8x128xf32, #tpu.memory_space<vmem>>, %arg4: memref<3x16x128xf32, #tpu.memory_space<vmem>>, %arg5: memref<3x128x128xf32, #tpu.memory_space<vmem>>, %arg6: memref<3x1x128xf32, #tpu.memory_space<vmem>>, %arg7: memref<1x128xf32, #tpu.memory_space<vmem>>, %arg8: memref<8x128xf32, #tpu.memory_space<vmem>>) attributes {dimension_semantics = [#tpu.dimension_semantics<parallel>, #tpu.dimension_semantics<parallel>], iteration_bounds = array<i64: 1, 1>, scalar_prefetch = 0 : i64, scratch_operands = 0 : i64, tpu.core_type = #tpu.core_type<tc>, window_params = [{transform_indices = @transform_0, window_bounds = array<i64: 8, 16>}, {transform_indices = @transform_1, window_bounds = array<i64: 8, 128>}, {transform_indices = @transform_2, window_bounds = array<i64: 3, 16, 128>}, {transform_indices = @transform_3, window_bounds = array<i64: 3, 128, 128>}, {transform_indices = @transform_4, window_bounds = array<i64: 3, 1, 128>}, {transform_indices = @transform_5, window_bounds = array<i64: 1, 128>}, {transform_indices = @transform_6, window_bounds = array<i64: 8, 128>}]} {
    %c128_i32 = arith.constant 128 : i32
    %0 = arith.muli %arg1, %c128_i32 : i32
    %1 = tpu.assume_multiple %0, 128 : i32
    %c0 = arith.constant 0 : index
    %c0_0 = arith.constant 0 : index
    %2 = vector.load %arg2[%c0, %c0_0] : memref<8x16xf32, #tpu.memory_space<vmem>>, vector<8x16xf32>
    %c0_1 = arith.constant 0 : index
    %c0_2 = arith.constant 0 : index
    %3 = vector.load %arg3[%c0_1, %c0_2] : memref<8x128xf32, #tpu.memory_space<vmem>>, vector<8x128xf32>
    %c0_3 = arith.constant 0 : index
    %4 = arith.index_cast %1 : i32 to index
    %5 = vector.load %arg3[%c0_3, %4] : memref<8x128xf32, #tpu.memory_space<vmem>>, vector<8x128xf32>
    %c0_4 = arith.constant 0 : index
    %c0_5 = arith.constant 0 : index
    %c0_6 = arith.constant 0 : index
    %6 = vector.load %arg4[%c0_4, %c0_5, %c0_6] : memref<3x16x128xf32, #tpu.memory_space<vmem>>, vector<1x16x128xf32>
    %7 = vector.shape_cast %6 : vector<1x16x128xf32> to vector<16x128xf32>
    %cst = arith.constant dense<0.000000e+00> : vector<8x128xf32>
    %8 = tpu.matmul %2, %7, %cst {dimension_numbers = #tpu.dot_dimension_numbers<[1], [0], [0], [1], [0, 0, 1, 1], [], []>, precision = #tpu.contract_precision<fp32>} : vector<8x16xf32>, vector<16x128xf32>, vector<8x128xf32> -> vector<8x128xf32>
    %c0_7 = arith.constant 0 : index
    %c0_8 = arith.constant 0 : index
    %c0_9 = arith.constant 0 : index
    %9 = vector.load %arg5[%c0_7, %c0_8, %c0_9] : memref<3x128x128xf32, #tpu.memory_space<vmem>>, vector<1x128x128xf32>
    %10 = vector.shape_cast %9 : vector<1x128x128xf32> to vector<128x128xf32>
    %cst_10 = arith.constant dense<0.000000e+00> : vector<8x128xf32>
    %11 = tpu.matmul %3, %10, %cst_10 {dimension_numbers = #tpu.dot_dimension_numbers<[1], [0], [0], [1], [0, 0, 1, 1], [], []>, precision = #tpu.contract_precision<fp32>} : vector<8x128xf32>, vector<128x128xf32>, vector<8x128xf32> -> vector<8x128xf32>
    %12 = arith.addf %8, %11 : vector<8x128xf32>
    %c0_11 = arith.constant 0 : index
    %c0_12 = arith.constant 0 : index
    %c0_13 = arith.constant 0 : index
    %13 = vector.load %arg6[%c0_11, %c0_12, %c0_13] : memref<3x1x128xf32, #tpu.memory_space<vmem>>, vector<1x1x128xf32>
    %14 = vector.shape_cast %13 : vector<1x1x128xf32> to vector<1x128xf32>
    %15 = vector.broadcast %14 : vector<1x128xf32> to vector<8x128xf32>
    %16 = arith.addf %12, %15 : vector<8x128xf32>
    %17 = arith.negf %16 : vector<8x128xf32>
    %18 = math.exp %17 : vector<8x128xf32>
    %cst_14 = arith.constant 1.000000e+00 : f32
    %19 = vector.broadcast %cst_14 : f32 to vector<8x128xf32>
    %20 = arith.addf %19, %18 : vector<8x128xf32>
    %21 = arith.divf %19, %20 : vector<8x128xf32>
    %c1 = arith.constant 1 : index
    %c0_15 = arith.constant 0 : index
    %c0_16 = arith.constant 0 : index
    %22 = vector.load %arg4[%c1, %c0_15, %c0_16] : memref<3x16x128xf32, #tpu.memory_space<vmem>>, vector<1x16x128xf32>
    %23 = vector.shape_cast %22 : vector<1x16x128xf32> to vector<16x128xf32>
    %cst_17 = arith.constant dense<0.000000e+00> : vector<8x128xf32>
    %24 = tpu.matmul %2, %23, %cst_17 {dimension_numbers = #tpu.dot_dimension_numbers<[1], [0], [0], [1], [0, 0, 1, 1], [], []>, precision = #tpu.contract_precision<fp32>} : vector<8x16xf32>, vector<16x128xf32>, vector<8x128xf32> -> vector<8x128xf32>
    %c1_18 = arith.constant 1 : index
    %c0_19 = arith.constant 0 : index
    %c0_20 = arith.constant 0 : index
    %25 = vector.load %arg5[%c1_18, %c0_19, %c0_20] : memref<3x128x128xf32, #tpu.memory_space<vmem>>, vector<1x128x128xf32>
    %26 = vector.shape_cast %25 : vector<1x128x128xf32> to vector<128x128xf32>
    %cst_21 = arith.constant dense<0.000000e+00> : vector<8x128xf32>
    %27 = tpu.matmul %3, %26, %cst_21 {dimension_numbers = #tpu.dot_dimension_numbers<[1], [0], [0], [1], [0, 0, 1, 1], [], []>, precision = #tpu.contract_precision<fp32>} : vector<8x128xf32>, vector<128x128xf32>, vector<8x128xf32> -> vector<8x128xf32>
    %28 = arith.addf %24, %27 : vector<8x128xf32>
    %c1_22 = arith.constant 1 : index
    %c0_23 = arith.constant 0 : index
    %c0_24 = arith.constant 0 : index
    %29 = vector.load %arg6[%c1_22, %c0_23, %c0_24] : memref<3x1x128xf32, #tpu.memory_space<vmem>>, vector<1x1x128xf32>
    %30 = vector.shape_cast %29 : vector<1x1x128xf32> to vector<1x128xf32>
    %31 = vector.broadcast %30 : vector<1x128xf32> to vector<8x128xf32>
    %32 = arith.addf %28, %31 : vector<8x128xf32>
    %33 = arith.negf %32 : vector<8x128xf32>
    %34 = math.exp %33 : vector<8x128xf32>
    %cst_25 = arith.constant 1.000000e+00 : f32
    %35 = vector.broadcast %cst_25 : f32 to vector<8x128xf32>
    %36 = arith.addf %35, %34 : vector<8x128xf32>
    %37 = arith.divf %35, %36 : vector<8x128xf32>
    %c2 = arith.constant 2 : index
    %c0_26 = arith.constant 0 : index
    %c0_27 = arith.constant 0 : index
    %38 = vector.load %arg4[%c2, %c0_26, %c0_27] : memref<3x16x128xf32, #tpu.memory_space<vmem>>, vector<1x16x128xf32>
    %39 = vector.shape_cast %38 : vector<1x16x128xf32> to vector<16x128xf32>
    %cst_28 = arith.constant dense<0.000000e+00> : vector<8x128xf32>
    %40 = tpu.matmul %2, %39, %cst_28 {dimension_numbers = #tpu.dot_dimension_numbers<[1], [0], [0], [1], [0, 0, 1, 1], [], []>, precision = #tpu.contract_precision<fp32>} : vector<8x16xf32>, vector<16x128xf32>, vector<8x128xf32> -> vector<8x128xf32>
    %c2_29 = arith.constant 2 : index
    %c0_30 = arith.constant 0 : index
    %c0_31 = arith.constant 0 : index
    %41 = vector.load %arg6[%c2_29, %c0_30, %c0_31] : memref<3x1x128xf32, #tpu.memory_space<vmem>>, vector<1x1x128xf32>
    %42 = vector.shape_cast %41 : vector<1x1x128xf32> to vector<1x128xf32>
    %43 = vector.broadcast %42 : vector<1x128xf32> to vector<8x128xf32>
    %44 = arith.addf %40, %43 : vector<8x128xf32>
    %c2_32 = arith.constant 2 : index
    %c0_33 = arith.constant 0 : index
    %c0_34 = arith.constant 0 : index
    %45 = vector.load %arg5[%c2_32, %c0_33, %c0_34] : memref<3x128x128xf32, #tpu.memory_space<vmem>>, vector<1x128x128xf32>
    %46 = vector.shape_cast %45 : vector<1x128x128xf32> to vector<128x128xf32>
    %cst_35 = arith.constant dense<0.000000e+00> : vector<8x128xf32>
    %47 = tpu.matmul %3, %46, %cst_35 {dimension_numbers = #tpu.dot_dimension_numbers<[1], [0], [0], [1], [0, 0, 1, 1], [], []>, precision = #tpu.contract_precision<fp32>} : vector<8x128xf32>, vector<128x128xf32>, vector<8x128xf32> -> vector<8x128xf32>
    %c0_36 = arith.constant 0 : index
    %c0_37 = arith.constant 0 : index
    %48 = vector.load %arg7[%c0_36, %c0_37] : memref<1x128xf32, #tpu.memory_space<vmem>>, vector<1x128xf32>
    %49 = vector.broadcast %48 : vector<1x128xf32> to vector<8x128xf32>
    %50 = arith.addf %47, %49 : vector<8x128xf32>
    %51 = arith.mulf %21, %50 : vector<8x128xf32>
    %52 = arith.addf %44, %51 : vector<8x128xf32>
    %53 = math.tanh %52 : vector<8x128xf32>
    %54 = arith.subf %5, %53 : vector<8x128xf32>
    %55 = arith.mulf %37, %54 : vector<8x128xf32>
    %56 = arith.addf %53, %55 : vector<8x128xf32>
    %c0_38 = arith.constant 0 : index
    %c0_39 = arith.constant 0 : index
    %57 = vector.load %arg8[%c0_38, %c0_39] : memref<8x128xf32, #tpu.memory_space<vmem>>, vector<8x128xf32>
    tpu.vector_store %arg8[%c0_38, %c0_39], %56 {strides = array<i32>} : memref<8x128xf32, #tpu.memory_space<vmem>>, vector<8x128xf32>,
    return
  }
  func.func @transform_0(%arg0: i32, %arg1: i32) -> (i32, i32) {
    %c0_i32 = arith.constant 0 : i32
    %c0_i32_0 = arith.constant 0 : i32
    return %arg0, %c0_i32 : i32, i32
  }
  func.func @transform_1(%arg0: i32, %arg1: i32) -> (i32, i32) {
    %c0_i32 = arith.constant 0 : i32
    %c0_i32_0 = arith.constant 0 : i32
    return %arg0, %c0_i32 : i32, i32
  }
  func.func @transform_2(%arg0: i32, %arg1: i32) -> (i32, i32, i32) {
    %c0_i32 = arith.constant 0 : i32
    %c0_i32_0 = arith.constant 0 : i32
    %c0_i32_1 = arith.constant 0 : i32
    return %c0_i32, %c0_i32_0, %arg1 : i32, i32, i32
  }
  func.func @transform_3(%arg0: i32, %arg1: i32) -> (i32, i32, i32) {
    %c0_i32 = arith.constant 0 : i32
    %c0_i32_0 = arith.constant 0 : i32
    %c0_i32_1 = arith.constant 0 : i32
    return %c0_i32, %c0_i32_0, %arg1 : i32, i32, i32
  }
  func.func @transform_4(%arg0: i32, %arg1: i32) -> (i32, i32, i32) {
    %c0_i32 = arith.constant 0 : i32
    %c0_i32_0 = arith.constant 0 : i32
    %c0_i32_1 = arith.constant 0 : i32
    return %c0_i32, %c0_i32_0, %arg1 : i32, i32, i32
  }
  func.func @transform_5(%arg0: i32, %arg1: i32) -> (i32, i32) {
    %c0_i32 = arith.constant 0 : i32
    %c0_i32_0 = arith.constant 0 : i32
    return %c0_i32, %arg1 : i32, i32
  }
  func.func @transform_6(%arg0: i32, %arg1: i32) -> (i32, i32) {
    %c0_i32 = arith.constant 0 : i32
    return %arg0, %arg1 : i32, i32
  }
}

</mosaic_0001>

<llo_original>
// kernel: tpu_custom_call.1
$region0: #{tpu_custom_call.1}
  #allocation0 [shape = 'u32[]', space=smem, size = 0x4, offset = 0x4, fixed_abs, tag = 'smem constant byte address 0x4 - core index']
  #allocation1 [shape = 'u32[72,128]{1,0:T(1,128)}', space=vmem, size = 0x9000, scoped, tag = 'internal scratch']
  %s0 = inlined_call_operand.hbm [shape: f32[8,16], index: 0, kind: input, shape index: {}]
  %s1 = inlined_call_operand.hbm [shape: f32[8,128], index: 1, kind: input, shape index: {}]
  %s2 = inlined_call_operand.hbm [shape: f32[3,16,128], index: 2, kind: input, shape index: {}]
  %s3 = inlined_call_operand.hbm [shape: f32[3,128,128], index: 3, kind: input, shape index: {}]
  %s4 = inlined_call_operand.vmem [shape: f32[3,1,128], index: 4, kind: input, shape index: {}]
  %s5 = inlined_call_operand.vmem [shape: f32[1,128], index: 5, kind: input, shape index: {}]
  %s6 = inlined_call_operand.hbm [shape: f32[8,128], index: 6, kind: output, shape index: {}]
  %s7 = sld [smem:[#allocation0]]
  $region50: #{tpu_custom_call.1} parent=0
    _
  %s9 = ssub.s32 1, %s7
  %s10 = scalar_select 0, %s9, %s7
  $region1: #{tpu_custom_call.1} parent=0
    #allocation2 [shape = 'u8[4096]{0}', space=vmem, size = 0x1000, scoped, tag = 'input window, operand 0, single buffered']
    #allocation3 [shape = 's32[1]{0}', space=sflag, size = 0x4, scoped, tag = 'scoped memory for tpu_custom_call.1']
    #allocation4 [shape = 's32[1]{0}', space=sflag, size = 0x4, scoped, tag = 'scoped memory for tpu_custom_call.1']
    #allocation5 [shape = 'u8[4096]{0}', space=vmem, size = 0x1000, scoped, tag = 'input window, operand 1, single buffered']
    #allocation6 [shape = 's32[1]{0}', space=sflag, size = 0x4, scoped, tag = 'scoped memory for tpu_custom_call.1']
    #allocation7 [shape = 'u8[24576]{0}', space=vmem, size = 0x6000, scoped, tag = 'input window, operand 2, single buffered']
    #allocation8 [shape = 'u8[196608]{0}', space=vmem, size = 0x30000, scoped, tag = 'input window, operand 3, single buffered']
    #allocation9 [shape = 's32[1]{0}', space=sflag, size = 0x4, scoped, tag = 'scoped memory for tpu_custom_call.1']
    #allocation10 [shape = 'u8[4096]{0}', space=vmem, size = 0x1000, scoped, tag = 'output window, operand 0, single buffered']
    %11 = vsyncpa [#allocation3], 0
    %12 = vsyncpa [#allocation6], 0
    %13 = vsyncpa [#allocation9], 0
    %14 = vsyncpa [#allocation4], 0
    // Predicated region
    $region2: #{tpu_custom_call.1} parent=1 // pred_check
      _
    $region3: #{tpu_custom_call.1} parent=1 // pred_check_branch
      %16 = sbr.rel (0) target = $region5
    $region4: #{tpu_custom_call.1} parent=1 // pred_region
      %18 = vsyncadd [#allocation3], 0
      %s20 = sshll.u32 %s0, 4
      %s21 = int_to_ptr.hbm [resolvable:$true] %s20
      %s22 = sshll.u32 [#allocation2], 4
      %s23 = int_to_ptr.vmem [resolvable:$true] %s22
      %25 = dma.hbm_to_vmem [thread:$0]  %s21, 128, %s23, [#allocation3]
    $region5: #{tpu_custom_call.1} parent=1 // pred_fallthru
      _
    // Predicated region
    $region6: #{tpu_custom_call.1} parent=1 // pred_check
      _
    $region7: #{tpu_custom_call.1} parent=1 // pred_check_branch
      %27 = sbr.rel (0) target = $region9
    $region8: #{tpu_custom_call.1} parent=1 // pred_region
      %29 = vsyncadd [#allocation6], 0
      %s31 = sshll.u32 %s1, 4
      %s32 = int_to_ptr.hbm [resolvable:$true] %s31
      %s33 = sshll.u32 [#allocation5], 4
      %s34 = int_to_ptr.vmem [resolvable:$true] %s33
      %36 = dma.hbm_to_vmem [thread:$0]  %s32, 128, %s34, [#allocation6]
    $region9: #{tpu_custom_call.1} parent=1 // pred_fallthru
      _
    // Predicated region
    $region10: #{tpu_custom_call.1} parent=1 // pred_check
      _
    $region11: #{tpu_custom_call.1} parent=1 // pred_check_branch
      %38 = sbr.rel (0) target = $region13
    $region12: #{tpu_custom_call.1} parent=1 // pred_region
      %40 = vsyncadd [#allocation6], 0
      %s41 = sshll.u32 %s2, 4
      %s42 = int_to_ptr.hbm [resolvable:$true] %s41
      %s43 = sshll.u32 [#allocation7], 4
      %s44 = int_to_ptr.vmem [resolvable:$true] %s43
      %49 = dma.hbm_to_vmem [thread:$0]  %s42, 768, %s44, [#allocation6], 128, 128, 8
    $region13: #{tpu_custom_call.1} parent=1 // pred_fallthru
      _
    // Predicated region
    $region14: #{tpu_custom_call.1} parent=1 // pred_check
      _
    $region15: #{tpu_custom_call.1} parent=1 // pred_check_branch
      %51 = sbr.rel (0) target = $region17
    $region16: #{tpu_custom_call.1} parent=1 // pred_region
      %53 = vsyncadd [#allocation9], 0
      %s54 = sshll.u32 %s3, 4
      %s55 = int_to_ptr.hbm [resolvable:$true] %s54
      %s56 = sshll.u32 [#allocation8], 4
      %s57 = int_to_ptr.vmem [resolvable:$true] %s56
      %62 = dma.hbm_to_vmem [thread:$0]  %s55, 6144, %s57, [#allocation9], 128, 128, 8
    $region17: #{tpu_custom_call.1} parent=1 // pred_fallthru
      _
    // Predicated region
    $region18: #{tpu_custom_call.1} parent=1 // pred_check
      _
    $region19: #{tpu_custom_call.1} parent=1 // pred_check_branch
      %64 = sbr.rel (0) target = $region21
    $region20: #{tpu_custom_call.1} parent=1 // pred_region
      _
    $region21: #{tpu_custom_call.1} parent=1 // pred_fallthru
      _
    // Predicated region
    $region22: #{tpu_custom_call.1} parent=1 // pred_check
      _
    $region23: #{tpu_custom_call.1} parent=1 // pred_check_branch
      %66 = sbr.rel (0) target = $region25
    $region24: #{tpu_custom_call.1} parent=1 // pred_region
      _
    $region25: #{tpu_custom_call.1} parent=1 // pred_fallthru
      _
    // Predicated region
    $region26: #{tpu_custom_call.1} parent=1 // pred_check
      _
    $region27: #{tpu_custom_call.1} parent=1 // pred_check_branch
      %68 = sbr.rel (0) target = $region29
    $region28: #{tpu_custom_call.1} parent=1 // pred_region
      %70 = dma.done [#allocation3], 128
    $region29: #{tpu_custom_call.1} parent=1 // pred_fallthru
      _
    // Predicated region
    $region30: #{tpu_custom_call.1} parent=1 // pred_check
      _
    $region31: #{tpu_custom_call.1} parent=1 // pred_check_branch
      %72 = sbr.rel (0) target = $region33
    $region32: #{tpu_custom_call.1} parent=1 // pred_region
      %74 = dma.done [#allocation6], 128
    $region33: #{tpu_custom_call.1} parent=1 // pred_fallthru
      _
    // Predicated region
    $region34: #{tpu_custom_call.1} parent=1 // pred_check
      _
    $region35: #{tpu_custom_call.1} parent=1 // pred_check_branch
      %76 = sbr.rel (0) target = $region37
    $region36: #{tpu_custom_call.1} parent=1 // pred_region
      %78 = dma.done [#allocation6], 768
    $region37: #{tpu_custom_call.1} parent=1 // pred_fallthru
      _
    // Predicated region
    $region38: #{tpu_custom_call.1} parent=1 // pred_check
      _
    $region39: #{tpu_custom_call.1} parent=1 // pred_check_branch
      %80 = sbr.rel (0) target = $region41
    $region40: #{tpu_custom_call.1} parent=1 // pred_region
      %82 = dma.done [#allocation9], 6144
    $region41: #{tpu_custom_call.1} parent=1 // pred_fallthru
      _
    %s83 = smul.u32 0, 128
    %v84 = vld [vmem:[#allocation2] sm:$0xff]
    %v85 = vld [vmem:[#allocation5] sm:$0xff]
    %s86 = sshra.s32 %s83, 7
    %s87 = sand.u32 %s83, 127
    %s88 = scalar_lea.vmem [#allocation5], %s86
    %v89 = vld [vmem:[%s88] sm:$0xff]
    %v90 = vld [vmem:[#allocation7] sm:$0xff]
    %v91 = vld [vmem:[#allocation7 + $0x8] sm:$0xff]
    %v92 = vld [vmem:[#allocation8] sm:$0xff]
    %v93 = vld [vmem:[#allocation8 + $0x8] sm:$0xff]
    %v94 = vld [vmem:[#allocation8 + $0x10] sm:$0xff]
    %v95 = vld [vmem:[#allocation8 + $0x18] sm:$0xff]
    %v96 = vld [vmem:[#allocation8 + $0x20] sm:$0xff]
    %v97 = vld [vmem:[#allocation8 + $0x28] sm:$0xff]
    %v98 = vld [vmem:[#allocation8 + $0x30] sm:$0xff]
    %v99 = vld [vmem:[#allocation8 + $0x38] sm:$0xff]
    %v100 = vld [vmem:[#allocation8 + $0x40] sm:$0xff]
    %v101 = vld [vmem:[#allocation8 + $0x48] sm:$0xff]
    %v102 = vld [vmem:[#allocation8 + $0x50] sm:$0xff]
    %v103 = vld [vmem:[#allocation8 + $0x58] sm:$0xff]
    %v104 = vld [vmem:[#allocation8 + $0x60] sm:$0xff]
    %v105 = vld [vmem:[#allocation8 + $0x68] sm:$0xff]
    %v106 = vld [vmem:[#allocation8 + $0x70] sm:$0xff]
    %v107 = vld [vmem:[#allocation8 + $0x78] sm:$0xff]
    %v108 = vand.u32 %v107, 4294901760
    %109 = vmatpush.msra.mxu0 %v108
    %v110 = vand.u32 %v106, 4294901760
    %111 = vmatpush.msra.mxu0 %v110
    %v112 = vand.u32 %v105, 4294901760
    %113 = vmatpush.msra.mxu0 %v112
    %v114 = vand.u32 %v104, 4294901760
    %115 = vmatpush.msra.mxu0 %v114
    %v116 = vand.u32 %v103, 4294901760
    %117 = vmatpush.msra.mxu0 %v116
    %v118 = vand.u32 %v102, 4294901760
    %119 = vmatpush.msra.mxu0 %v118
    %v120 = vand.u32 %v101, 4294901760
    %121 = vmatpush.msra.mxu0 %v120
    %v122 = vand.u32 %v100, 4294901760
    %123 = vmatpush.msra.mxu0 %v122
    %v124 = vand.u32 %v99, 4294901760
    %125 = vmatpush.msra.mxu0 %v124
    %v126 = vand.u32 %v98, 4294901760
    %127 = vmatpush.msra.mxu0 %v126
    %v128 = vand.u32 %v97, 4294901760
    %129 = vmatpush.msra.mxu0 %v128
    %v130 = vand.u32 %v96, 4294901760
    %131 = vmatpush.msra.mxu0 %v130
    %v132 = vand.u32 %v95, 4294901760
    %133 = vmatpush.msra.mxu0 %v132
    %v134 = vand.u32 %v94, 4294901760
    %135 = vmatpush.msra.mxu0 %v134
    %v136 = vand.u32 %v93, 4294901760
    %137 = vmatpush.msra.mxu0 %v136
    %v138 = vand.u32 %v92, 4294901760
    %139 = vmatpush.msra.mxu0 %v138
    %v140 = vand.u32 %v85, 4294901760
    %v141 = vsub.f32 %v85, %v140
    %v142 = vand.u32 %v141, 4294901760
    %v143 = vsub.f32 %v141, %v142
    %v144 = vand.u32 %v143, 4294901760
    %145 = vmatmul.f32.gmra.mxu0 %v144
    %v146 = vpop.f32.mrf.mxu0
    %v147 = vadd.f32 0.0, %v146
    %148 = vdwg.mxu0
    %v149 = vand.u32 %v107, 4294901760
    %v150 = vsub.f32 %v107, %v149
    %v151 = vand.u32 %v150, 4294901760
    %v152 = vsub.f32 %v150, %v151
    %v153 = vand.u32 %v152, 4294901760
    %154 = vmatpush.msra.mxu0 %v153
    %v155 = vand.u32 %v106, 4294901760
    %v156 = vsub.f32 %v106, %v155
    %v157 = vand.u32 %v156, 4294901760
    %v158 = vsub.f32 %v156, %v157
    %v159 = vand.u32 %v158, 4294901760
    %160 = vmatpush.msra.mxu0 %v159
    %v161 = vand.u32 %v105, 4294901760
    %v162 = vsub.f32 %v105, %v161
    %v163 = vand.u32 %v162, 4294901760
    %v164 = vsub.f32 %v162, %v163
    %v165 = vand.u32 %v164, 4294901760
    %166 = vmatpush.msra.mxu0 %v165
    %v167 = vand.u32 %v104, 4294901760
    %v168 = vsub.f32 %v104, %v167
    %v169 = vand.u32 %v168, 4294901760
    %v170 = vsub.f32 %v168, %v169
    %v171 = vand.u32 %v170, 4294901760
    %172 = vmatpush.msra.mxu0 %v171
    %v173 = vand.u32 %v103, 4294901760
    %v174 = vsub.f32 %v103, %v173
    %v175 = vand.u32 %v174, 4294901760
    %v176 = vsub.f32 %v174, %v175
    %v177 = vand.u32 %v176, 4294901760
    %178 = vmatpush.msra.mxu0 %v177
    %v179 = vand.u32 %v102, 4294901760
    %v180 = vsub.f32 %v102, %v179
    %v181 = vand.u32 %v180, 4294901760
    %v182 = vsub.f32 %v180, %v181
    %v183 = vand.u32 %v182, 4294901760
    %184 = vmatpush.msra.mxu0 %v183
    %v185 = vand.u32 %v101, 4294901760
    %v186 = vsub.f32 %v101, %v185
    %v187 = vand.u32 %v186, 4294901760
    %v188 = vsub.f32 %v186, %v187
    %v189 = vand.u32 %v188, 4294901760
    %190 = vmatpush.msra.mxu0 %v189
    %v191 = vand.u32 %v100, 4294901760
    %v192 = vsub.f32 %v100, %v191
    %v193 = vand.u32 %v192, 4294901760
    %v194 = vsub.f32 %v192, %v193
    %v195 = vand.u32 %v194, 4294901760
    %196 = vmatpush.msra.mxu0 %v195
    %v197 = vand.u32 %v99, 4294901760
    %v198 = vsub.f32 %v99, %v197
    %v199 = vand.u32 %v198, 4294901760
    %v200 = vsub.f32 %v198, %v199
    %v201 = vand.u32 %v200, 4294901760
    %202 = vmatpush.msra.mxu0 %v201
    %v203 = vand.u32 %v98, 4294901760
    %v204 = vsub.f32 %v98, %v203
    %v205 = vand.u32 %v204, 4294901760
    %v206 = vsub.f32 %v204, %v205
    %v207 = vand.u32 %v206, 4294901760
    %208 = vmatpush.msra.mxu0 %v207
    %v209 = vand.u32 %v97, 4294901760
    %v210 = vsub.f32 %v97, %v209
    %v211 = vand.u32 %v210, 4294901760
    %v212 = vsub.f32 %v210, %v211
    %v213 = vand.u32 %v212, 4294901760
    %214 = vmatpush.msra.mxu0 %v213
    %v215 = vand.u32 %v96, 4294901760
    %v216 = vsub.f32 %v96, %v215
    %v217 = vand.u32 %v216, 4294901760
    %v218 = vsub.f32 %v216, %v217
    %v219 = vand.u32 %v218, 4294901760
    %220 = vmatpush.msra.mxu0 %v219
    %v221 = vand.u32 %v95, 4294901760
    %v222 = vsub.f32 %v95, %v221
    %v223 = vand.u32 %v222, 4294901760
    %v224 = vsub.f32 %v222, %v223
    %v225 = vand.u32 %v224, 4294901760
    %226 = vmatpush.msra.mxu0 %v225
    %v227 = vand.u32 %v94, 4294901760
    %v228 = vsub.f32 %v94, %v227
    %v229 = vand.u32 %v228, 4294901760
    %v230 = vsub.f32 %v228, %v229
    %v231 = vand.u32 %v230, 4294901760
    %232 = vmatpush.msra.mxu0 %v231
    %v233 = vand.u32 %v93, 4294901760
    %v234 = vsub.f32 %v93, %v233
    %v235 = vand.u32 %v234, 4294901760
    %v236 = vsub.f32 %v234, %v235
    %v237 = vand.u32 %v236, 4294901760
    %238 = vmatpush.msra.mxu0 %v237
    %v239 = vand.u32 %v92, 4294901760
    %v240 = vsub.f32 %v92, %v239
    %v241 = vand.u32 %v240, 4294901760
    %v242 = vsub.f32 %v240, %v241
    %v243 = vand.u32 %v242, 4294901760
    %244 = vmatpush.msra.mxu0 %v243
    %v245 = vand.u32 %v85, 4294901760
    %246 = vmatmul.f32.gmra.mxu0 %v245
    %v247 = vpop.f32.mrf.mxu0
    %v248 = vadd.f32 %v147, %v247
    %249 = vdwg.mxu0
    %v250 = vand.u32 %v107, 4294901760
    %v251 = vsub.f32 %v107, %v250
    %252 = vmatpush.msra.mxu0 %v251
    %v253 = vand.u32 %v106, 4294901760
    %v254 = vsub.f32 %v106, %v253
    %255 = vmatpush.msra.mxu0 %v254
    %v256 = vand.u32 %v105, 4294901760
    %v257 = vsub.f32 %v105, %v256
    %258 = vmatpush.msra.mxu0 %v257
    %v259 = vand.u32 %v104, 4294901760
    %v260 = vsub.f32 %v104, %v259
    %261 = vmatpush.msra.mxu0 %v260
    %v262 = vand.u32 %v103, 4294901760
    %v263 = vsub.f32 %v103, %v262
    %264 = vmatpush.msra.mxu0 %v263
    %v265 = vand.u32 %v102, 4294901760
    %v266 = vsub.f32 %v102, %v265
    %267 = vmatpush.msra.mxu0 %v266
    %v268 = vand.u32 %v101, 4294901760
    %v269 = vsub.f32 %v101, %v268
    %270 = vmatpush.msra.mxu0 %v269
    %v271 = vand.u32 %v100, 4294901760
    %v272 = vsub.f32 %v100, %v271
    %273 = vmatpush.msra.mxu0 %v272
    %v274 = vand.u32 %v99, 4294901760
    %v275 = vsub.f32 %v99, %v274
    %276 = vmatpush.msra.mxu0 %v275
    %v277 = vand.u32 %v98, 4294901760
    %v278 = vsub.f32 %v98, %v277
    %279 = vmatpush.msra.mxu0 %v278
    %v280 = vand.u32 %v97, 4294901760
    %v281 = vsub.f32 %v97, %v280
    %282 = vmatpush.msra.mxu0 %v281
    %v283 = vand.u32 %v96, 4294901760
    %v284 = vsub.f32 %v96, %v283
    %285 = vmatpush.msra.mxu0 %v284
    %v286 = vand.u32 %v95, 4294901760
    %v287 = vsub.f32 %v95, %v286
    %288 = vmatpush.msra.mxu0 %v287
    %v289 = vand.u32 %v94, 4294901760
    %v290 = vsub.f32 %v94, %v289
    %291 = vmatpush.msra.mxu0 %v290
    %v292 = vand.u32 %v93, 4294901760
    %v293 = vsub.f32 %v93, %v292
    %294 = vmatpush.msra.mxu0 %v293
    %v295 = vand.u32 %v92, 4294901760
    %v296 = vsub.f32 %v92, %v295
    %297 = vmatpush.msra.mxu0 %v296
    %v298 = vand.u32 %v85, 4294901760
    %v299 = vsub.f32 %v85, %v298
    %300 = vmatmul.f32.gmra.mxu0 %v299
    %v301 = vpop.f32.mrf.mxu0
    %v302 = vadd.f32 %v248, %v301
    %303 = vdwg.mxu0
    %v304 = vand.u32 %v107, 4294901760
    %305 = vmatpush.msra.mxu0 %v304
    %v306 = vand.u32 %v106, 4294901760
    %307 = vmatpush.msra.mxu0 %v306
    %v308 = vand.u32 %v105, 4294901760
    %309 = vmatpush.msra.mxu0 %v308
    %v310 = vand.u32 %v104, 4294901760
    %311 = vmatpush.msra.mxu0 %v310
    %v312 = vand.u32 %v103, 4294901760
    %313 = vmatpush.msra.mxu0 %v312
    %v314 = vand.u32 %v102, 4294901760
    %315 = vmatpush.msra.mxu0 %v314
    %v316 = vand.u32 %v101, 4294901760
    %317 = vmatpush.msra.mxu0 %v316
    %v318 = vand.u32 %v100, 4294901760
    %319 = vmatpush.msra.mxu0 %v318
    %v320 = vand.u32 %v99, 4294901760
    %321 = vmatpush.msra.mxu0 %v320
    %v322 = vand.u32 %v98, 4294901760
    %323 = vmatpush.msra.mxu0 %v322
    %v324 = vand.u32 %v97, 4294901760
    %325 = vmatpush.msra.mxu0 %v324
    %v326 = vand.u32 %v96, 4294901760
    %327 = vmatpush.msra.mxu0 %v326
    %v328 = vand.u32 %v95, 4294901760
    %329 = vmatpush.msra.mxu0 %v328
    %v330 = vand.u32 %v94, 4294901760
    %331 = vmatpush.msra.mxu0 %v330
    %v332 = vand.u32 %v93, 4294901760
    %333 = vmatpush.msra.mxu0 %v332
    %v334 = vand.u32 %v92, 4294901760
    %335 = vmatpush.msra.mxu0 %v334
    %v336 = vand.u32 %v85, 4294901760
    %v337 = vsub.f32 %v85, %v336
    %v338 = vand.u32 %v337, 4294901760
    %339 = vmatmul.f32.gmra.mxu0 %v338
    %v340 = vpop.f32.mrf.mxu0
    %v341 = vadd.f32 %v302, %v340
    %342 = vdwg.mxu0
    %v343 = vand.u32 %v107, 4294901760
    %v344 = vsub.f32 %v107, %v343
    %v345 = vand.u32 %v344, 4294901760
    %346 = vmatpush.msra.mxu0 %v345
    %v347 = vand.u32 %v106, 4294901760
    %v348 = vsub.f32 %v106, %v347
    %v349 = vand.u32 %v348, 4294901760
    %350 = vmatpush.msra.mxu0 %v349
    %v351 = vand.u32 %v105, 4294901760
    %v352 = vsub.f32 %v105, %v351
    %v353 = vand.u32 %v352, 4294901760
    %354 = vmatpush.msra.mxu0 %v353
    %v355 = vand.u32 %v104, 4294901760
    %v356 = vsub.f32 %v104, %v355
    %v357 = vand.u32 %v356, 4294901760
    %358 = vmatpush.msra.mxu0 %v357
    %v359 = vand.u32 %v103, 4294901760
    %v360 = vsub.f32 %v103, %v359
    %v361 = vand.u32 %v360, 4294901760
    %362 = vmatpush.msra.mxu0 %v361
    %v363 = vand.u32 %v102, 4294901760
    %v364 = vsub.f32 %v102, %v363
    %v365 = vand.u32 %v364, 4294901760
    %366 = vmatpush.msra.mxu0 %v365
    %v367 = vand.u32 %v101, 4294901760
    %v368 = vsub.f32 %v101, %v367
    %v369 = vand.u32 %v368, 4294901760
    %370 = vmatpush.msra.mxu0 %v369
    %v371 = vand.u32 %v100, 4294901760
    %v372 = vsub.f32 %v100, %v371
    %v373 = vand.u32 %v372, 4294901760
    %374 = vmatpush.msra.mxu0 %v373
    %v375 = vand.u32 %v99, 4294901760
    %v376 = vsub.f32 %v99, %v375
    %v377 = vand.u32 %v376, 4294901760
    %378 = vmatpush.msra.mxu0 %v377
    %v379 = vand.u32 %v98, 4294901760
    %v380 = vsub.f32 %v98, %v379
    %v381 = vand.u32 %v380, 4294901760
    %382 = vmatpush.msra.mxu0 %v381
    %v383 = vand.u32 %v97, 4294901760
    %v384 = vsub.f32 %v97, %v383
    %v385 = vand.u32 %v384, 4294901760
    %386 = vmatpush.msra.mxu0 %v385
    %v387 = vand.u32 %v96, 4294901760
    %v388 = vsub.f32 %v96, %v387
    %v389 = vand.u32 %v388, 4294901760
    %390 = vmatpush.msra.mxu0 %v389
    %v391 = vand.u32 %v95, 4294901760
    %v392 = vsub.f32 %v95, %v391
    %v393 = vand.u32 %v392, 4294901760
    %394 = vmatpush.msra.mxu0 %v393
    %v395 = vand.u32 %v94, 4294901760
    %v396 = vsub.f32 %v94, %v395
    %v397 = vand.u32 %v396, 4294901760
    %398 = vmatpush.msra.mxu0 %v397
    %v399 = vand.u32 %v93, 4294901760
    %v400 = vsub.f32 %v93, %v399
    %v401 = vand.u32 %v400, 4294901760
    %402 = vmatpush.msra.mxu0 %v401
    %v403 = vand.u32 %v92, 4294901760
    %v404 = vsub.f32 %v92, %v403
    %v405 = vand.u32 %v404, 4294901760
    %406 = vmatpush.msra.mxu0 %v405
    %v407 = vand.u32 %v85, 4294901760
    %408 = vmatmul.f32.gmra.mxu0 %v407
    %v409 = vpop.f32.mrf.mxu0
    %v410 = vadd.f32 %v341, %v409
    %411 = vdwg.mxu0
    %v412 = vand.u32 %v107, 4294901760
    %413 = vmatpush.msra.mxu0 %v412
    %v414 = vand.u32 %v106, 4294901760
    %415 = vmatpush.msra.mxu0 %v414
    %v416 = vand.u32 %v105, 4294901760
    %417 = vmatpush.msra.mxu0 %v416
    %v418 = vand.u32 %v104, 4294901760
    %419 = vmatpush.msra.mxu0 %v418
    %v420 = vand.u32 %v103, 4294901760
    %421 = vmatpush.msra.mxu0 %v420
    %v422 = vand.u32 %v102, 4294901760
    %423 = vmatpush.msra.mxu0 %v422
    %v424 = vand.u32 %v101, 4294901760
    %425 = vmatpush.msra.mxu0 %v424
    %v426 = vand.u32 %v100, 4294901760
    %427 = vmatpush.msra.mxu0 %v426
    %v428 = vand.u32 %v99, 4294901760
    %429 = vmatpush.msra.mxu0 %v428
    %v430 = vand.u32 %v98, 4294901760
    %431 = vmatpush.msra.mxu0 %v430
    %v432 = vand.u32 %v97, 4294901760
    %433 = vmatpush.msra.mxu0 %v432
    %v434 = vand.u32 %v96, 4294901760
    %435 = vmatpush.msra.mxu0 %v434
    %v436 = vand.u32 %v95, 4294901760
    %437 = vmatpush.msra.mxu0 %v436
    %v438 = vand.u32 %v94, 4294901760
    %439 = vmatpush.msra.mxu0 %v438
    %v440 = vand.u32 %v93, 4294901760
    %441 = vmatpush.msra.mxu0 %v440
    %v442 = vand.u32 %v92, 4294901760
    %443 = vmatpush.msra.mxu0 %v442
    %v444 = vand.u32 %v85, 4294901760
    %445 = vmatmul.f32.gmra.mxu0 %v444
    %v446 = vpop.f32.mrf.mxu0
    %v447 = vadd.f32 %v410, %v446
    %448 = vdwg.mxu0
    %vm449 = vcmask 130048
    %v451 = vsel %vm449, %v84, 0
    %453 = vmatpush.msra.mxu0 0.0
    %454 = vmatpush.msra.mxu0 0.0
    %455 = vmatpush.msra.mxu0 0.0
    %456 = vmatpush.msra.mxu0 0.0
    %457 = vmatpush.msra.mxu0 0.0
    %458 = vmatpush.msra.mxu0 0.0
    %459 = vmatpush.msra.mxu0 0.0
    %460 = vmatpush.msra.mxu0 0.0
    %461 = vmatpush.msra.mxu0 0.0
    %462 = vmatpush.msra.mxu0 0.0
    %463 = vmatpush.msra.mxu0 0.0
    %464 = vmatpush.msra.mxu0 0.0
    %465 = vmatpush.msra.mxu0 0.0
    %466 = vmatpush.msra.mxu0 0.0
    %v467 = vand.u32 %v91, 4294901760
    %468 = vmatpush.msra.mxu0 %v467
    %v469 = vand.u32 %v90, 4294901760
    %470 = vmatpush.msra.mxu0 %v469
    %v471 = vand.u32 %v451, 4294901760
    %v472 = vsub.f32 %v451, %v471
    %v473 = vand.u32 %v472, 4294901760
    %v474 = vsub.f32 %v472, %v473
    %v475 = vand.u32 %v474, 4294901760
    %476 = vmatmul.f32.gmra.mxu0 %v475
    %v477 = vpop.f32.mrf.mxu0
    %v478 = vadd.f32 %v447, %v477
    %479 = vdwg.mxu0
    %480 = vmatpush.msra.mxu0 0.0
    %481 = vmatpush.msra.mxu0 0.0
    %482 = vmatpush.msra.mxu0 0.0
    %483 = vmatpush.msra.mxu0 0.0
    %484 = vmatpush.msra.mxu0 0.0
    %485 = vmatpush.msra.mxu0 0.0
    %486 = vmatpush.msra.mxu0 0.0
    %487 = vmatpush.msra.mxu0 0.0
    %488 = vmatpush.msra.mxu0 0.0
    %489 = vmatpush.msra.mxu0 0.0
    %490 = vmatpush.msra.mxu0 0.0
    %491 = vmatpush.msra.mxu0 0.0
    %492 = vmatpush.msra.mxu0 0.0
    %493 = vmatpush.msra.mxu0 0.0
    %v494 = vand.u32 %v91, 4294901760
    %v495 = vsub.f32 %v91, %v494
    %v496 = vand.u32 %v495, 4294901760
    %v497 = vsub.f32 %v495, %v496
    %v498 = vand.u32 %v497, 4294901760
    %499 = vmatpush.msra.mxu0 %v498
    %v500 = vand.u32 %v90, 4294901760
    %v501 = vsub.f32 %v90, %v500
    %v502 = vand.u32 %v501, 4294901760
    %v503 = vsub.f32 %v501, %v502
    %v504 = vand.u32 %v503, 4294901760
    %505 = vmatpush.msra.mxu0 %v504
    %v506 = vand.u32 %v451, 4294901760
    %507 = vmatmul.f32.gmra.mxu0 %v506
    %v508 = vpop.f32.mrf.mxu0
    %v509 = vadd.f32 %v478, %v508
    %510 = vdwg.mxu0
    %511 = vmatpush.msra.mxu0 0.0
    %512 = vmatpush.msra.mxu0 0.0
    %513 = vmatpush.msra.mxu0 0.0
    %514 = vmatpush.msra.mxu0 0.0
    %515 = vmatpush.msra.mxu0 0.0
    %516 = vmatpush.msra.mxu0 0.0
    %517 = vmatpush.msra.mxu0 0.0
    %518 = vmatpush.msra.mxu0 0.0
    %519 = vmatpush.msra.mxu0 0.0
    %520 = vmatpush.msra.mxu0 0.0
    %521 = vmatpush.msra.mxu0 0.0
    %522 = vmatpush.msra.mxu0 0.0
    %523 = vmatpush.msra.mxu0 0.0
    %524 = vmatpush.msra.mxu0 0.0
    %v525 = vand.u32 %v91, 4294901760
    %v526 = vsub.f32 %v91, %v525
    %527 = vmatpush.msra.mxu0 %v526
    %v528 = vand.u32 %v90, 4294901760
    %v529 = vsub.f32 %v90, %v528
    %530 = vmatpush.msra.mxu0 %v529
    %v531 = vand.u32 %v451, 4294901760
    %v532 = vsub.f32 %v451, %v531
    %533 = vmatmul.f32.gmra.mxu0 %v532
    %v534 = vpop.f32.mrf.mxu0
    %v535 = vadd.f32 %v509, %v534
    %536 = vdwg.mxu0
    %537 = vmatpush.msra.mxu0 0.0
    %538 = vmatpush.msra.mxu0 0.0
    %539 = vmatpush.msra.mxu0 0.0
    %540 = vmatpush.msra.mxu0 0.0
    %541 = vmatpush.msra.mxu0 0.0
    %542 = vmatpush.msra.mxu0 0.0
    %543 = vmatpush.msra.mxu0 0.0
    %544 = vmatpush.msra.mxu0 0.0
    %545 = vmatpush.msra.mxu0 0.0
    %546 = vmatpush.msra.mxu0 0.0
    %547 = vmatpush.msra.mxu0 0.0
    %548 = vmatpush.msra.mxu0 0.0
    %549 = vmatpush.msra.mxu0 0.0
    %550 = vmatpush.msra.mxu0 0.0
    %v551 = vand.u32 %v91, 4294901760
    %552 = vmatpush.msra.mxu0 %v551
    %v553 = vand.u32 %v90, 4294901760
    %554 = vmatpush.msra.mxu0 %v553
    %v555 = vand.u32 %v451, 4294901760
    %v556 = vsub.f32 %v451, %v555
    %v557 = vand.u32 %v556, 4294901760
    %558 = vmatmul.f32.gmra.mxu0 %v557
    %v559 = vpop.f32.mrf.mxu0
    %v560 = vadd.f32 %v535, %v559
    %561 = vdwg.mxu0
    %562 = vmatpush.msra.mxu0 0.0
    %563 = vmatpush.msra.mxu0 0.0
    %564 = vmatpush.msra.mxu0 0.0
    %565 = vmatpush.msra.mxu0 0.0
    %566 = vmatpush.msra.mxu0 0.0
    %567 = vmatpush.msra.mxu0 0.0
    %568 = vmatpush.msra.mxu0 0.0
    %569 = vmatpush.msra.mxu0 0.0
    %570 = vmatpush.msra.mxu0 0.0
    %571 = vmatpush.msra.mxu0 0.0
    %572 = vmatpush.msra.mxu0 0.0
    %573 = vmatpush.msra.mxu0 0.0
    %574 = vmatpush.msra.mxu0 0.0
    %575 = vmatpush.msra.mxu0 0.0
    %v576 = vand.u32 %v91, 4294901760
    %v577 = vsub.f32 %v91, %v576
    %v578 = vand.u32 %v577, 4294901760
    %579 = vmatpush.msra.mxu0 %v578
    %v580 = vand.u32 %v90, 4294901760
    %v581 = vsub.f32 %v90, %v580
    %v582 = vand.u32 %v581, 4294901760
    %583 = vmatpush.msra.mxu0 %v582
    %v584 = vand.u32 %v451, 4294901760
    %585 = vmatmul.f32.gmra.mxu0 %v584
    %v586 = vpop.f32.mrf.mxu0
    %v587 = vadd.f32 %v560, %v586
    %588 = vdwg.mxu0
    %589 = vmatpush.msra.mxu0 0.0
    %590 = vmatpush.msra.mxu0 0.0
    %591 = vmatpush.msra.mxu0 0.0
    %592 = vmatpush.msra.mxu0 0.0
    %593 = vmatpush.msra.mxu0 0.0
    %594 = vmatpush.msra.mxu0 0.0
    %595 = vmatpush.msra.mxu0 0.0
    %596 = vmatpush.msra.mxu0 0.0
    %597 = vmatpush.msra.mxu0 0.0
    %598 = vmatpush.msra.mxu0 0.0
    %599 = vmatpush.msra.mxu0 0.0
    %600 = vmatpush.msra.mxu0 0.0
    %601 = vmatpush.msra.mxu0 0.0
    %602 = vmatpush.msra.mxu0 0.0
    %v603 = vand.u32 %v91, 4294901760
    %604 = vmatpush.msra.mxu0 %v603
    %v605 = vand.u32 %v90, 4294901760
    %606 = vmatpush.msra.mxu0 %v605
    %v607 = vand.u32 %v451, 4294901760
    %608 = vmatmul.f32.gmra.mxu0 %v607
    %v609 = vpop.f32.mrf.mxu0
    %v610 = vadd.f32 %v587, %v609
    %611 = vdwg.mxu0
    %v612 = vld [vmem:[%s4] sm:$0x1]
    %v614 = vperm.slane %v612, 0
    %v616 = vadd.f32 %v610, %v614
    %v617 = vxor.u32 %v616, 2147483648
    %v618 = vmul.f32 %v617, 1.442695
    %v619 = vpow.pop %v618
    %v620 = vadd.f32 %v619, 1.0
    %v621 = vrcp.pop %v620
    %v622 = vmul.f32 %v620, %v621
    %v623 = vsub.f32 1.0, %v622
    %v624 = vmul.f32 %v621, %v623
    %v625 = vadd.f32 %v621, %v624
    %vm626 = vweird.f32 %v620
    %vm627 = vweird.f32 %v621
    %vm628 = vmor %vm626, %vm627
    %v629 = vsel %vm628, %v621, %v625
    %v630 = vand.u32 2147483647, %v620
    %vm631 = vcmp.eq.f32.partialorder %v630, 8.507059e+37
    %v632 = vand.u32 %v620, 2147483648
    %v633 = vor.u32 1.1754944e-38, %v632
    %v634 = vsel %vm631, %v633, %v629
    %v635 = vmul.f32 1.0, %v634
    %s636 = scalar_lea.vmem [#allocation7], 16
    %v637 = vld [vmem:[%s636] sm:$0xff]
    %v638 = vld [vmem:[%s636 + $0x8] sm:$0xff]
    %s639 = scalar_lea.vmem [#allocation8], 128
    %v640 = vld [vmem:[%s639] sm:$0xff]
    %v641 = vld [vmem:[%s639 + $0x8] sm:$0xff]
    %v642 = vld [vmem:[%s639 + $0x10] sm:$0xff]
    %v643 = vld [vmem:[%s639 + $0x18] sm:$0xff]
    %v644 = vld [vmem:[%s639 + $0x20] sm:$0xff]
    %v645 = vld [vmem:[%s639 + $0x28] sm:$0xff]
    %v646 = vld [vmem:[%s639 + $0x30] sm:$0xff]
    %v647 = vld [vmem:[%s639 + $0x38] sm:$0xff]
    %v648 = vld [vmem:[%s639 + $0x40] sm:$0xff]
    %v649 = vld [vmem:[%s639 + $0x48] sm:$0xff]
    %v650 = vld [vmem:[%s639 + $0x50] sm:$0xff]
    %v651 = vld [vmem:[%s639 + $0x58] sm:$0xff]
    %v652 = vld [vmem:[%s639 + $0x60] sm:$0xff]
    %v653 = vld [vmem:[%s639 + $0x68] sm:$0xff]
    %v654 = vld [vmem:[%s639 + $0x70] sm:$0xff]
    %v655 = vld [vmem:[%s639 + $0x78] sm:$0xff]
    %v656 = vand.u32 %v655, 4294901760
    %657 = vmatpush.msra.mxu0 %v656
    %v658 = vand.u32 %v654, 4294901760
    %659 = vmatpush.msra.mxu0 %v658
    %v660 = vand.u32 %v653, 4294901760
    %661 = vmatpush.msra.mxu0 %v660
    %v662 = vand.u32 %v652, 4294901760
    %663 = vmatpush.msra.mxu0 %v662
    %v664 = vand.u32 %v651, 4294901760
    %665 = vmatpush.msra.mxu0 %v664
    %v666 = vand.u32 %v650, 4294901760
    %667 = vmatpush.msra.mxu0 %v666
    %v668 = vand.u32 %v649, 4294901760
    %669 = vmatpush.msra.mxu0 %v668
    %v670 = vand.u32 %v648, 4294901760
    %671 = vmatpush.msra.mxu0 %v670
    %v672 = vand.u32 %v647, 4294901760
    %673 = vmatpush.msra.mxu0 %v672
    %v674 = vand.u32 %v646, 4294901760
    %675 = vmatpush.msra.mxu0 %v674
    %v676 = vand.u32 %v645, 4294901760
    %677 = vmatpush.msra.mxu0 %v676
    %v678 = vand.u32 %v644, 4294901760
    %679 = vmatpush.msra.mxu0 %v678
    %v680 = vand.u32 %v643, 4294901760
    %681 = vmatpush.msra.mxu0 %v680
    %v682 = vand.u32 %v642, 4294901760
    %683 = vmatpush.msra.mxu0 %v682
    %v684 = vand.u32 %v641, 4294901760
    %685 = vmatpush.msra.mxu0 %v684
    %v686 = vand.u32 %v640, 4294901760
    %687 = vmatpush.msra.mxu0 %v686
    %v688 = vand.u32 %v85, 4294901760
    %v689 = vsub.f32 %v85, %v688
    %v690 = vand.u32 %v689, 4294901760
    %v691 = vsub.f32 %v689, %v690
    %v692 = vand.u32 %v691, 4294901760
    %693 = vmatmul.f32.gmra.mxu0 %v692
    %v694 = vpop.f32.mrf.mxu0
    %v695 = vadd.f32 0.0, %v694
    %696 = vdwg.mxu0
    %v697 = vand.u32 %v655, 4294901760
    %v698 = vsub.f32 %v655, %v697
    %v699 = vand.u32 %v698, 4294901760
    %v700 = vsub.f32 %v698, %v699
    %v701 = vand.u32 %v700, 4294901760
    %702 = vmatpush.msra.mxu0 %v701
    %v703 = vand.u32 %v654, 4294901760
    %v704 = vsub.f32 %v654, %v703
    %v705 = vand.u32 %v704, 4294901760
    %v706 = vsub.f32 %v704, %v705
    %v707 = vand.u32 %v706, 4294901760
    %708 = vmatpush.msra.mxu0 %v707
    %v709 = vand.u32 %v653, 4294901760
    %v710 = vsub.f32 %v653, %v709
    %v711 = vand.u32 %v710, 4294901760
    %v712 = vsub.f32 %v710, %v711
    %v713 = vand.u32 %v712, 4294901760
    %714 = vmatpush.msra.mxu0 %v713
    %v715 = vand.u32 %v652, 4294901760
    %v716 = vsub.f32 %v652, %v715
    %v717 = vand.u32 %v716, 4294901760
    %v718 = vsub.f32 %v716, %v717
    %v719 = vand.u32 %v718, 4294901760
    %720 = vmatpush.msra.mxu0 %v719
    %v721 = vand.u32 %v651, 4294901760
    %v722 = vsub.f32 %v651, %v721
    %v723 = vand.u32 %v722, 4294901760
    %v724 = vsub.f32 %v722, %v723
    %v725 = vand.u32 %v724, 4294901760
    %726 = vmatpush.msra.mxu0 %v725
    %v727 = vand.u32 %v650, 4294901760
    %v728 = vsub.f32 %v650, %v727
    %v729 = vand.u32 %v728, 4294901760
    %v730 = vsub.f32 %v728, %v729
    %v731 = vand.u32 %v730, 4294901760
    %732 = vmatpush.msra.mxu0 %v731
    %v733 = vand.u32 %v649, 4294901760
    %v734 = vsub.f32 %v649, %v733
    %v735 = vand.u32 %v734, 4294901760
    %v736 = vsub.f32 %v734, %v735
    %v737 = vand.u32 %v736, 4294901760
    %738 = vmatpush.msra.mxu0 %v737
    %v739 = vand.u32 %v648, 4294901760
    %v740 = vsub.f32 %v648, %v739
    %v741 = vand.u32 %v740, 4294901760
    %v742 = vsub.f32 %v740, %v741
    %v743 = vand.u32 %v742, 4294901760
    %744 = vmatpush.msra.mxu0 %v743
    %v745 = vand.u32 %v647, 4294901760
    %v746 = vsub.f32 %v647, %v745
    %v747 = vand.u32 %v746, 4294901760
    %v748 = vsub.f32 %v746, %v747
    %v749 = vand.u32 %v748, 4294901760
    %750 = vmatpush.msra.mxu0 %v749
    %v751 = vand.u32 %v646, 4294901760
    %v752 = vsub.f32 %v646, %v751
    %v753 = vand.u32 %v752, 4294901760
    %v754 = vsub.f32 %v752, %v753
    %v755 = vand.u32 %v754, 4294901760
    %756 = vmatpush.msra.mxu0 %v755
    %v757 = vand.u32 %v645, 4294901760
    %v758 = vsub.f32 %v645, %v757
    %v759 = vand.u32 %v758, 4294901760
    %v760 = vsub.f32 %v758, %v759
    %v761 = vand.u32 %v760, 4294901760
    %762 = vmatpush.msra.mxu0 %v761
    %v763 = vand.u32 %v644, 4294901760
    %v764 = vsub.f32 %v644, %v763
    %v765 = vand.u32 %v764, 4294901760
    %v766 = vsub.f32 %v764, %v765
    %v767 = vand.u32 %v766, 4294901760
    %768 = vmatpush.msra.mxu0 %v767
    %v769 = vand.u32 %v643, 4294901760
    %v770 = vsub.f32 %v643, %v769
    %v771 = vand.u32 %v770, 4294901760
    %v772 = vsub.f32 %v770, %v771
    %v773 = vand.u32 %v772, 4294901760
    %774 = vmatpush.msra.mxu0 %v773
    %v775 = vand.u32 %v642, 4294901760
    %v776 = vsub.f32 %v642, %v775
    %v777 = vand.u32 %v776, 4294901760
    %v778 = vsub.f32 %v776, %v777
    %v779 = vand.u32 %v778, 4294901760
    %780 = vmatpush.msra.mxu0 %v779
    %v781 = vand.u32 %v641, 4294901760
    %v782 = vsub.f32 %v641, %v781
    %v783 = vand.u32 %v782, 4294901760
    %v784 = vsub.f32 %v782, %v783
    %v785 = vand.u32 %v784, 4294901760
    %786 = vmatpush.msra.mxu0 %v785
    %v787 = vand.u32 %v640, 4294901760
    %v788 = vsub.f32 %v640, %v787
    %v789 = vand.u32 %v788, 4294901760
    %v790 = vsub.f32 %v788, %v789
    %v791 = vand.u32 %v790, 4294901760
    %792 = vmatpush.msra.mxu0 %v791
    %v793 = vand.u32 %v85, 4294901760
    %794 = vmatmul.f32.gmra.mxu0 %v793
    %v795 = vpop.f32.mrf.mxu0
    %v796 = vadd.f32 %v695, %v795
    %797 = vdwg.mxu0
    %v798 = vand.u32 %v655, 4294901760
    %v799 = vsub.f32 %v655, %v798
    %800 = vmatpush.msra.mxu0 %v799
    %v801 = vand.u32 %v654, 4294901760
    %v802 = vsub.f32 %v654, %v801
    %803 = vmatpush.msra.mxu0 %v802
    %v804 = vand.u32 %v653, 4294901760
    %v805 = vsub.f32 %v653, %v804
    %806 = vmatpush.msra.mxu0 %v805
    %v807 = vand.u32 %v652, 4294901760
    %v808 = vsub.f32 %v652, %v807
    %809 = vmatpush.msra.mxu0 %v808
    %v810 = vand.u32 %v651, 4294901760
    %v811 = vsub.f32 %v651, %v810
    %812 = vmatpush.msra.mxu0 %v811
    %v813 = vand.u32 %v650, 4294901760
    %v814 = vsub.f32 %v650, %v813
    %815 = vmatpush.msra.mxu0 %v814
    %v816 = vand.u32 %v649, 4294901760
    %v817 = vsub.f32 %v649, %v816
    %818 = vmatpush.msra.mxu0 %v817
    %v819 = vand.u32 %v648, 4294901760
    %v820 = vsub.f32 %v648, %v819
    %821 = vmatpush.msra.mxu0 %v820
    %v822 = vand.u32 %v647, 4294901760
    %v823 = vsub.f32 %v647, %v822
    %824 = vmatpush.msra.mxu0 %v823
    %v825 = vand.u32 %v646, 4294901760
    %v826 = vsub.f32 %v646, %v825
    %827 = vmatpush.msra.mxu0 %v826
    %v828 = vand.u32 %v645, 4294901760
    %v829 = vsub.f32 %v645, %v828
    %830 = vmatpush.msra.mxu0 %v829
    %v831 = vand.u32 %v644, 4294901760
    %v832 = vsub.f32 %v644, %v831
    %833 = vmatpush.msra.mxu0 %v832
    %v834 = vand.u32 %v643, 4294901760
    %v835 = vsub.f32 %v643, %v834
    %836 = vmatpush.msra.mxu0 %v835
    %v837 = vand.u32 %v642, 4294901760
    %v838 = vsub.f32 %v642, %v837
    %839 = vmatpush.msra.mxu0 %v838
    %v840 = vand.u32 %v641, 4294901760
    %v841 = vsub.f32 %v641, %v840
    %842 = vmatpush.msra.mxu0 %v841
    %v843 = vand.u32 %v640, 4294901760
    %v844 = vsub.f32 %v640, %v843
    %845 = vmatpush.msra.mxu0 %v844
    %v846 = vand.u32 %v85, 4294901760
    %v847 = vsub.f32 %v85, %v846
    %848 = vmatmul.f32.gmra.mxu0 %v847
    %v849 = vpop.f32.mrf.mxu0
    %v850 = vadd.f32 %v796, %v849
    %851 = vdwg.mxu0
    %v852 = vand.u32 %v655, 4294901760
    %853 = vmatpush.msra.mxu0 %v852
    %v854 = vand.u32 %v654, 4294901760
    %855 = vmatpush.msra.mxu0 %v854
    %v856 = vand.u32 %v653, 4294901760
    %857 = vmatpush.msra.mxu0 %v856
    %v858 = vand.u32 %v652, 4294901760
    %859 = vmatpush.msra.mxu0 %v858
    %v860 = vand.u32 %v651, 4294901760
    %861 = vmatpush.msra.mxu0 %v860
    %v862 = vand.u32 %v650, 4294901760
    %863 = vmatpush.msra.mxu0 %v862
    %v864 = vand.u32 %v649, 4294901760
    %865 = vmatpush.msra.mxu0 %v864
    %v866 = vand.u32 %v648, 4294901760
    %867 = vmatpush.msra.mxu0 %v866
    %v868 = vand.u32 %v647, 4294901760
    %869 = vmatpush.msra.mxu0 %v868
    %v870 = vand.u32 %v646, 4294901760
    %871 = vmatpush.msra.mxu0 %v870
    %v872 = vand.u32 %v645, 4294901760
    %873 = vmatpush.msra.mxu0 %v872
    %v874 = vand.u32 %v644, 4294901760
    %875 = vmatpush.msra.mxu0 %v874
    %v876 = vand.u32 %v643, 4294901760
    %877 = vmatpush.msra.mxu0 %v876
    %v878 = vand.u32 %v642, 4294901760
    %879 = vmatpush.msra.mxu0 %v878
    %v880 = vand.u32 %v641, 4294901760
    %881 = vmatpush.msra.mxu0 %v880
    %v882 = vand.u32 %v640, 4294901760
    %883 = vmatpush.msra.mxu0 %v882
    %v884 = vand.u32 %v85, 4294901760
    %v885 = vsub.f32 %v85, %v884
    %v886 = vand.u32 %v885, 4294901760
    %887 = vmatmul.f32.gmra.mxu0 %v886
    %v888 = vpop.f32.mrf.mxu0
    %v889 = vadd.f32 %v850, %v888
    %890 = vdwg.mxu0
    %v891 = vand.u32 %v655, 4294901760
    %v892 = vsub.f32 %v655, %v891
    %v893 = vand.u32 %v892, 4294901760
    %894 = vmatpush.msra.mxu0 %v893
    %v895 = vand.u32 %v654, 4294901760
    %v896 = vsub.f32 %v654, %v895
    %v897 = vand.u32 %v896, 4294901760
    %898 = vmatpush.msra.mxu0 %v897
    %v899 = vand.u32 %v653, 4294901760
    %v900 = vsub.f32 %v653, %v899
    %v901 = vand.u32 %v900, 4294901760
    %902 = vmatpush.msra.mxu0 %v901
    %v903 = vand.u32 %v652, 4294901760
    %v904 = vsub.f32 %v652, %v903
    %v905 = vand.u32 %v904, 4294901760
    %906 = vmatpush.msra.mxu0 %v905
    %v907 = vand.u32 %v651, 4294901760
    %v908 = vsub.f32 %v651, %v907
    %v909 = vand.u32 %v908, 4294901760
    %910 = vmatpush.msra.mxu0 %v909
    %v911 = vand.u32 %v650, 4294901760
    %v912 = vsub.f32 %v650, %v911
    %v913 = vand.u32 %v912, 4294901760
    %914 = vmatpush.msra.mxu0 %v913
    %v915 = vand.u32 %v649, 4294901760
    %v916 = vsub.f32 %v649, %v915
    %v917 = vand.u32 %v916, 4294901760
    %918 = vmatpush.msra.mxu0 %v917
    %v919 = vand.u32 %v648, 4294901760
    %v920 = vsub.f32 %v648, %v919
    %v921 = vand.u32 %v920, 4294901760
    %922 = vmatpush.msra.mxu0 %v921
    %v923 = vand.u32 %v647, 4294901760
    %v924 = vsub.f32 %v647, %v923
    %v925 = vand.u32 %v924, 4294901760
    %926 = vmatpush.msra.mxu0 %v925
    %v927 = vand.u32 %v646, 4294901760
    %v928 = vsub.f32 %v646, %v927
    %v929 = vand.u32 %v928, 4294901760
    %930 = vmatpush.msra.mxu0 %v929
    %v931 = vand.u32 %v645, 4294901760
    %v932 = vsub.f32 %v645, %v931
    %v933 = vand.u32 %v932, 4294901760
    %934 = vmatpush.msra.mxu0 %v933
    %v935 = vand.u32 %v644, 4294901760
    %v936 = vsub.f32 %v644, %v935
    %v937 = vand.u32 %v936, 4294901760
    %938 = vmatpush.msra.mxu0 %v937
    %v939 = vand.u32 %v643, 4294901760
    %v940 = vsub.f32 %v643, %v939
    %v941 = vand.u32 %v940, 4294901760
    %942 = vmatpush.msra.mxu0 %v941
    %v943 = vand.u32 %v642, 4294901760
    %v944 = vsub.f32 %v642, %v943
    %v945 = vand.u32 %v944, 4294901760
    %946 = vmatpush.msra.mxu0 %v945
    %v947 = vand.u32 %v641, 4294901760
    %v948 = vsub.f32 %v641, %v947
    %v949 = vand.u32 %v948, 4294901760
    %950 = vmatpush.msra.mxu0 %v949
    %v951 = vand.u32 %v640, 4294901760
    %v952 = vsub.f32 %v640, %v951
    %v953 = vand.u32 %v952, 4294901760
    %954 = vmatpush.msra.mxu0 %v953
    %v955 = vand.u32 %v85, 4294901760
    %956 = vmatmul.f32.gmra.mxu0 %v955
    %v957 = vpop.f32.mrf.mxu0
    %v958 = vadd.f32 %v889, %v957
    %959 = vdwg.mxu0
    %v960 = vand.u32 %v655, 4294901760
    %961 = vmatpush.msra.mxu0 %v960
    %v962 = vand.u32 %v654, 4294901760
    %963 = vmatpush.msra.mxu0 %v962
    %v964 = vand.u32 %v653, 4294901760
    %965 = vmatpush.msra.mxu0 %v964
    %v966 = vand.u32 %v652, 4294901760
    %967 = vmatpush.msra.mxu0 %v966
    %v968 = vand.u32 %v651, 4294901760
    %969 = vmatpush.msra.mxu0 %v968
    %v970 = vand.u32 %v650, 4294901760
    %971 = vmatpush.msra.mxu0 %v970
    %v972 = vand.u32 %v649, 4294901760
    %973 = vmatpush.msra.mxu0 %v972
    %v974 = vand.u32 %v648, 4294901760
    %975 = vmatpush.msra.mxu0 %v974
    %v976 = vand.u32 %v647, 4294901760
    %977 = vmatpush.msra.mxu0 %v976
    %v978 = vand.u32 %v646, 4294901760
    %979 = vmatpush.msra.mxu0 %v978
    %v980 = vand.u32 %v645, 4294901760
    %981 = vmatpush.msra.mxu0 %v980
    %v982 = vand.u32 %v644, 4294901760
    %983 = vmatpush.msra.mxu0 %v982
    %v984 = vand.u32 %v643, 4294901760
    %985 = vmatpush.msra.mxu0 %v984
    %v986 = vand.u32 %v642, 4294901760
    %987 = vmatpush.msra.mxu0 %v986
    %v988 = vand.u32 %v641, 4294901760
    %989 = vmatpush.msra.mxu0 %v988
    %v990 = vand.u32 %v640, 4294901760
    %991 = vmatpush.msra.mxu0 %v990
    %v992 = vand.u32 %v85, 4294901760
    %993 = vmatmul.f32.gmra.mxu0 %v992
    %v994 = vpop.f32.mrf.mxu0
    %v995 = vadd.f32 %v958, %v994
    %996 = vdwg.mxu0
    %997 = vmatpush.msra.mxu0 0.0
    %998 = vmatpush.msra.mxu0 0.0
    %999 = vmatpush.msra.mxu0 0.0
    %1000 = vmatpush.msra.mxu0 0.0
    %1001 = vmatpush.msra.mxu0 0.0
    %1002 = vmatpush.msra.mxu0 0.0
    %1003 = vmatpush.msra.mxu0 0.0
    %1004 = vmatpush.msra.mxu0 0.0
    %1005 = vmatpush.msra.mxu0 0.0
    %1006 = vmatpush.msra.mxu0 0.0
    %1007 = vmatpush.msra.mxu0 0.0
    %1008 = vmatpush.msra.mxu0 0.0
    %1009 = vmatpush.msra.mxu0 0.0
    %1010 = vmatpush.msra.mxu0 0.0
    %v1011 = vand.u32 %v638, 4294901760
    %1012 = vmatpush.msra.mxu0 %v1011
    %v1013 = vand.u32 %v637, 4294901760
    %1014 = vmatpush.msra.mxu0 %v1013
    %v1015 = vand.u32 %v451, 4294901760
    %v1016 = vsub.f32 %v451, %v1015
    %v1017 = vand.u32 %v1016, 4294901760
    %v1018 = vsub.f32 %v1016, %v1017
    %v1019 = vand.u32 %v1018, 4294901760
    %1020 = vmatmul.f32.gmra.mxu0 %v1019
    %v1021 = vpop.f32.mrf.mxu0
    %v1022 = vadd.f32 %v995, %v1021
    %1023 = vdwg.mxu0
    %1024 = vmatpush.msra.mxu0 0.0
    %1025 = vmatpush.msra.mxu0 0.0
    %1026 = vmatpush.msra.mxu0 0.0
    %1027 = vmatpush.msra.mxu0 0.0
    %1028 = vmatpush.msra.mxu0 0.0
    %1029 = vmatpush.msra.mxu0 0.0
    %1030 = vmatpush.msra.mxu0 0.0
    %1031 = vmatpush.msra.mxu0 0.0
    %1032 = vmatpush.msra.mxu0 0.0
    %1033 = vmatpush.msra.mxu0 0.0
    %1034 = vmatpush.msra.mxu0 0.0
    %1035 = vmatpush.msra.mxu0 0.0
    %1036 = vmatpush.msra.mxu0 0.0
    %1037 = vmatpush.msra.mxu0 0.0
    %v1038 = vand.u32 %v638, 4294901760
    %v1039 = vsub.f32 %v638, %v1038
    %v1040 = vand.u32 %v1039, 4294901760
    %v1041 = vsub.f32 %v1039, %v1040
    %v1042 = vand.u32 %v1041, 4294901760
    %1043 = vmatpush.msra.mxu0 %v1042
    %v1044 = vand.u32 %v637, 4294901760
    %v1045 = vsub.f32 %v637, %v1044
    %v1046 = vand.u32 %v1045, 4294901760
    %v1047 = vsub.f32 %v1045, %v1046
    %v1048 = vand.u32 %v1047, 4294901760
    %1049 = vmatpush.msra.mxu0 %v1048
    %v1050 = vand.u32 %v451, 4294901760
    %1051 = vmatmul.f32.gmra.mxu0 %v1050
    %v1052 = vpop.f32.mrf.mxu0
    %v1053 = vadd.f32 %v1022, %v1052
    %1054 = vdwg.mxu0
    %1055 = vmatpush.msra.mxu0 0.0
    %1056 = vmatpush.msra.mxu0 0.0
    %1057 = vmatpush.msra.mxu0 0.0
    %1058 = vmatpush.msra.mxu0 0.0
    %1059 = vmatpush.msra.mxu0 0.0
    %1060 = vmatpush.msra.mxu0 0.0
    %1061 = vmatpush.msra.mxu0 0.0
    %1062 = vmatpush.msra.mxu0 0.0
    %1063 = vmatpush.msra.mxu0 0.0
    %1064 = vmatpush.msra.mxu0 0.0
    %1065 = vmatpush.msra.mxu0 0.0
    %1066 = vmatpush.msra.mxu0 0.0
    %1067 = vmatpush.msra.mxu0 0.0
    %1068 = vmatpush.msra.mxu0 0.0
    %v1069 = vand.u32 %v638, 4294901760
    %v1070 = vsub.f32 %v638, %v1069
    %1071 = vmatpush.msra.mxu0 %v1070
    %v1072 = vand.u32 %v637, 4294901760
    %v1073 = vsub.f32 %v637, %v1072
    %1074 = vmatpush.msra.mxu0 %v1073
    %v1075 = vand.u32 %v451, 4294901760
    %v1076 = vsub.f32 %v451, %v1075
    %1077 = vmatmul.f32.gmra.mxu0 %v1076
    %v1078 = vpop.f32.mrf.mxu0
    %v1079 = vadd.f32 %v1053, %v1078
    %1080 = vdwg.mxu0
    %1081 = vmatpush.msra.mxu0 0.0
    %1082 = vmatpush.msra.mxu0 0.0
    %1083 = vmatpush.msra.mxu0 0.0
    %1084 = vmatpush.msra.mxu0 0.0
    %1085 = vmatpush.msra.mxu0 0.0
    %1086 = vmatpush.msra.mxu0 0.0
    %1087 = vmatpush.msra.mxu0 0.0
    %1088 = vmatpush.msra.mxu0 0.0
    %1089 = vmatpush.msra.mxu0 0.0
    %1090 = vmatpush.msra.mxu0 0.0
    %1091 = vmatpush.msra.mxu0 0.0
    %1092 = vmatpush.msra.mxu0 0.0
    %1093 = vmatpush.msra.mxu0 0.0
    %1094 = vmatpush.msra.mxu0 0.0
    %v1095 = vand.u32 %v638, 4294901760
    %1096 = vmatpush.msra.mxu0 %v1095
    %v1097 = vand.u32 %v637, 4294901760
    %1098 = vmatpush.msra.mxu0 %v1097
    %v1099 = vand.u32 %v451, 4294901760
    %v1100 = vsub.f32 %v451, %v1099
    %v1101 = vand.u32 %v1100, 4294901760
    %1102 = vmatmul.f32.gmra.mxu0 %v1101
    %v1103 = vpop.f32.mrf.mxu0
    %v1104 = vadd.f32 %v1079, %v1103
    %1105 = vdwg.mxu0
    %1106 = vmatpush.msra.mxu0 0.0
    %1107 = vmatpush.msra.mxu0 0.0
    %1108 = vmatpush.msra.mxu0 0.0
    %1109 = vmatpush.msra.mxu0 0.0
    %1110 = vmatpush.msra.mxu0 0.0
    %1111 = vmatpush.msra.mxu0 0.0
    %1112 = vmatpush.msra.mxu0 0.0
    %1113 = vmatpush.msra.mxu0 0.0
    %1114 = vmatpush.msra.mxu0 0.0
    %1115 = vmatpush.msra.mxu0 0.0
    %1116 = vmatpush.msra.mxu0 0.0
    %1117 = vmatpush.msra.mxu0 0.0
    %1118 = vmatpush.msra.mxu0 0.0
    %1119 = vmatpush.msra.mxu0 0.0
    %v1120 = vand.u32 %v638, 4294901760
    %v1121 = vsub.f32 %v638, %v1120
    %v1122 = vand.u32 %v1121, 4294901760
    %1123 = vmatpush.msra.mxu0 %v1122
    %v1124 = vand.u32 %v637, 4294901760
    %v1125 = vsub.f32 %v637, %v1124
    %v1126 = vand.u32 %v1125, 4294901760
    %1127 = vmatpush.msra.mxu0 %v1126
    %v1128 = vand.u32 %v451, 4294901760
    %1129 = vmatmul.f32.gmra.mxu0 %v1128
    %v1130 = vpop.f32.mrf.mxu0
    %v1131 = vadd.f32 %v1104, %v1130
    %1132 = vdwg.mxu0
    %1133 = vmatpush.msra.mxu0 0.0
    %1134 = vmatpush.msra.mxu0 0.0
    %1135 = vmatpush.msra.mxu0 0.0
    %1136 = vmatpush.msra.mxu0 0.0
    %1137 = vmatpush.msra.mxu0 0.0
    %1138 = vmatpush.msra.mxu0 0.0
    %1139 = vmatpush.msra.mxu0 0.0
    %1140 = vmatpush.msra.mxu0 0.0
    %1141 = vmatpush.msra.mxu0 0.0
    %1142 = vmatpush.msra.mxu0 0.0
    %1143 = vmatpush.msra.mxu0 0.0
    %1144 = vmatpush.msra.mxu0 0.0
    %1145 = vmatpush.msra.mxu0 0.0
    %1146 = vmatpush.msra.mxu0 0.0
    %v1147 = vand.u32 %v638, 4294901760
    %1148 = vmatpush.msra.mxu0 %v1147
    %v1149 = vand.u32 %v637, 4294901760
    %1150 = vmatpush.msra.mxu0 %v1149
    %v1151 = vand.u32 %v451, 4294901760
    %1152 = vmatmul.f32.gmra.mxu0 %v1151
    %v1153 = vpop.f32.mrf.mxu0
    %v1154 = vadd.f32 %v1131, %v1153
    %1155 = vdwg.mxu0
    %s1156 = scalar_lea.vmem %s4, 1
    %v1157 = vld [vmem:[%s1156] sm:$0x1]
    %v1159 = vperm.slane %v1157, 0
    %v1161 = vadd.f32 %v1154, %v1159
    %v1162 = vxor.u32 %v1161, 2147483648
    %v1163 = vmul.f32 %v1162, 1.442695
    %v1164 = vpow.pop %v1163
    %v1165 = vadd.f32 %v1164, 1.0
    %v1166 = vrcp.pop %v1165
    %v1167 = vmul.f32 %v1165, %v1166
    %v1168 = vsub.f32 1.0, %v1167
    %v1169 = vmul.f32 %v1166, %v1168
    %v1170 = vadd.f32 %v1166, %v1169
    %vm1171 = vweird.f32 %v1165
    %vm1172 = vweird.f32 %v1166
    %vm1173 = vmor %vm1171, %vm1172
    %v1174 = vsel %vm1173, %v1166, %v1170
    %v1175 = vand.u32 2147483647, %v1165
    %vm1176 = vcmp.eq.f32.partialorder %v1175, 8.507059e+37
    %v1177 = vand.u32 %v1165, 2147483648
    %v1178 = vor.u32 1.1754944e-38, %v1177
    %v1179 = vsel %vm1176, %v1178, %v1174
    %v1180 = vmul.f32 1.0, %v1179
    %s1181 = scalar_lea.vmem [#allocation7], 32
    %v1182 = vld [vmem:[%s1181] sm:$0xff]
    %v1183 = vld [vmem:[%s1181 + $0x8] sm:$0xff]
    %s1184 = scalar_lea.vmem %s4, 2
    %v1185 = vld [vmem:[%s1184] sm:$0x1]
    %v1187 = vperm.slane %v1185, 0
    %1189 = vmatpush.msra.mxu0 0.0
    %1190 = vmatpush.msra.mxu0 0.0
    %1191 = vmatpush.msra.mxu0 0.0
    %1192 = vmatpush.msra.mxu0 0.0
    %1193 = vmatpush.msra.mxu0 0.0
    %1194 = vmatpush.msra.mxu0 0.0
    %1195 = vmatpush.msra.mxu0 0.0
    %1196 = vmatpush.msra.mxu0 0.0
    %1197 = vmatpush.msra.mxu0 0.0
    %1198 = vmatpush.msra.mxu0 0.0
    %1199 = vmatpush.msra.mxu0 0.0
    %1200 = vmatpush.msra.mxu0 0.0
    %1201 = vmatpush.msra.mxu0 0.0
    %1202 = vmatpush.msra.mxu0 0.0
    %v1203 = vand.u32 %v1183, 4294901760
    %1204 = vmatpush.msra.mxu0 %v1203
    %v1205 = vand.u32 %v1182, 4294901760
    %1206 = vmatpush.msra.mxu0 %v1205
    %v1207 = vand.u32 %v451, 4294901760
    %v1208 = vsub.f32 %v451, %v1207
    %v1209 = vand.u32 %v1208, 4294901760
    %v1210 = vsub.f32 %v1208, %v1209
    %v1211 = vand.u32 %v1210, 4294901760
    %1212 = vmatmul.f32.gmra.mxu0 %v1211
    %v1213 = vpop.f32.mrf.mxu0
    %v1214 = vadd.f32 %v1187, %v1213
    %1215 = vdwg.mxu0
    %1216 = vmatpush.msra.mxu0 0.0
    %1217 = vmatpush.msra.mxu0 0.0
    %1218 = vmatpush.msra.mxu0 0.0
    %1219 = vmatpush.msra.mxu0 0.0
    %1220 = vmatpush.msra.mxu0 0.0
    %1221 = vmatpush.msra.mxu0 0.0
    %1222 = vmatpush.msra.mxu0 0.0
    %1223 = vmatpush.msra.mxu0 0.0
    %1224 = vmatpush.msra.mxu0 0.0
    %1225 = vmatpush.msra.mxu0 0.0
    %1226 = vmatpush.msra.mxu0 0.0
    %1227 = vmatpush.msra.mxu0 0.0
    %1228 = vmatpush.msra.mxu0 0.0
    %1229 = vmatpush.msra.mxu0 0.0
    %v1230 = vand.u32 %v1183, 4294901760
    %v1231 = vsub.f32 %v1183, %v1230
    %v1232 = vand.u32 %v1231, 4294901760
    %v1233 = vsub.f32 %v1231, %v1232
    %v1234 = vand.u32 %v1233, 4294901760
    %1235 = vmatpush.msra.mxu0 %v1234
    %v1236 = vand.u32 %v1182, 4294901760
    %v1237 = vsub.f32 %v1182, %v1236
    %v1238 = vand.u32 %v1237, 4294901760
    %v1239 = vsub.f32 %v1237, %v1238
    %v1240 = vand.u32 %v1239, 4294901760
    %1241 = vmatpush.msra.mxu0 %v1240
    %v1242 = vand.u32 %v451, 4294901760
    %1243 = vmatmul.f32.gmra.mxu0 %v1242
    %v1244 = vpop.f32.mrf.mxu0
    %v1245 = vadd.f32 %v1214, %v1244
    %1246 = vdwg.mxu0
    %1247 = vmatpush.msra.mxu0 0.0
    %1248 = vmatpush.msra.mxu0 0.0
    %1249 = vmatpush.msra.mxu0 0.0
    %1250 = vmatpush.msra.mxu0 0.0
    %1251 = vmatpush.msra.mxu0 0.0
    %1252 = vmatpush.msra.mxu0 0.0
    %1253 = vmatpush.msra.mxu0 0.0
    %1254 = vmatpush.msra.mxu0 0.0
    %1255 = vmatpush.msra.mxu0 0.0
    %1256 = vmatpush.msra.mxu0 0.0
    %1257 = vmatpush.msra.mxu0 0.0
    %1258 = vmatpush.msra.mxu0 0.0
    %1259 = vmatpush.msra.mxu0 0.0
    %1260 = vmatpush.msra.mxu0 0.0
    %v1261 = vand.u32 %v1183, 4294901760
    %v1262 = vsub.f32 %v1183, %v1261
    %1263 = vmatpush.msra.mxu0 %v1262
    %v1264 = vand.u32 %v1182, 4294901760
    %v1265 = vsub.f32 %v1182, %v1264
    %1266 = vmatpush.msra.mxu0 %v1265
    %v1267 = vand.u32 %v451, 4294901760
    %v1268 = vsub.f32 %v451, %v1267
    %1269 = vmatmul.f32.gmra.mxu0 %v1268
    %v1270 = vpop.f32.mrf.mxu0
    %v1271 = vadd.f32 %v1245, %v1270
    %1272 = vdwg.mxu0
    %1273 = vmatpush.msra.mxu0 0.0
    %1274 = vmatpush.msra.mxu0 0.0
    %1275 = vmatpush.msra.mxu0 0.0
    %1276 = vmatpush.msra.mxu0 0.0
    %1277 = vmatpush.msra.mxu0 0.0
    %1278 = vmatpush.msra.mxu0 0.0
    %1279 = vmatpush.msra.mxu0 0.0
    %1280 = vmatpush.msra.mxu0 0.0
    %1281 = vmatpush.msra.mxu0 0.0
    %1282 = vmatpush.msra.mxu0 0.0
    %1283 = vmatpush.msra.mxu0 0.0
    %1284 = vmatpush.msra.mxu0 0.0
    %1285 = vmatpush.msra.mxu0 0.0
    %1286 = vmatpush.msra.mxu0 0.0
    %v1287 = vand.u32 %v1183, 4294901760
    %1288 = vmatpush.msra.mxu0 %v1287
    %v1289 = vand.u32 %v1182, 4294901760
    %1290 = vmatpush.msra.mxu0 %v1289
    %v1291 = vand.u32 %v451, 4294901760
    %v1292 = vsub.f32 %v451, %v1291
    %v1293 = vand.u32 %v1292, 4294901760
    %1294 = vmatmul.f32.gmra.mxu0 %v1293
    %v1295 = vpop.f32.mrf.mxu0
    %v1296 = vadd.f32 %v1271, %v1295
    %1297 = vdwg.mxu0
    %1298 = vmatpush.msra.mxu0 0.0
    %1299 = vmatpush.msra.mxu0 0.0
    %1300 = vmatpush.msra.mxu0 0.0
    %1301 = vmatpush.msra.mxu0 0.0
    %1302 = vmatpush.msra.mxu0 0.0
    %1303 = vmatpush.msra.mxu0 0.0
    %1304 = vmatpush.msra.mxu0 0.0
    %1305 = vmatpush.msra.mxu0 0.0
    %1306 = vmatpush.msra.mxu0 0.0
    %1307 = vmatpush.msra.mxu0 0.0
    %1308 = vmatpush.msra.mxu0 0.0
    %1309 = vmatpush.msra.mxu0 0.0
    %1310 = vmatpush.msra.mxu0 0.0
    %1311 = vmatpush.msra.mxu0 0.0
    %v1312 = vand.u32 %v1183, 4294901760
    %v1313 = vsub.f32 %v1183, %v1312
    %v1314 = vand.u32 %v1313, 4294901760
    %1315 = vmatpush.msra.mxu0 %v1314
    %v1316 = vand.u32 %v1182, 4294901760
    %v1317 = vsub.f32 %v1182, %v1316
    %v1318 = vand.u32 %v1317, 4294901760
    %1319 = vmatpush.msra.mxu0 %v1318
    %v1320 = vand.u32 %v451, 4294901760
    %1321 = vmatmul.f32.gmra.mxu0 %v1320
    %v1322 = vpop.f32.mrf.mxu0
    %v1323 = vadd.f32 %v1296, %v1322
    %1324 = vdwg.mxu0
    %1325 = vmatpush.msra.mxu0 0.0
    %1326 = vmatpush.msra.mxu0 0.0
    %1327 = vmatpush.msra.mxu0 0.0
    %1328 = vmatpush.msra.mxu0 0.0
    %1329 = vmatpush.msra.mxu0 0.0
    %1330 = vmatpush.msra.mxu0 0.0
    %1331 = vmatpush.msra.mxu0 0.0
    %1332 = vmatpush.msra.mxu0 0.0
    %1333 = vmatpush.msra.mxu0 0.0
    %1334 = vmatpush.msra.mxu0 0.0
    %1335 = vmatpush.msra.mxu0 0.0
    %1336 = vmatpush.msra.mxu0 0.0
    %1337 = vmatpush.msra.mxu0 0.0
    %1338 = vmatpush.msra.mxu0 0.0
    %v1339 = vand.u32 %v1183, 4294901760
    %1340 = vmatpush.msra.mxu0 %v1339
    %v1341 = vand.u32 %v1182, 4294901760
    %1342 = vmatpush.msra.mxu0 %v1341
    %v1343 = vand.u32 %v451, 4294901760
    %1344 = vmatmul.f32.gmra.mxu0 %v1343
    %v1345 = vpop.f32.mrf.mxu0
    %v1346 = vadd.f32 %v1323, %v1345
    %1347 = vdwg.mxu0
    %s1348 = scalar_lea.vmem [#allocation8], 256
    %v1349 = vld [vmem:[%s1348] sm:$0xff]
    %v1350 = vld [vmem:[%s1348 + $0x8] sm:$0xff]
    %v1351 = vld [vmem:[%s1348 + $0x10] sm:$0xff]
    %v1352 = vld [vmem:[%s1348 + $0x18] sm:$0xff]
    %v1353 = vld [vmem:[%s1348 + $0x20] sm:$0xff]
    %v1354 = vld [vmem:[%s1348 + $0x28] sm:$0xff]
    %v1355 = vld [vmem:[%s1348 + $0x30] sm:$0xff]
    %v1356 = vld [vmem:[%s1348 + $0x38] sm:$0xff]
    %v1357 = vld [vmem:[%s1348 + $0x40] sm:$0xff]
    %v1358 = vld [vmem:[%s1348 + $0x48] sm:$0xff]
    %v1359 = vld [vmem:[%s1348 + $0x50] sm:$0xff]
    %v1360 = vld [vmem:[%s1348 + $0x58] sm:$0xff]
    %v1361 = vld [vmem:[%s1348 + $0x60] sm:$0xff]
    %v1362 = vld [vmem:[%s1348 + $0x68] sm:$0xff]
    %v1363 = vld [vmem:[%s1348 + $0x70] sm:$0xff]
    %v1364 = vld [vmem:[%s1348 + $0x78] sm:$0xff]
    %v1365 = vld [vmem:[%s5] sm:$0x1]
    %v1367 = vperm.slane %v1365, 0
    %v1369 = vand.u32 %v1364, 4294901760
    %1370 = vmatpush.msra.mxu0 %v1369
    %v1371 = vand.u32 %v1363, 4294901760
    %1372 = vmatpush.msra.mxu0 %v1371
    %v1373 = vand.u32 %v1362, 4294901760
    %1374 = vmatpush.msra.mxu0 %v1373
    %v1375 = vand.u32 %v1361, 4294901760
    %1376 = vmatpush.msra.mxu0 %v1375
    %v1377 = vand.u32 %v1360, 4294901760
    %1378 = vmatpush.msra.mxu0 %v1377
    %v1379 = vand.u32 %v1359, 4294901760
    %1380 = vmatpush.msra.mxu0 %v1379
    %v1381 = vand.u32 %v1358, 4294901760
    %1382 = vmatpush.msra.mxu0 %v1381
    %v1383 = vand.u32 %v1357, 4294901760
    %1384 = vmatpush.msra.mxu0 %v1383
    %v1385 = vand.u32 %v1356, 4294901760
    %1386 = vmatpush.msra.mxu0 %v1385
    %v1387 = vand.u32 %v1355, 4294901760
    %1388 = vmatpush.msra.mxu0 %v1387
    %v1389 = vand.u32 %v1354, 4294901760
    %1390 = vmatpush.msra.mxu0 %v1389
    %v1391 = vand.u32 %v1353, 4294901760
    %1392 = vmatpush.msra.mxu0 %v1391
    %v1393 = vand.u32 %v1352, 4294901760
    %1394 = vmatpush.msra.mxu0 %v1393
    %v1395 = vand.u32 %v1351, 4294901760
    %1396 = vmatpush.msra.mxu0 %v1395
    %v1397 = vand.u32 %v1350, 4294901760
    %1398 = vmatpush.msra.mxu0 %v1397
    %v1399 = vand.u32 %v1349, 4294901760
    %1400 = vmatpush.msra.mxu0 %v1399
    %v1401 = vand.u32 %v85, 4294901760
    %v1402 = vsub.f32 %v85, %v1401
    %v1403 = vand.u32 %v1402, 4294901760
    %v1404 = vsub.f32 %v1402, %v1403
    %v1405 = vand.u32 %v1404, 4294901760
    %1406 = vmatmul.f32.gmra.mxu0 %v1405
    %v1407 = vpop.f32.mrf.mxu0
    %v1408 = vadd.f32 %v1367, %v1407
    %1409 = vdwg.mxu0
    %v1410 = vand.u32 %v1364, 4294901760
    %v1411 = vsub.f32 %v1364, %v1410
    %v1412 = vand.u32 %v1411, 4294901760
    %v1413 = vsub.f32 %v1411, %v1412
    %v1414 = vand.u32 %v1413, 4294901760
    %1415 = vmatpush.msra.mxu0 %v1414
    %v1416 = vand.u32 %v1363, 4294901760
    %v1417 = vsub.f32 %v1363, %v1416
    %v1418 = vand.u32 %v1417, 4294901760
    %v1419 = vsub.f32 %v1417, %v1418
    %v1420 = vand.u32 %v1419, 4294901760
    %1421 = vmatpush.msra.mxu0 %v1420
    %v1422 = vand.u32 %v1362, 4294901760
    %v1423 = vsub.f32 %v1362, %v1422
    %v1424 = vand.u32 %v1423, 4294901760
    %v1425 = vsub.f32 %v1423, %v1424
    %v1426 = vand.u32 %v1425, 4294901760
    %1427 = vmatpush.msra.mxu0 %v1426
    %v1428 = vand.u32 %v1361, 4294901760
    %v1429 = vsub.f32 %v1361, %v1428
    %v1430 = vand.u32 %v1429, 4294901760
    %v1431 = vsub.f32 %v1429, %v1430
    %v1432 = vand.u32 %v1431, 4294901760
    %1433 = vmatpush.msra.mxu0 %v1432
    %v1434 = vand.u32 %v1360, 4294901760
    %v1435 = vsub.f32 %v1360, %v1434
    %v1436 = vand.u32 %v1435, 4294901760
    %v1437 = vsub.f32 %v1435, %v1436
    %v1438 = vand.u32 %v1437, 4294901760
    %1439 = vmatpush.msra.mxu0 %v1438
    %v1440 = vand.u32 %v1359, 4294901760
    %v1441 = vsub.f32 %v1359, %v1440
    %v1442 = vand.u32 %v1441, 4294901760
    %v1443 = vsub.f32 %v1441, %v1442
    %v1444 = vand.u32 %v1443, 4294901760
    %1445 = vmatpush.msra.mxu0 %v1444
    %v1446 = vand.u32 %v1358, 4294901760
    %v1447 = vsub.f32 %v1358, %v1446
    %v1448 = vand.u32 %v1447, 4294901760
    %v1449 = vsub.f32 %v1447, %v1448
    %v1450 = vand.u32 %v1449, 4294901760
    %1451 = vmatpush.msra.mxu0 %v1450
    %v1452 = vand.u32 %v1357, 4294901760
    %v1453 = vsub.f32 %v1357, %v1452
    %v1454 = vand.u32 %v1453, 4294901760
    %v1455 = vsub.f32 %v1453, %v1454
    %v1456 = vand.u32 %v1455, 4294901760
    %1457 = vmatpush.msra.mxu0 %v1456
    %v1458 = vand.u32 %v1356, 4294901760
    %v1459 = vsub.f32 %v1356, %v1458
    %v1460 = vand.u32 %v1459, 4294901760
    %v1461 = vsub.f32 %v1459, %v1460
    %v1462 = vand.u32 %v1461, 4294901760
    %1463 = vmatpush.msra.mxu0 %v1462
    %v1464 = vand.u32 %v1355, 4294901760
    %v1465 = vsub.f32 %v1355, %v1464
    %v1466 = vand.u32 %v1465, 4294901760
    %v1467 = vsub.f32 %v1465, %v1466
    %v1468 = vand.u32 %v1467, 4294901760
    %1469 = vmatpush.msra.mxu0 %v1468
    %v1470 = vand.u32 %v1354, 4294901760
    %v1471 = vsub.f32 %v1354, %v1470
    %v1472 = vand.u32 %v1471, 4294901760
    %v1473 = vsub.f32 %v1471, %v1472
    %v1474 = vand.u32 %v1473, 4294901760
    %1475 = vmatpush.msra.mxu0 %v1474
    %v1476 = vand.u32 %v1353, 4294901760
    %v1477 = vsub.f32 %v1353, %v1476
    %v1478 = vand.u32 %v1477, 4294901760
    %v1479 = vsub.f32 %v1477, %v1478
    %v1480 = vand.u32 %v1479, 4294901760
    %1481 = vmatpush.msra.mxu0 %v1480
    %v1482 = vand.u32 %v1352, 4294901760
    %v1483 = vsub.f32 %v1352, %v1482
    %v1484 = vand.u32 %v1483, 4294901760
    %v1485 = vsub.f32 %v1483, %v1484
    %v1486 = vand.u32 %v1485, 4294901760
    %1487 = vmatpush.msra.mxu0 %v1486
    %v1488 = vand.u32 %v1351, 4294901760
    %v1489 = vsub.f32 %v1351, %v1488
    %v1490 = vand.u32 %v1489, 4294901760
    %v1491 = vsub.f32 %v1489, %v1490
    %v1492 = vand.u32 %v1491, 4294901760
    %1493 = vmatpush.msra.mxu0 %v1492
    %v1494 = vand.u32 %v1350, 4294901760
    %v1495 = vsub.f32 %v1350, %v1494
    %v1496 = vand.u32 %v1495, 4294901760
    %v1497 = vsub.f32 %v1495, %v1496
    %v1498 = vand.u32 %v1497, 4294901760
    %1499 = vmatpush.msra.mxu0 %v1498
    %v1500 = vand.u32 %v1349, 4294901760
    %v1501 = vsub.f32 %v1349, %v1500
    %v1502 = vand.u32 %v1501, 4294901760
    %v1503 = vsub.f32 %v1501, %v1502
    %v1504 = vand.u32 %v1503, 4294901760
    %1505 = vmatpush.msra.mxu0 %v1504
    %v1506 = vand.u32 %v85, 4294901760
    %1507 = vmatmul.f32.gmra.mxu0 %v1506
    %v1508 = vpop.f32.mrf.mxu0
    %v1509 = vadd.f32 %v1408, %v1508
    %1510 = vdwg.mxu0
    %v1511 = vand.u32 %v1364, 4294901760
    %v1512 = vsub.f32 %v1364, %v1511
    %1513 = vmatpush.msra.mxu0 %v1512
    %v1514 = vand.u32 %v1363, 4294901760
    %v1515 = vsub.f32 %v1363, %v1514
    %1516 = vmatpush.msra.mxu0 %v1515
    %v1517 = vand.u32 %v1362, 4294901760
    %v1518 = vsub.f32 %v1362, %v1517
    %1519 = vmatpush.msra.mxu0 %v1518
    %v1520 = vand.u32 %v1361, 4294901760
    %v1521 = vsub.f32 %v1361, %v1520
    %1522 = vmatpush.msra.mxu0 %v1521
    %v1523 = vand.u32 %v1360, 4294901760
    %v1524 = vsub.f32 %v1360, %v1523
    %1525 = vmatpush.msra.mxu0 %v1524
    %v1526 = vand.u32 %v1359, 4294901760
    %v1527 = vsub.f32 %v1359, %v1526
    %1528 = vmatpush.msra.mxu0 %v1527
    %v1529 = vand.u32 %v1358, 4294901760
    %v1530 = vsub.f32 %v1358, %v1529
    %1531 = vmatpush.msra.mxu0 %v1530
    %v1532 = vand.u32 %v1357, 4294901760
    %v1533 = vsub.f32 %v1357, %v1532
    %1534 = vmatpush.msra.mxu0 %v1533
    %v1535 = vand.u32 %v1356, 4294901760
    %v1536 = vsub.f32 %v1356, %v1535
    %1537 = vmatpush.msra.mxu0 %v1536
    %v1538 = vand.u32 %v1355, 4294901760
    %v1539 = vsub.f32 %v1355, %v1538
    %1540 = vmatpush.msra.mxu0 %v1539
    %v1541 = vand.u32 %v1354, 4294901760
    %v1542 = vsub.f32 %v1354, %v1541
    %1543 = vmatpush.msra.mxu0 %v1542
    %v1544 = vand.u32 %v1353, 4294901760
    %v1545 = vsub.f32 %v1353, %v1544
    %1546 = vmatpush.msra.mxu0 %v1545
    %v1547 = vand.u32 %v1352, 4294901760
    %v1548 = vsub.f32 %v1352, %v1547
    %1549 = vmatpush.msra.mxu0 %v1548
    %v1550 = vand.u32 %v1351, 4294901760
    %v1551 = vsub.f32 %v1351, %v1550
    %1552 = vmatpush.msra.mxu0 %v1551
    %v1553 = vand.u32 %v1350, 4294901760
    %v1554 = vsub.f32 %v1350, %v1553
    %1555 = vmatpush.msra.mxu0 %v1554
    %v1556 = vand.u32 %v1349, 4294901760
    %v1557 = vsub.f32 %v1349, %v1556
    %1558 = vmatpush.msra.mxu0 %v1557
    %v1559 = vand.u32 %v85, 4294901760
    %v1560 = vsub.f32 %v85, %v1559
    %1561 = vmatmul.f32.gmra.mxu0 %v1560
    %v1562 = vpop.f32.mrf.mxu0
    %v1563 = vadd.f32 %v1509, %v1562
    %1564 = vdwg.mxu0
    %v1565 = vand.u32 %v1364, 4294901760
    %1566 = vmatpush.msra.mxu0 %v1565
    %v1567 = vand.u32 %v1363, 4294901760
    %1568 = vmatpush.msra.mxu0 %v1567
    %v1569 = vand.u32 %v1362, 4294901760
    %1570 = vmatpush.msra.mxu0 %v1569
    %v1571 = vand.u32 %v1361, 4294901760
    %1572 = vmatpush.msra.mxu0 %v1571
    %v1573 = vand.u32 %v1360, 4294901760
    %1574 = vmatpush.msra.mxu0 %v1573
    %v1575 = vand.u32 %v1359, 4294901760
    %1576 = vmatpush.msra.mxu0 %v1575
    %v1577 = vand.u32 %v1358, 4294901760
    %1578 = vmatpush.msra.mxu0 %v1577
    %v1579 = vand.u32 %v1357, 4294901760
    %1580 = vmatpush.msra.mxu0 %v1579
    %v1581 = vand.u32 %v1356, 4294901760
    %1582 = vmatpush.msra.mxu0 %v1581
    %v1583 = vand.u32 %v1355, 4294901760
    %1584 = vmatpush.msra.mxu0 %v1583
    %v1585 = vand.u32 %v1354, 4294901760
    %1586 = vmatpush.msra.mxu0 %v1585
    %v1587 = vand.u32 %v1353, 4294901760
    %1588 = vmatpush.msra.mxu0 %v1587
    %v1589 = vand.u32 %v1352, 4294901760
    %1590 = vmatpush.msra.mxu0 %v1589
    %v1591 = vand.u32 %v1351, 4294901760
    %1592 = vmatpush.msra.mxu0 %v1591
    %v1593 = vand.u32 %v1350, 4294901760
    %1594 = vmatpush.msra.mxu0 %v1593
    %v1595 = vand.u32 %v1349, 4294901760
    %1596 = vmatpush.msra.mxu0 %v1595
    %v1597 = vand.u32 %v85, 4294901760
    %v1598 = vsub.f32 %v85, %v1597
    %v1599 = vand.u32 %v1598, 4294901760
    %1600 = vmatmul.f32.gmra.mxu0 %v1599
    %v1601 = vpop.f32.mrf.mxu0
    %v1602 = vadd.f32 %v1563, %v1601
    %1603 = vdwg.mxu0
    %v1604 = vand.u32 %v1364, 4294901760
    %v1605 = vsub.f32 %v1364, %v1604
    %v1606 = vand.u32 %v1605, 4294901760
    %1607 = vmatpush.msra.mxu0 %v1606
    %v1608 = vand.u32 %v1363, 4294901760
    %v1609 = vsub.f32 %v1363, %v1608
    %v1610 = vand.u32 %v1609, 4294901760
    %1611 = vmatpush.msra.mxu0 %v1610
    %v1612 = vand.u32 %v1362, 4294901760
    %v1613 = vsub.f32 %v1362, %v1612
    %v1614 = vand.u32 %v1613, 4294901760
    %1615 = vmatpush.msra.mxu0 %v1614
    %v1616 = vand.u32 %v1361, 4294901760
    %v1617 = vsub.f32 %v1361, %v1616
    %v1618 = vand.u32 %v1617, 4294901760
    %1619 = vmatpush.msra.mxu0 %v1618
    %v1620 = vand.u32 %v1360, 4294901760
    %v1621 = vsub.f32 %v1360, %v1620
    %v1622 = vand.u32 %v1621, 4294901760
    %1623 = vmatpush.msra.mxu0 %v1622
    %v1624 = vand.u32 %v1359, 4294901760
    %v1625 = vsub.f32 %v1359, %v1624
    %v1626 = vand.u32 %v1625, 4294901760
    %1627 = vmatpush.msra.mxu0 %v1626
    %v1628 = vand.u32 %v1358, 4294901760
    %v1629 = vsub.f32 %v1358, %v1628
    %v1630 = vand.u32 %v1629, 4294901760
    %1631 = vmatpush.msra.mxu0 %v1630
    %v1632 = vand.u32 %v1357, 4294901760
    %v1633 = vsub.f32 %v1357, %v1632
    %v1634 = vand.u32 %v1633, 4294901760
    %1635 = vmatpush.msra.mxu0 %v1634
    %v1636 = vand.u32 %v1356, 4294901760
    %v1637 = vsub.f32 %v1356, %v1636
    %v1638 = vand.u32 %v1637, 4294901760
    %1639 = vmatpush.msra.mxu0 %v1638
    %v1640 = vand.u32 %v1355, 4294901760
    %v1641 = vsub.f32 %v1355, %v1640
    %v1642 = vand.u32 %v1641, 4294901760
    %1643 = vmatpush.msra.mxu0 %v1642
    %v1644 = vand.u32 %v1354, 4294901760
    %v1645 = vsub.f32 %v1354, %v1644
    %v1646 = vand.u32 %v1645, 4294901760
    %1647 = vmatpush.msra.mxu0 %v1646
    %v1648 = vand.u32 %v1353, 4294901760
    %v1649 = vsub.f32 %v1353, %v1648
    %v1650 = vand.u32 %v1649, 4294901760
    %1651 = vmatpush.msra.mxu0 %v1650
    %v1652 = vand.u32 %v1352, 4294901760
    %v1653 = vsub.f32 %v1352, %v1652
    %v1654 = vand.u32 %v1653, 4294901760
    %1655 = vmatpush.msra.mxu0 %v1654
    %v1656 = vand.u32 %v1351, 4294901760
    %v1657 = vsub.f32 %v1351, %v1656
    %v1658 = vand.u32 %v1657, 4294901760
    %1659 = vmatpush.msra.mxu0 %v1658
    %v1660 = vand.u32 %v1350, 4294901760
    %v1661 = vsub.f32 %v1350, %v1660
    %v1662 = vand.u32 %v1661, 4294901760
    %1663 = vmatpush.msra.mxu0 %v1662
    %v1664 = vand.u32 %v1349, 4294901760
    %v1665 = vsub.f32 %v1349, %v1664
    %v1666 = vand.u32 %v1665, 4294901760
    %1667 = vmatpush.msra.mxu0 %v1666
    %v1668 = vand.u32 %v85, 4294901760
    %1669 = vmatmul.f32.gmra.mxu0 %v1668
    %v1670 = vpop.f32.mrf.mxu0
    %v1671 = vadd.f32 %v1602, %v1670
    %1672 = vdwg.mxu0
    %v1673 = vand.u32 %v1364, 4294901760
    %1674 = vmatpush.msra.mxu0 %v1673
    %v1675 = vand.u32 %v1363, 4294901760
    %1676 = vmatpush.msra.mxu0 %v1675
    %v1677 = vand.u32 %v1362, 4294901760
    %1678 = vmatpush.msra.mxu0 %v1677
    %v1679 = vand.u32 %v1361, 4294901760
    %1680 = vmatpush.msra.mxu0 %v1679
    %v1681 = vand.u32 %v1360, 4294901760
    %1682 = vmatpush.msra.mxu0 %v1681
    %v1683 = vand.u32 %v1359, 4294901760
    %1684 = vmatpush.msra.mxu0 %v1683
    %v1685 = vand.u32 %v1358, 4294901760
    %1686 = vmatpush.msra.mxu0 %v1685
    %v1687 = vand.u32 %v1357, 4294901760
    %1688 = vmatpush.msra.mxu0 %v1687
    %v1689 = vand.u32 %v1356, 4294901760
    %1690 = vmatpush.msra.mxu0 %v1689
    %v1691 = vand.u32 %v1355, 4294901760
    %1692 = vmatpush.msra.mxu0 %v1691
    %v1693 = vand.u32 %v1354, 4294901760
    %1694 = vmatpush.msra.mxu0 %v1693
    %v1695 = vand.u32 %v1353, 4294901760
    %1696 = vmatpush.msra.mxu0 %v1695
    %v1697 = vand.u32 %v1352, 4294901760
    %1698 = vmatpush.msra.mxu0 %v1697
    %v1699 = vand.u32 %v1351, 4294901760
    %1700 = vmatpush.msra.mxu0 %v1699
    %v1701 = vand.u32 %v1350, 4294901760
    %1702 = vmatpush.msra.mxu0 %v1701
    %v1703 = vand.u32 %v1349, 4294901760
    %1704 = vmatpush.msra.mxu0 %v1703
    %v1705 = vand.u32 %v85, 4294901760
    %1706 = vmatmul.f32.gmra.mxu0 %v1705
    %v1707 = vpop.f32.mrf.mxu0
    %v1708 = vadd.f32 %v1671, %v1707
    %1709 = vdwg.mxu0
    %v1710 = vmul.f32 %v635, %v1708
    %v1711 = vadd.f32 %v1346, %v1710
    %v1712 = vtanh.pop %v1711
    %v1713 = vsub.f32 %v89, %v1712
    %v1714 = vmul.f32 %v1180, %v1713
    %v1715 = vadd.f32 %v1712, %v1714
    %1716 = vst [vmem:[#allocation10] sm:$0xff] %v1715
    // Predicated region
    $region42: #{tpu_custom_call.1} parent=1 // pred_check
      _
    $region43: #{tpu_custom_call.1} parent=1 // pred_check_branch
      %1718 = sbr.rel (0) target = $region45
    $region44: #{tpu_custom_call.1} parent=1 // pred_region
      %1720 = vsyncadd [#allocation4], 0
      %s1722 = sshll.u32 [#allocation10], 4
      %s1723 = int_to_ptr.vmem [resolvable:$true] %s1722
      %s1724 = sshll.u32 %s6, 4
      %s1725 = int_to_ptr.hbm [resolvable:$true] %s1724
      %1727 = dma.vmem_to_hbm [thread:$0]  %s1723, 128, %s1725, [#allocation4]
    $region45: #{tpu_custom_call.1} parent=1 // pred_fallthru
      _
    // Predicated region
    $region46: #{tpu_custom_call.1} parent=1 // pred_check
      _
    $region47: #{tpu_custom_call.1} parent=1 // pred_check_branch
      %1729 = sbr.rel (0) target = $region49
    $region48: #{tpu_custom_call.1} parent=1 // pred_region
      %1731 = dma.done [#allocation4], 128
    $region49: #{tpu_custom_call.1} parent=1 // pred_fallthru
      _
    %1732 = vsyncpa [#allocation3], 1
    %1733 = vsyncpa [#allocation6], 1
    %1734 = vsyncpa [#allocation9], 1
    %1735 = vsyncpa [#allocation4], 1

// kernel: tpu_custom_call.1
$region0: #{tpu_custom_call.1}
  #allocation0 [shape = 'u32[]', space=smem, size = 0x4, offset = 0x4, fixed_abs, tag = 'smem constant byte address 0x4 - core index']
  #allocation1 [shape = 'u32[72,128]{1,0:T(1,128)}', space=vmem, size = 0x9000, scoped, tag = 'internal scratch']
  %s0 = inlined_call_operand.hbm [shape: f32[8,16], index: 0, kind: input, shape index: {}]
  %s1 = inlined_call_operand.hbm [shape: f32[8,128], index: 1, kind: input, shape index: {}]
  %s2 = inlined_call_operand.hbm [shape: f32[3,16,128], index: 2, kind: input, shape index: {}]
  %s3 = inlined_call_operand.hbm [shape: f32[3,128,128], index: 3, kind: input, shape index: {}]
  %s4 = inlined_call_operand.vmem [shape: f32[3,1,128], index: 4, kind: input, shape index: {}]
  %s5 = inlined_call_operand.vmem [shape: f32[1,128], index: 5, kind: input, shape index: {}]
  %s6 = inlined_call_operand.hbm [shape: f32[8,128], index: 6, kind: output, shape index: {}]
  %s7 = sld [smem:[#allocation0]]
  $region50: #{tpu_custom_call.1} parent=0
    _
  %s9 = ssub.s32 1, %s7
  %s10 = scalar_select 0, %s9, %s7
  $region1: #{tpu_custom_call.1} parent=0
    #allocation2 [shape = 'u8[4096]{0}', space=vmem, size = 0x1000, scoped, tag = 'input window, operand 0, single buffered']
    #allocation3 [shape = 's32[1]{0}', space=sflag, size = 0x4, scoped, tag = 'scoped memory for tpu_custom_call.1']
    #allocation4 [shape = 's32[1]{0}', space=sflag, size = 0x4, scoped, tag = 'scoped memory for tpu_custom_call.1']
    #allocation5 [shape = 'u8[4096]{0}', space=vmem, size = 0x1000, scoped, tag = 'input window, operand 1, single buffered']
    #allocation6 [shape = 's32[1]{0}', space=sflag, size = 0x4, scoped, tag = 'scoped memory for tpu_custom_call.1']
    #allocation7 [shape = 'u8[24576]{0}', space=vmem, size = 0x6000, scoped, tag = 'input window, operand 2, single buffered']
    #allocation8 [shape = 'u8[196608]{0}', space=vmem, size = 0x30000, scoped, tag = 'input window, operand 3, single buffered']
    #allocation9 [shape = 's32[1]{0}', space=sflag, size = 0x4, scoped, tag = 'scoped memory for tpu_custom_call.1']
    #allocation10 [shape = 'u8[4096]{0}', space=vmem, size = 0x1000, scoped, tag = 'output window, operand 0, single buffered']
    %11 = vsyncpa [#allocation3], 0
    %12 = vsyncpa [#allocation6], 0
    %13 = vsyncpa [#allocation9], 0
    %14 = vsyncpa [#allocation4], 0
    // Predicated region
    $region2: #{tpu_custom_call.1} parent=1 // pred_check
      _
    $region3: #{tpu_custom_call.1} parent=1 // pred_check_branch
      %16 = sbr.rel (0) target = $region5
    $region4: #{tpu_custom_call.1} parent=1 // pred_region
      %18 = vsyncadd [#allocation3], 0
      %s20 = sshll.u32 %s0, 4
      %s21 = int_to_ptr.hbm [resolvable:$true] %s20
      %s22 = sshll.u32 [#allocation2], 4
      %s23 = int_to_ptr.vmem [resolvable:$true] %s22
      %25 = dma.hbm_to_vmem [thread:$0]  %s21, 128, %s23, [#allocation3]
    $region5: #{tpu_custom_call.1} parent=1 // pred_fallthru
      _
    // Predicated region
    $region6: #{tpu_custom_call.1} parent=1 // pred_check
      _
    $region7: #{tpu_custom_call.1} parent=1 // pred_check_branch
      %27 = sbr.rel (0) target = $region9
    $region8: #{tpu_custom_call.1} parent=1 // pred_region
      %29 = vsyncadd [#allocation6], 0
      %s31 = sshll.u32 %s1, 4
      %s32 = int_to_ptr.hbm [resolvable:$true] %s31
      %s33 = sshll.u32 [#allocation5], 4
      %s34 = int_to_ptr.vmem [resolvable:$true] %s33
      %36 = dma.hbm_to_vmem [thread:$0]  %s32, 128, %s34, [#allocation6]
    $region9: #{tpu_custom_call.1} parent=1 // pred_fallthru
      _
    // Predicated region
    $region10: #{tpu_custom_call.1} parent=1 // pred_check
      _
    $region11: #{tpu_custom_call.1} parent=1 // pred_check_branch
      %38 = sbr.rel (0) target = $region13
    $region12: #{tpu_custom_call.1} parent=1 // pred_region
      %40 = vsyncadd [#allocation6], 0
      %s41 = sshll.u32 %s2, 4
      %s42 = int_to_ptr.hbm [resolvable:$true] %s41
      %s43 = sshll.u32 [#allocation7], 4
      %s44 = int_to_ptr.vmem [resolvable:$true] %s43
      %49 = dma.hbm_to_vmem [thread:$0]  %s42, 768, %s44, [#allocation6], 128, 128, 8
    $region13: #{tpu_custom_call.1} parent=1 // pred_fallthru
      _
    // Predicated region
    $region14: #{tpu_custom_call.1} parent=1 // pred_check
      _
    $region15: #{tpu_custom_call.1} parent=1 // pred_check_branch
      %51 = sbr.rel (0) target = $region17
    $region16: #{tpu_custom_call.1} parent=1 // pred_region
      %53 = vsyncadd [#allocation9], 0
      %s54 = sshll.u32 %s3, 4
      %s55 = int_to_ptr.hbm [resolvable:$true] %s54
      %s56 = sshll.u32 [#allocation8], 4
      %s57 = int_to_ptr.vmem [resolvable:$true] %s56
      %62 = dma.hbm_to_vmem [thread:$0]  %s55, 6144, %s57, [#allocation9], 128, 128, 8
    $region17: #{tpu_custom_call.1} parent=1 // pred_fallthru
      _
    // Predicated region
    $region18: #{tpu_custom_call.1} parent=1 // pred_check
      _
    $region19: #{tpu_custom_call.1} parent=1 // pred_check_branch
      %64 = sbr.rel (0) target = $region21
    $region20: #{tpu_custom_call.1} parent=1 // pred_region
      _
    $region21: #{tpu_custom_call.1} parent=1 // pred_fallthru
      _
    // Predicated region
    $region22: #{tpu_custom_call.1} parent=1 // pred_check
      _
    $region23: #{tpu_custom_call.1} parent=1 // pred_check_branch
      %66 = sbr.rel (0) target = $region25
    $region24: #{tpu_custom_call.1} parent=1 // pred_region
      _
    $region25: #{tpu_custom_call.1} parent=1 // pred_fallthru
      _
    // Predicated region
    $region26: #{tpu_custom_call.1} parent=1 // pred_check
      _
    $region27: #{tpu_custom_call.1} parent=1 // pred_check_branch
      %68 = sbr.rel (0) target = $region29
    $region28: #{tpu_custom_call.1} parent=1 // pred_region
      %70 = dma.done [#allocation3], 128
    $region29: #{tpu_custom_call.1} parent=1 // pred_fallthru
      _
    // Predicated region
    $region30: #{tpu_custom_call.1} parent=1 // pred_check
      _
    $region31: #{tpu_custom_call.1} parent=1 // pred_check_branch
      %72 = sbr.rel (0) target = $region33
    $region32: #{tpu_custom_call.1} parent=1 // pred_region
      %74 = dma.done [#allocation6], 128
    $region33: #{tpu_custom_call.1} parent=1 // pred_fallthru
      _
    // Predicated region
    $region34: #{tpu_custom_call.1} parent=1 // pred_check
      _
    $region35: #{tpu_custom_call.1} parent=1 // pred_check_branch
      %76 = sbr.rel (0) target = $region37
    $region36: #{tpu_custom_call.1} parent=1 // pred_region
      %78 = dma.done [#allocation6], 768
    $region37: #{tpu_custom_call.1} parent=1 // pred_fallthru
      _
    // Predicated region
    $region38: #{tpu_custom_call.1} parent=1 // pred_check
      _
    $region39: #{tpu_custom_call.1} parent=1 // pred_check_branch
      %80 = sbr.rel (0) target = $region41
    $region40: #{tpu_custom_call.1} parent=1 // pred_region
      %82 = dma.done [#allocation9], 6144
    $region41: #{tpu_custom_call.1} parent=1 // pred_fallthru
      _
    %s83 = smul.u32 0, 128
    %v84 = vld [vmem:[#allocation2] sm:$0xff]
    %v85 = vld [vmem:[#allocation5] sm:$0xff]
    %s86 = sshra.s32 %s83, 7
    %s87 = sand.u32 %s83, 127
    %s88 = scalar_lea.vmem [#allocation5], %s86
    %v89 = vld [vmem:[%s88] sm:$0xff]
    %v90 = vld [vmem:[#allocation7] sm:$0xff]
    %v91 = vld [vmem:[#allocation7 + $0x8] sm:$0xff]
    %v92 = vld [vmem:[#allocation8] sm:$0xff]
    %v93 = vld [vmem:[#allocation8 + $0x8] sm:$0xff]
    %v94 = vld [vmem:[#allocation8 + $0x10] sm:$0xff]
    %v95 = vld [vmem:[#allocation8 + $0x18] sm:$0xff]
    %v96 = vld [vmem:[#allocation8 + $0x20] sm:$0xff]
    %v97 = vld [vmem:[#allocation8 + $0x28] sm:$0xff]
    %v98 = vld [vmem:[#allocation8 + $0x30] sm:$0xff]
    %v99 = vld [vmem:[#allocation8 + $0x38] sm:$0xff]
    %v100 = vld [vmem:[#allocation8 + $0x40] sm:$0xff]
    %v101 = vld [vmem:[#allocation8 + $0x48] sm:$0xff]
    %v102 = vld [vmem:[#allocation8 + $0x50] sm:$0xff]
    %v103 = vld [vmem:[#allocation8 + $0x58] sm:$0xff]
    %v104 = vld [vmem:[#allocation8 + $0x60] sm:$0xff]
    %v105 = vld [vmem:[#allocation8 + $0x68] sm:$0xff]
    %v106 = vld [vmem:[#allocation8 + $0x70] sm:$0xff]
    %v107 = vld [vmem:[#allocation8 + $0x78] sm:$0xff]
    %v108 = vand.u32 %v107, 4294901760
    %109 = vmatpush.msra.mxu0 %v108
    %v110 = vand.u32 %v106, 4294901760
    %111 = vmatpush.msra.mxu0 %v110
    %v112 = vand.u32 %v105, 4294901760
    %113 = vmatpush.msra.mxu0 %v112
    %v114 = vand.u32 %v104, 4294901760
    %115 = vmatpush.msra.mxu0 %v114
    %v116 = vand.u32 %v103, 4294901760
    %117 = vmatpush.msra.mxu0 %v116
    %v118 = vand.u32 %v102, 4294901760
    %119 = vmatpush.msra.mxu0 %v118
    %v120 = vand.u32 %v101, 4294901760
    %121 = vmatpush.msra.mxu0 %v120
    %v122 = vand.u32 %v100, 4294901760
    %123 = vmatpush.msra.mxu0 %v122
    %v124 = vand.u32 %v99, 4294901760
    %125 = vmatpush.msra.mxu0 %v124
    %v126 = vand.u32 %v98, 4294901760
    %127 = vmatpush.msra.mxu0 %v126
    %v128 = vand.u32 %v97, 4294901760
    %129 = vmatpush.msra.mxu0 %v128
    %v130 = vand.u32 %v96, 4294901760
    %131 = vmatpush.msra.mxu0 %v130
    %v132 = vand.u32 %v95, 4294901760
    %133 = vmatpush.msra.mxu0 %v132
    %v134 = vand.u32 %v94, 4294901760
    %135 = vmatpush.msra.mxu0 %v134
    %v136 = vand.u32 %v93, 4294901760
    %137 = vmatpush.msra.mxu0 %v136
    %v138 = vand.u32 %v92, 4294901760
    %139 = vmatpush.msra.mxu0 %v138
    %v140 = vand.u32 %v85, 4294901760
    %v141 = vsub.f32 %v85, %v140
    %v142 = vand.u32 %v141, 4294901760
    %v143 = vsub.f32 %v141, %v142
    %v144 = vand.u32 %v143, 4294901760
    %145 = vmatmul.f32.gmra.mxu0 %v144
    %v146 = vpop.f32.mrf.mxu0
    %v147 = vadd.f32 0.0, %v146
    %148 = vdwg.mxu0
    %v149 = vand.u32 %v107, 4294901760
    %v150 = vsub.f32 %v107, %v149
    %v151 = vand.u32 %v150, 4294901760
    %v152 = vsub.f32 %v150, %v151
    %v153 = vand.u32 %v152, 4294901760
    %154 = vmatpush.msra.mxu0 %v153
    %v155 = vand.u32 %v106, 4294901760
    %v156 = vsub.f32 %v106, %v155
    %v157 = vand.u32 %v156, 4294901760
    %v158 = vsub.f32 %v156, %v157
    %v159 = vand.u32 %v158, 4294901760
    %160 = vmatpush.msra.mxu0 %v159
    %v161 = vand.u32 %v105, 4294901760
    %v162 = vsub.f32 %v105, %v161
    %v163 = vand.u32 %v162, 4294901760
    %v164 = vsub.f32 %v162, %v163
    %v165 = vand.u32 %v164, 4294901760
    %166 = vmatpush.msra.mxu0 %v165
    %v167 = vand.u32 %v104, 4294901760
    %v168 = vsub.f32 %v104, %v167
    %v169 = vand.u32 %v168, 4294901760
    %v170 = vsub.f32 %v168, %v169
    %v171 = vand.u32 %v170, 4294901760
    %172 = vmatpush.msra.mxu0 %v171
    %v173 = vand.u32 %v103, 4294901760
    %v174 = vsub.f32 %v103, %v173
    %v175 = vand.u32 %v174, 4294901760
    %v176 = vsub.f32 %v174, %v175
    %v177 = vand.u32 %v176, 4294901760
    %178 = vmatpush.msra.mxu0 %v177
    %v179 = vand.u32 %v102, 4294901760
    %v180 = vsub.f32 %v102, %v179
    %v181 = vand.u32 %v180, 4294901760
    %v182 = vsub.f32 %v180, %v181
    %v183 = vand.u32 %v182, 4294901760
    %184 = vmatpush.msra.mxu0 %v183
    %v185 = vand.u32 %v101, 4294901760
    %v186 = vsub.f32 %v101, %v185
    %v187 = vand.u32 %v186, 4294901760
    %v188 = vsub.f32 %v186, %v187
    %v189 = vand.u32 %v188, 4294901760
    %190 = vmatpush.msra.mxu0 %v189
    %v191 = vand.u32 %v100, 4294901760
    %v192 = vsub.f32 %v100, %v191
    %v193 = vand.u32 %v192, 4294901760
    %v194 = vsub.f32 %v192, %v193
    %v195 = vand.u32 %v194, 4294901760
    %196 = vmatpush.msra.mxu0 %v195
    %v197 = vand.u32 %v99, 4294901760
    %v198 = vsub.f32 %v99, %v197
    %v199 = vand.u32 %v198, 4294901760
    %v200 = vsub.f32 %v198, %v199
    %v201 = vand.u32 %v200, 4294901760
    %202 = vmatpush.msra.mxu0 %v201
    %v203 = vand.u32 %v98, 4294901760
    %v204 = vsub.f32 %v98, %v203
    %v205 = vand.u32 %v204, 4294901760
    %v206 = vsub.f32 %v204, %v205
    %v207 = vand.u32 %v206, 4294901760
    %208 = vmatpush.msra.mxu0 %v207
    %v209 = vand.u32 %v97, 4294901760
    %v210 = vsub.f32 %v97, %v209
    %v211 = vand.u32 %v210, 4294901760
    %v212 = vsub.f32 %v210, %v211
    %v213 = vand.u32 %v212, 4294901760
    %214 = vmatpush.msra.mxu0 %v213
    %v215 = vand.u32 %v96, 4294901760
    %v216 = vsub.f32 %v96, %v215
    %v217 = vand.u32 %v216, 4294901760
    %v218 = vsub.f32 %v216, %v217
    %v219 = vand.u32 %v218, 4294901760
    %220 = vmatpush.msra.mxu0 %v219
    %v221 = vand.u32 %v95, 4294901760
    %v222 = vsub.f32 %v95, %v221
    %v223 = vand.u32 %v222, 4294901760
    %v224 = vsub.f32 %v222, %v223
    %v225 = vand.u32 %v224, 4294901760
    %226 = vmatpush.msra.mxu0 %v225
    %v227 = vand.u32 %v94, 4294901760
    %v228 = vsub.f32 %v94, %v227
    %v229 = vand.u32 %v228, 4294901760
    %v230 = vsub.f32 %v228, %v229
    %v231 = vand.u32 %v230, 4294901760
    %232 = vmatpush.msra.mxu0 %v231
    %v233 = vand.u32 %v93, 4294901760
    %v234 = vsub.f32 %v93, %v233
    %v235 = vand.u32 %v234, 4294901760
    %v236 = vsub.f32 %v234, %v235
    %v237 = vand.u32 %v236, 4294901760
    %238 = vmatpush.msra.mxu0 %v237
    %v239 = vand.u32 %v92, 4294901760
    %v240 = vsub.f32 %v92, %v239
    %v241 = vand.u32 %v240, 4294901760
    %v242 = vsub.f32 %v240, %v241
    %v243 = vand.u32 %v242, 4294901760
    %244 = vmatpush.msra.mxu0 %v243
    %v245 = vand.u32 %v85, 4294901760
    %246 = vmatmul.f32.gmra.mxu0 %v245
    %v247 = vpop.f32.mrf.mxu0
    %v248 = vadd.f32 %v147, %v247
    %249 = vdwg.mxu0
    %v250 = vand.u32 %v107, 4294901760
    %v251 = vsub.f32 %v107, %v250
    %252 = vmatpush.msra.mxu0 %v251
    %v253 = vand.u32 %v106, 4294901760
    %v254 = vsub.f32 %v106, %v253
    %255 = vmatpush.msra.mxu0 %v254
    %v256 = vand.u32 %v105, 4294901760
    %v257 = vsub.f32 %v105, %v256
    %258 = vmatpush.msra.mxu0 %v257
    %v259 = vand.u32 %v104, 4294901760
    %v260 = vsub.f32 %v104, %v259
    %261 = vmatpush.msra.mxu0 %v260
    %v262 = vand.u32 %v103, 4294901760
    %v263 = vsub.f32 %v103, %v262
    %264 = vmatpush.msra.mxu0 %v263
    %v265 = vand.u32 %v102, 4294901760
    %v266 = vsub.f32 %v102, %v265
    %267 = vmatpush.msra.mxu0 %v266
    %v268 = vand.u32 %v101, 4294901760
    %v269 = vsub.f32 %v101, %v268
    %270 = vmatpush.msra.mxu0 %v269
    %v271 = vand.u32 %v100, 4294901760
    %v272 = vsub.f32 %v100, %v271
    %273 = vmatpush.msra.mxu0 %v272
    %v274 = vand.u32 %v99, 4294901760
    %v275 = vsub.f32 %v99, %v274
    %276 = vmatpush.msra.mxu0 %v275
    %v277 = vand.u32 %v98, 4294901760
    %v278 = vsub.f32 %v98, %v277
    %279 = vmatpush.msra.mxu0 %v278
    %v280 = vand.u32 %v97, 4294901760
    %v281 = vsub.f32 %v97, %v280
    %282 = vmatpush.msra.mxu0 %v281
    %v283 = vand.u32 %v96, 4294901760
    %v284 = vsub.f32 %v96, %v283
    %285 = vmatpush.msra.mxu0 %v284
    %v286 = vand.u32 %v95, 4294901760
    %v287 = vsub.f32 %v95, %v286
    %288 = vmatpush.msra.mxu0 %v287
    %v289 = vand.u32 %v94, 4294901760
    %v290 = vsub.f32 %v94, %v289
    %291 = vmatpush.msra.mxu0 %v290
    %v292 = vand.u32 %v93, 4294901760
    %v293 = vsub.f32 %v93, %v292
    %294 = vmatpush.msra.mxu0 %v293
    %v295 = vand.u32 %v92, 4294901760
    %v296 = vsub.f32 %v92, %v295
    %297 = vmatpush.msra.mxu0 %v296
    %v298 = vand.u32 %v85, 4294901760
    %v299 = vsub.f32 %v85, %v298
    %300 = vmatmul.f32.gmra.mxu0 %v299
    %v301 = vpop.f32.mrf.mxu0
    %v302 = vadd.f32 %v248, %v301
    %303 = vdwg.mxu0
    %v304 = vand.u32 %v107, 4294901760
    %305 = vmatpush.msra.mxu0 %v304
    %v306 = vand.u32 %v106, 4294901760
    %307 = vmatpush.msra.mxu0 %v306
    %v308 = vand.u32 %v105, 4294901760
    %309 = vmatpush.msra.mxu0 %v308
    %v310 = vand.u32 %v104, 4294901760
    %311 = vmatpush.msra.mxu0 %v310
    %v312 = vand.u32 %v103, 4294901760
    %313 = vmatpush.msra.mxu0 %v312
    %v314 = vand.u32 %v102, 4294901760
    %315 = vmatpush.msra.mxu0 %v314
    %v316 = vand.u32 %v101, 4294901760
    %317 = vmatpush.msra.mxu0 %v316
    %v318 = vand.u32 %v100, 4294901760
    %319 = vmatpush.msra.mxu0 %v318
    %v320 = vand.u32 %v99, 4294901760
    %321 = vmatpush.msra.mxu0 %v320
    %v322 = vand.u32 %v98, 4294901760
    %323 = vmatpush.msra.mxu0 %v322
    %v324 = vand.u32 %v97, 4294901760
    %325 = vmatpush.msra.mxu0 %v324
    %v326 = vand.u32 %v96, 4294901760
    %327 = vmatpush.msra.mxu0 %v326
    %v328 = vand.u32 %v95, 4294901760
    %329 = vmatpush.msra.mxu0 %v328
    %v330 = vand.u32 %v94, 4294901760
    %331 = vmatpush.msra.mxu0 %v330
    %v332 = vand.u32 %v93, 4294901760
    %333 = vmatpush.msra.mxu0 %v332
    %v334 = vand.u32 %v92, 4294901760
    %335 = vmatpush.msra.mxu0 %v334
    %v336 = vand.u32 %v85, 4294901760
    %v337 = vsub.f32 %v85, %v336
    %v338 = vand.u32 %v337, 4294901760
    %339 = vmatmul.f32.gmra.mxu0 %v338
    %v340 = vpop.f32.mrf.mxu0
    %v341 = vadd.f32 %v302, %v340
    %342 = vdwg.mxu0
    %v343 = vand.u32 %v107, 4294901760
    %v344 = vsub.f32 %v107, %v343
    %v345 = vand.u32 %v344, 4294901760
    %346 = vmatpush.msra.mxu0 %v345
    %v347 = vand.u32 %v106, 4294901760
    %v348 = vsub.f32 %v106, %v347
    %v349 = vand.u32 %v348, 4294901760
    %350 = vmatpush.msra.mxu0 %v349
    %v351 = vand.u32 %v105, 4294901760
    %v352 = vsub.f32 %v105, %v351
    %v353 = vand.u32 %v352, 4294901760
    %354 = vmatpush.msra.mxu0 %v353
    %v355 = vand.u32 %v104, 4294901760
    %v356 = vsub.f32 %v104, %v355
    %v357 = vand.u32 %v356, 4294901760
    %358 = vmatpush.msra.mxu0 %v357
    %v359 = vand.u32 %v103, 4294901760
    %v360 = vsub.f32 %v103, %v359
    %v361 = vand.u32 %v360, 4294901760
    %362 = vmatpush.msra.mxu0 %v361
    %v363 = vand.u32 %v102, 4294901760
    %v364 = vsub.f32 %v102, %v363
    %v365 = vand.u32 %v364, 4294901760
    %366 = vmatpush.msra.mxu0 %v365
    %v367 = vand.u32 %v101, 4294901760
    %v368 = vsub.f32 %v101, %v367
    %v369 = vand.u32 %v368, 4294901760
    %370 = vmatpush.msra.mxu0 %v369
    %v371 = vand.u32 %v100, 4294901760
    %v372 = vsub.f32 %v100, %v371
    %v373 = vand.u32 %v372, 4294901760
    %374 = vmatpush.msra.mxu0 %v373
    %v375 = vand.u32 %v99, 4294901760
    %v376 = vsub.f32 %v99, %v375
    %v377 = vand.u32 %v376, 4294901760
    %378 = vmatpush.msra.mxu0 %v377
    %v379 = vand.u32 %v98, 4294901760
    %v380 = vsub.f32 %v98, %v379
    %v381 = vand.u32 %v380, 4294901760
    %382 = vmatpush.msra.mxu0 %v381
    %v383 = vand.u32 %v97, 4294901760
    %v384 = vsub.f32 %v97, %v383
    %v385 = vand.u32 %v384, 4294901760
    %386 = vmatpush.msra.mxu0 %v385
    %v387 = vand.u32 %v96, 4294901760
    %v388 = vsub.f32 %v96, %v387
    %v389 = vand.u32 %v388, 4294901760
    %390 = vmatpush.msra.mxu0 %v389
    %v391 = vand.u32 %v95, 4294901760
    %v392 = vsub.f32 %v95, %v391
    %v393 = vand.u32 %v392, 4294901760
    %394 = vmatpush.msra.mxu0 %v393
    %v395 = vand.u32 %v94, 4294901760
    %v396 = vsub.f32 %v94, %v395
    %v397 = vand.u32 %v396, 4294901760
    %398 = vmatpush.msra.mxu0 %v397
    %v399 = vand.u32 %v93, 4294901760
    %v400 = vsub.f32 %v93, %v399
    %v401 = vand.u32 %v400, 4294901760
    %402 = vmatpush.msra.mxu0 %v401
    %v403 = vand.u32 %v92, 4294901760
    %v404 = vsub.f32 %v92, %v403
    %v405 = vand.u32 %v404, 4294901760
    %406 = vmatpush.msra.mxu0 %v405
    %v407 = vand.u32 %v85, 4294901760
    %408 = vmatmul.f32.gmra.mxu0 %v407
    %v409 = vpop.f32.mrf.mxu0
    %v410 = vadd.f32 %v341, %v409
    %411 = vdwg.mxu0
    %v412 = vand.u32 %v107, 4294901760
    %413 = vmatpush.msra.mxu0 %v412
    %v414 = vand.u32 %v106, 4294901760
    %415 = vmatpush.msra.mxu0 %v414
    %v416 = vand.u32 %v105, 4294901760
    %417 = vmatpush.msra.mxu0 %v416
    %v418 = vand.u32 %v104, 4294901760
    %419 = vmatpush.msra.mxu0 %v418
    %v420 = vand.u32 %v103, 4294901760
    %421 = vmatpush.msra.mxu0 %v420
    %v422 = vand.u32 %v102, 4294901760
    %423 = vmatpush.msra.mxu0 %v422
    %v424 = vand.u32 %v101, 4294901760
    %425 = vmatpush.msra.mxu0 %v424
    %v426 = vand.u32 %v100, 4294901760
    %427 = vmatpush.msra.mxu0 %v426
    %v428 = vand.u32 %v99, 4294901760
    %429 = vmatpush.msra.mxu0 %v428
    %v430 = vand.u32 %v98, 4294901760
    %431 = vmatpush.msra.mxu0 %v430
    %v432 = vand.u32 %v97, 4294901760
    %433 = vmatpush.msra.mxu0 %v432
    %v434 = vand.u32 %v96, 4294901760
    %435 = vmatpush.msra.mxu0 %v434
    %v436 = vand.u32 %v95, 4294901760
    %437 = vmatpush.msra.mxu0 %v436
    %v438 = vand.u32 %v94, 4294901760
    %439 = vmatpush.msra.mxu0 %v438
    %v440 = vand.u32 %v93, 4294901760
    %441 = vmatpush.msra.mxu0 %v440
    %v442 = vand.u32 %v92, 4294901760
    %443 = vmatpush.msra.mxu0 %v442
    %v444 = vand.u32 %v85, 4294901760
    %445 = vmatmul.f32.gmra.mxu0 %v444
    %v446 = vpop.f32.mrf.mxu0
    %v447 = vadd.f32 %v410, %v446
    %448 = vdwg.mxu0
    %vm449 = vcmask 130048
    %v451 = vsel %vm449, %v84, 0
    %453 = vmatpush.msra.mxu0 0.0
    %454 = vmatpush.msra.mxu0 0.0
    %455 = vmatpush.msra.mxu0 0.0
    %456 = vmatpush.msra.mxu0 0.0
    %457 = vmatpush.msra.mxu0 0.0
    %458 = vmatpush.msra.mxu0 0.0
    %459 = vmatpush.msra.mxu0 0.0
    %460 = vmatpush.msra.mxu0 0.0
    %461 = vmatpush.msra.mxu0 0.0
    %462 = vmatpush.msra.mxu0 0.0
    %463 = vmatpush.msra.mxu0 0.0
    %464 = vmatpush.msra.mxu0 0.0
    %465 = vmatpush.msra.mxu0 0.0
    %466 = vmatpush.msra.mxu0 0.0
    %v467 = vand.u32 %v91, 4294901760
    %468 = vmatpush.msra.mxu0 %v467
    %v469 = vand.u32 %v90, 4294901760
    %470 = vmatpush.msra.mxu0 %v469
    %v471 = vand.u32 %v451, 4294901760
    %v472 = vsub.f32 %v451, %v471
    %v473 = vand.u32 %v472, 4294901760
    %v474 = vsub.f32 %v472, %v473
    %v475 = vand.u32 %v474, 4294901760
    %476 = vmatmul.f32.gmra.mxu0 %v475
    %v477 = vpop.f32.mrf.mxu0
    %v478 = vadd.f32 %v447, %v477
    %479 = vdwg.mxu0
    %480 = vmatpush.msra.mxu0 0.0
    %481 = vmatpush.msra.mxu0 0.0
    %482 = vmatpush.msra.mxu0 0.0
    %483 = vmatpush.msra.mxu0 0.0
    %484 = vmatpush.msra.mxu0 0.0
    %485 = vmatpush.msra.mxu0 0.0
    %486 = vmatpush.msra.mxu0 0.0
    %487 = vmatpush.msra.mxu0 0.0
    %488 = vmatpush.msra.mxu0 0.0
    %489 = vmatpush.msra.mxu0 0.0
    %490 = vmatpush.msra.mxu0 0.0
    %491 = vmatpush.msra.mxu0 0.0
    %492 = vmatpush.msra.mxu0 0.0
    %493 = vmatpush.msra.mxu0 0.0
    %v494 = vand.u32 %v91, 4294901760
    %v495 = vsub.f32 %v91, %v494
    %v496 = vand.u32 %v495, 4294901760
    %v497 = vsub.f32 %v495, %v496
    %v498 = vand.u32 %v497, 4294901760
    %499 = vmatpush.msra.mxu0 %v498
    %v500 = vand.u32 %v90, 4294901760
    %v501 = vsub.f32 %v90, %v500
    %v502 = vand.u32 %v501, 4294901760
    %v503 = vsub.f32 %v501, %v502
    %v504 = vand.u32 %v503, 4294901760
    %505 = vmatpush.msra.mxu0 %v504
    %v506 = vand.u32 %v451, 4294901760
    %507 = vmatmul.f32.gmra.mxu0 %v506
    %v508 = vpop.f32.mrf.mxu0
    %v509 = vadd.f32 %v478, %v508
    %510 = vdwg.mxu0
    %511 = vmatpush.msra.mxu0 0.0
    %512 = vmatpush.msra.mxu0 0.0
    %513 = vmatpush.msra.mxu0 0.0
    %514 = vmatpush.msra.mxu0 0.0
    %515 = vmatpush.msra.mxu0 0.0
    %516 = vmatpush.msra.mxu0 0.0
    %517 = vmatpush.msra.mxu0 0.0
    %518 = vmatpush.msra.mxu0 0.0
    %519 = vmatpush.msra.mxu0 0.0
    %520 = vmatpush.msra.mxu0 0.0
    %521 = vmatpush.msra.mxu0 0.0
    %522 = vmatpush.msra.mxu0 0.0
    %523 = vmatpush.msra.mxu0 0.0
    %524 = vmatpush.msra.mxu0 0.0
    %v525 = vand.u32 %v91, 4294901760
    %v526 = vsub.f32 %v91, %v525
    %527 = vmatpush.msra.mxu0 %v526
    %v528 = vand.u32 %v90, 4294901760
    %v529 = vsub.f32 %v90, %v528
    %530 = vmatpush.msra.mxu0 %v529
    %v531 = vand.u32 %v451, 4294901760
    %v532 = vsub.f32 %v451, %v531
    %533 = vmatmul.f32.gmra.mxu0 %v532
    %v534 = vpop.f32.mrf.mxu0
    %v535 = vadd.f32 %v509, %v534
    %536 = vdwg.mxu0
    %537 = vmatpush.msra.mxu0 0.0
    %538 = vmatpush.msra.mxu0 0.0
    %539 = vmatpush.msra.mxu0 0.0
    %540 = vmatpush.msra.mxu0 0.0
    %541 = vmatpush.msra.mxu0 0.0
    %542 = vmatpush.msra.mxu0 0.0
    %543 = vmatpush.msra.mxu0 0.0
    %544 = vmatpush.msra.mxu0 0.0
    %545 = vmatpush.msra.mxu0 0.0
    %546 = vmatpush.msra.mxu0 0.0
    %547 = vmatpush.msra.mxu0 0.0
    %548 = vmatpush.msra.mxu0 0.0
    %549 = vmatpush.msra.mxu0 0.0
    %550 = vmatpush.msra.mxu0 0.0
    %v551 = vand.u32 %v91, 4294901760
    %552 = vmatpush.msra.mxu0 %v551
    %v553 = vand.u32 %v90, 4294901760
    %554 = vmatpush.msra.mxu0 %v553
    %v555 = vand.u32 %v451, 4294901760
    %v556 = vsub.f32 %v451, %v555
    %v557 = vand.u32 %v556, 4294901760
    %558 = vmatmul.f32.gmra.mxu0 %v557
    %v559 = vpop.f32.mrf.mxu0
    %v560 = vadd.f32 %v535, %v559
    %561 = vdwg.mxu0
    %562 = vmatpush.msra.mxu0 0.0
    %563 = vmatpush.msra.mxu0 0.0
    %564 = vmatpush.msra.mxu0 0.0
    %565 = vmatpush.msra.mxu0 0.0
    %566 = vmatpush.msra.mxu0 0.0
    %567 = vmatpush.msra.mxu0 0.0
    %568 = vmatpush.msra.mxu0 0.0
    %569 = vmatpush.msra.mxu0 0.0
    %570 = vmatpush.msra.mxu0 0.0
    %571 = vmatpush.msra.mxu0 0.0
    %572 = vmatpush.msra.mxu0 0.0
    %573 = vmatpush.msra.mxu0 0.0
    %574 = vmatpush.msra.mxu0 0.0
    %575 = vmatpush.msra.mxu0 0.0
    %v576 = vand.u32 %v91, 4294901760
    %v577 = vsub.f32 %v91, %v576
    %v578 = vand.u32 %v577, 4294901760
    %579 = vmatpush.msra.mxu0 %v578
    %v580 = vand.u32 %v90, 4294901760
    %v581 = vsub.f32 %v90, %v580
    %v582 = vand.u32 %v581, 4294901760
    %583 = vmatpush.msra.mxu0 %v582
    %v584 = vand.u32 %v451, 4294901760
    %585 = vmatmul.f32.gmra.mxu0 %v584
    %v586 = vpop.f32.mrf.mxu0
    %v587 = vadd.f32 %v560, %v586
    %588 = vdwg.mxu0
    %589 = vmatpush.msra.mxu0 0.0
    %590 = vmatpush.msra.mxu0 0.0
    %591 = vmatpush.msra.mxu0 0.0
    %592 = vmatpush.msra.mxu0 0.0
    %593 = vmatpush.msra.mxu0 0.0
    %594 = vmatpush.msra.mxu0 0.0
    %595 = vmatpush.msra.mxu0 0.0
    %596 = vmatpush.msra.mxu0 0.0
    %597 = vmatpush.msra.mxu0 0.0
    %598 = vmatpush.msra.mxu0 0.0
    %599 = vmatpush.msra.mxu0 0.0
    %600 = vmatpush.msra.mxu0 0.0
    %601 = vmatpush.msra.mxu0 0.0
    %602 = vmatpush.msra.mxu0 0.0
    %v603 = vand.u32 %v91, 4294901760
    %604 = vmatpush.msra.mxu0 %v603
    %v605 = vand.u32 %v90, 4294901760
    %606 = vmatpush.msra.mxu0 %v605
    %v607 = vand.u32 %v451, 4294901760
    %608 = vmatmul.f32.gmra.mxu0 %v607
    %v609 = vpop.f32.mrf.mxu0
    %v610 = vadd.f32 %v587, %v609
    %611 = vdwg.mxu0
    %v612 = vld [vmem:[%s4] sm:$0x1]
    %v614 = vperm.slane %v612, 0
    %v616 = vadd.f32 %v610, %v614
    %v617 = vxor.u32 %v616, 2147483648
    %v618 = vmul.f32 %v617, 1.442695
    %v619 = vpow.pop %v618
    %v620 = vadd.f32 %v619, 1.0
    %v621 = vrcp.pop %v620
    %v622 = vmul.f32 %v620, %v621
    %v623 = vsub.f32 1.0, %v622
    %v624 = vmul.f32 %v621, %v623
    %v625 = vadd.f32 %v621, %v624
    %vm626 = vweird.f32 %v620
    %vm627 = vweird.f32 %v621
    %vm628 = vmor %vm626, %vm627
    %v629 = vsel %vm628, %v621, %v625
    %v630 = vand.u32 2147483647, %v620
    %vm631 = vcmp.eq.f32.partialorder %v630, 8.507059e+37
    %v632 = vand.u32 %v620, 2147483648
    %v633 = vor.u32 1.1754944e-38, %v632
    %v634 = vsel %vm631, %v633, %v629
    %v635 = vmul.f32 1.0, %v634
    %s636 = scalar_lea.vmem [#allocation7], 16
    %v637 = vld [vmem:[%s636] sm:$0xff]
    %v638 = vld [vmem:[%s636 + $0x8] sm:$0xff]
    %s639 = scalar_lea.vmem [#allocation8], 128
    %v640 = vld [vmem:[%s639] sm:$0xff]
    %v641 = vld [vmem:[%s639 + $0x8] sm:$0xff]
    %v642 = vld [vmem:[%s639 + $0x10] sm:$0xff]
    %v643 = vld [vmem:[%s639 + $0x18] sm:$0xff]
    %v644 = vld [vmem:[%s639 + $0x20] sm:$0xff]
    %v645 = vld [vmem:[%s639 + $0x28] sm:$0xff]
    %v646 = vld [vmem:[%s639 + $0x30] sm:$0xff]
    %v647 = vld [vmem:[%s639 + $0x38] sm:$0xff]
    %v648 = vld [vmem:[%s639 + $0x40] sm:$0xff]
    %v649 = vld [vmem:[%s639 + $0x48] sm:$0xff]
    %v650 = vld [vmem:[%s639 + $0x50] sm:$0xff]
    %v651 = vld [vmem:[%s639 + $0x58] sm:$0xff]
    %v652 = vld [vmem:[%s639 + $0x60] sm:$0xff]
    %v653 = vld [vmem:[%s639 + $0x68] sm:$0xff]
    %v654 = vld [vmem:[%s639 + $0x70] sm:$0xff]
    %v655 = vld [vmem:[%s639 + $0x78] sm:$0xff]
    %v656 = vand.u32 %v655, 4294901760
    %657 = vmatpush.msra.mxu0 %v656
    %v658 = vand.u32 %v654, 4294901760
    %659 = vmatpush.msra.mxu0 %v658
    %v660 = vand.u32 %v653, 4294901760
    %661 = vmatpush.msra.mxu0 %v660
    %v662 = vand.u32 %v652, 4294901760
    %663 = vmatpush.msra.mxu0 %v662
    %v664 = vand.u32 %v651, 4294901760
    %665 = vmatpush.msra.mxu0 %v664
    %v666 = vand.u32 %v650, 4294901760
    %667 = vmatpush.msra.mxu0 %v666
    %v668 = vand.u32 %v649, 4294901760
    %669 = vmatpush.msra.mxu0 %v668
    %v670 = vand.u32 %v648, 4294901760
    %671 = vmatpush.msra.mxu0 %v670
    %v672 = vand.u32 %v647, 4294901760
    %673 = vmatpush.msra.mxu0 %v672
    %v674 = vand.u32 %v646, 4294901760
    %675 = vmatpush.msra.mxu0 %v674
    %v676 = vand.u32 %v645, 4294901760
    %677 = vmatpush.msra.mxu0 %v676
    %v678 = vand.u32 %v644, 4294901760
    %679 = vmatpush.msra.mxu0 %v678
    %v680 = vand.u32 %v643, 4294901760
    %681 = vmatpush.msra.mxu0 %v680
    %v682 = vand.u32 %v642, 4294901760
    %683 = vmatpush.msra.mxu0 %v682
    %v684 = vand.u32 %v641, 4294901760
    %685 = vmatpush.msra.mxu0 %v684
    %v686 = vand.u32 %v640, 4294901760
    %687 = vmatpush.msra.mxu0 %v686
    %v688 = vand.u32 %v85, 4294901760
    %v689 = vsub.f32 %v85, %v688
    %v690 = vand.u32 %v689, 4294901760
    %v691 = vsub.f32 %v689, %v690
    %v692 = vand.u32 %v691, 4294901760
    %693 = vmatmul.f32.gmra.mxu0 %v692
    %v694 = vpop.f32.mrf.mxu0
    %v695 = vadd.f32 0.0, %v694
    %696 = vdwg.mxu0
    %v697 = vand.u32 %v655, 4294901760
    %v698 = vsub.f32 %v655, %v697
    %v699 = vand.u32 %v698, 4294901760
    %v700 = vsub.f32 %v698, %v699
    %v701 = vand.u32 %v700, 4294901760
    %702 = vmatpush.msra.mxu0 %v701
    %v703 = vand.u32 %v654, 4294901760
    %v704 = vsub.f32 %v654, %v703
    %v705 = vand.u32 %v704, 4294901760
    %v706 = vsub.f32 %v704, %v705
    %v707 = vand.u32 %v706, 4294901760
    %708 = vmatpush.msra.mxu0 %v707
    %v709 = vand.u32 %v653, 4294901760
    %v710 = vsub.f32 %v653, %v709
    %v711 = vand.u32 %v710, 4294901760
    %v712 = vsub.f32 %v710, %v711
    %v713 = vand.u32 %v712, 4294901760
    %714 = vmatpush.msra.mxu0 %v713
    %v715 = vand.u32 %v652, 4294901760
    %v716 = vsub.f32 %v652, %v715
    %v717 = vand.u32 %v716, 4294901760
    %v718 = vsub.f32 %v716, %v717
    %v719 = vand.u32 %v718, 4294901760
    %720 = vmatpush.msra.mxu0 %v719
    %v721 = vand.u32 %v651, 4294901760
    %v722 = vsub.f32 %v651, %v721
    %v723 = vand.u32 %v722, 4294901760
    %v724 = vsub.f32 %v722, %v723
    %v725 = vand.u32 %v724, 4294901760
    %726 = vmatpush.msra.mxu0 %v725
    %v727 = vand.u32 %v650, 4294901760
    %v728 = vsub.f32 %v650, %v727
    %v729 = vand.u32 %v728, 4294901760
    %v730 = vsub.f32 %v728, %v729
    %v731 = vand.u32 %v730, 4294901760
    %732 = vmatpush.msra.mxu0 %v731
    %v733 = vand.u32 %v649, 4294901760
    %v734 = vsub.f32 %v649, %v733
    %v735 = vand.u32 %v734, 4294901760
    %v736 = vsub.f32 %v734, %v735
    %v737 = vand.u32 %v736, 4294901760
    %738 = vmatpush.msra.mxu0 %v737
    %v739 = vand.u32 %v648, 4294901760
    %v740 = vsub.f32 %v648, %v739
    %v741 = vand.u32 %v740, 4294901760
    %v742 = vsub.f32 %v740, %v741
    %v743 = vand.u32 %v742, 4294901760
    %744 = vmatpush.msra.mxu0 %v743
    %v745 = vand.u32 %v647, 4294901760
    %v746 = vsub.f32 %v647, %v745
    %v747 = vand.u32 %v746, 4294901760
    %v748 = vsub.f32 %v746, %v747
    %v749 = vand.u32 %v748, 4294901760
    %750 = vmatpush.msra.mxu0 %v749
    %v751 = vand.u32 %v646, 4294901760
    %v752 = vsub.f32 %v646, %v751
    %v753 = vand.u32 %v752, 4294901760
    %v754 = vsub.f32 %v752, %v753
    %v755 = vand.u32 %v754, 4294901760
    %756 = vmatpush.msra.mxu0 %v755
    %v757 = vand.u32 %v645, 4294901760
    %v758 = vsub.f32 %v645, %v757
    %v759 = vand.u32 %v758, 4294901760
    %v760 = vsub.f32 %v758, %v759
    %v761 = vand.u32 %v760, 4294901760
    %762 = vmatpush.msra.mxu0 %v761
    %v763 = vand.u32 %v644, 4294901760
    %v764 = vsub.f32 %v644, %v763
    %v765 = vand.u32 %v764, 4294901760
    %v766 = vsub.f32 %v764, %v765
    %v767 = vand.u32 %v766, 4294901760
    %768 = vmatpush.msra.mxu0 %v767
    %v769 = vand.u32 %v643, 4294901760
    %v770 = vsub.f32 %v643, %v769
    %v771 = vand.u32 %v770, 4294901760
    %v772 = vsub.f32 %v770, %v771
    %v773 = vand.u32 %v772, 4294901760
    %774 = vmatpush.msra.mxu0 %v773
    %v775 = vand.u32 %v642, 4294901760
    %v776 = vsub.f32 %v642, %v775
    %v777 = vand.u32 %v776, 4294901760
    %v778 = vsub.f32 %v776, %v777
    %v779 = vand.u32 %v778, 4294901760
    %780 = vmatpush.msra.mxu0 %v779
    %v781 = vand.u32 %v641, 4294901760
    %v782 = vsub.f32 %v641, %v781
    %v783 = vand.u32 %v782, 4294901760
    %v784 = vsub.f32 %v782, %v783
    %v785 = vand.u32 %v784, 4294901760
    %786 = vmatpush.msra.mxu0 %v785
    %v787 = vand.u32 %v640, 4294901760
    %v788 = vsub.f32 %v640, %v787
    %v789 = vand.u32 %v788, 4294901760
    %v790 = vsub.f32 %v788, %v789
    %v791 = vand.u32 %v790, 4294901760
    %792 = vmatpush.msra.mxu0 %v791
    %v793 = vand.u32 %v85, 4294901760
    %794 = vmatmul.f32.gmra.mxu0 %v793
    %v795 = vpop.f32.mrf.mxu0
    %v796 = vadd.f32 %v695, %v795
    %797 = vdwg.mxu0
    %v798 = vand.u32 %v655, 4294901760
    %v799 = vsub.f32 %v655, %v798
    %800 = vmatpush.msra.mxu0 %v799
    %v801 = vand.u32 %v654, 4294901760
    %v802 = vsub.f32 %v654, %v801
    %803 = vmatpush.msra.mxu0 %v802
    %v804 = vand.u32 %v653, 4294901760
    %v805 = vsub.f32 %v653, %v804
    %806 = vmatpush.msra.mxu0 %v805
    %v807 = vand.u32 %v652, 4294901760
    %v808 = vsub.f32 %v652, %v807
    %809 = vmatpush.msra.mxu0 %v808
    %v810 = vand.u32 %v651, 4294901760
    %v811 = vsub.f32 %v651, %v810
    %812 = vmatpush.msra.mxu0 %v811
    %v813 = vand.u32 %v650, 4294901760
    %v814 = vsub.f32 %v650, %v813
    %815 = vmatpush.msra.mxu0 %v814
    %v816 = vand.u32 %v649, 4294901760
    %v817 = vsub.f32 %v649, %v816
    %818 = vmatpush.msra.mxu0 %v817
    %v819 = vand.u32 %v648, 4294901760
    %v820 = vsub.f32 %v648, %v819
    %821 = vmatpush.msra.mxu0 %v820
    %v822 = vand.u32 %v647, 4294901760
    %v823 = vsub.f32 %v647, %v822
    %824 = vmatpush.msra.mxu0 %v823
    %v825 = vand.u32 %v646, 4294901760
    %v826 = vsub.f32 %v646, %v825
    %827 = vmatpush.msra.mxu0 %v826
    %v828 = vand.u32 %v645, 4294901760
    %v829 = vsub.f32 %v645, %v828
    %830 = vmatpush.msra.mxu0 %v829
    %v831 = vand.u32 %v644, 4294901760
    %v832 = vsub.f32 %v644, %v831
    %833 = vmatpush.msra.mxu0 %v832
    %v834 = vand.u32 %v643, 4294901760
    %v835 = vsub.f32 %v643, %v834
    %836 = vmatpush.msra.mxu0 %v835
    %v837 = vand.u32 %v642, 4294901760
    %v838 = vsub.f32 %v642, %v837
    %839 = vmatpush.msra.mxu0 %v838
    %v840 = vand.u32 %v641, 4294901760
    %v841 = vsub.f32 %v641, %v840
    %842 = vmatpush.msra.mxu0 %v841
    %v843 = vand.u32 %v640, 4294901760
    %v844 = vsub.f32 %v640, %v843
    %845 = vmatpush.msra.mxu0 %v844
    %v846 = vand.u32 %v85, 4294901760
    %v847 = vsub.f32 %v85, %v846
    %848 = vmatmul.f32.gmra.mxu0 %v847
    %v849 = vpop.f32.mrf.mxu0
    %v850 = vadd.f32 %v796, %v849
    %851 = vdwg.mxu0
    %v852 = vand.u32 %v655, 4294901760
    %853 = vmatpush.msra.mxu0 %v852
    %v854 = vand.u32 %v654, 4294901760
    %855 = vmatpush.msra.mxu0 %v854
    %v856 = vand.u32 %v653, 4294901760
    %857 = vmatpush.msra.mxu0 %v856
    %v858 = vand.u32 %v652, 4294901760
    %859 = vmatpush.msra.mxu0 %v858
    %v860 = vand.u32 %v651, 4294901760
    %861 = vmatpush.msra.mxu0 %v860
    %v862 = vand.u32 %v650, 4294901760
    %863 = vmatpush.msra.mxu0 %v862
    %v864 = vand.u32 %v649, 4294901760
    %865 = vmatpush.msra.mxu0 %v864
    %v866 = vand.u32 %v648, 4294901760
    %867 = vmatpush.msra.mxu0 %v866
    %v868 = vand.u32 %v647, 4294901760
    %869 = vmatpush.msra.mxu0 %v868
    %v870 = vand.u32 %v646, 4294901760
    %871 = vmatpush.msra.mxu0 %v870
    %v872 = vand.u32 %v645, 4294901760
    %873 = vmatpush.msra.mxu0 %v872
    %v874 = vand.u32 %v644, 4294901760
    %875 = vmatpush.msra.mxu0 %v874
    %v876 = vand.u32 %v643, 4294901760
    %877 = vmatpush.msra.mxu0 %v876
    %v878 = vand.u32 %v642, 4294901760
    %879 = vmatpush.msra.mxu0 %v878
    %v880 = vand.u32 %v641, 4294901760
    %881 = vmatpush.msra.mxu0 %v880
    %v882 = vand.u32 %v640, 4294901760
    %883 = vmatpush.msra.mxu0 %v882
    %v884 = vand.u32 %v85, 4294901760
    %v885 = vsub.f32 %v85, %v884
    %v886 = vand.u32 %v885, 4294901760
    %887 = vmatmul.f32.gmra.mxu0 %v886
    %v888 = vpop.f32.mrf.mxu0
    %v889 = vadd.f32 %v850, %v888
    %890 = vdwg.mxu0
    %v891 = vand.u32 %v655, 4294901760
    %v892 = vsub.f32 %v655, %v891
    %v893 = vand.u32 %v892, 4294901760
    %894 = vmatpush.msra.mxu0 %v893
    %v895 = vand.u32 %v654, 4294901760
    %v896 = vsub.f32 %v654, %v895
    %v897 = vand.u32 %v896, 4294901760
    %898 = vmatpush.msra.mxu0 %v897
    %v899 = vand.u32 %v653, 4294901760
    %v900 = vsub.f32 %v653, %v899
    %v901 = vand.u32 %v900, 4294901760
    %902 = vmatpush.msra.mxu0 %v901
    %v903 = vand.u32 %v652, 4294901760
    %v904 = vsub.f32 %v652, %v903
    %v905 = vand.u32 %v904, 4294901760
    %906 = vmatpush.msra.mxu0 %v905
    %v907 = vand.u32 %v651, 4294901760
    %v908 = vsub.f32 %v651, %v907
    %v909 = vand.u32 %v908, 4294901760
    %910 = vmatpush.msra.mxu0 %v909
    %v911 = vand.u32 %v650, 4294901760
    %v912 = vsub.f32 %v650, %v911
    %v913 = vand.u32 %v912, 4294901760
    %914 = vmatpush.msra.mxu0 %v913
    %v915 = vand.u32 %v649, 4294901760
    %v916 = vsub.f32 %v649, %v915
    %v917 = vand.u32 %v916, 4294901760
    %918 = vmatpush.msra.mxu0 %v917
    %v919 = vand.u32 %v648, 4294901760
    %v920 = vsub.f32 %v648, %v919
    %v921 = vand.u32 %v920, 4294901760
    %922 = vmatpush.msra.mxu0 %v921
    %v923 = vand.u32 %v647, 4294901760
    %v924 = vsub.f32 %v647, %v923
    %v925 = vand.u32 %v924, 4294901760
    %926 = vmatpush.msra.mxu0 %v925
    %v927 = vand.u32 %v646, 4294901760
    %v928 = vsub.f32 %v646, %v927
    %v929 = vand.u32 %v928, 4294901760
    %930 = vmatpush.msra.mxu0 %v929
    %v931 = vand.u32 %v645, 4294901760
    %v932 = vsub.f32 %v645, %v931
    %v933 = vand.u32 %v932, 4294901760
    %934 = vmatpush.msra.mxu0 %v933
    %v935 = vand.u32 %v644, 4294901760
    %v936 = vsub.f32 %v644, %v935
    %v937 = vand.u32 %v936, 4294901760
    %938 = vmatpush.msra.mxu0 %v937
    %v939 = vand.u32 %v643, 4294901760
    %v940 = vsub.f32 %v643, %v939
    %v941 = vand.u32 %v940, 4294901760
    %942 = vmatpush.msra.mxu0 %v941
    %v943 = vand.u32 %v642, 4294901760
    %v944 = vsub.f32 %v642, %v943
    %v945 = vand.u32 %v944, 4294901760
    %946 = vmatpush.msra.mxu0 %v945
    %v947 = vand.u32 %v641, 4294901760
    %v948 = vsub.f32 %v641, %v947
    %v949 = vand.u32 %v948, 4294901760
    %950 = vmatpush.msra.mxu0 %v949
    %v951 = vand.u32 %v640, 4294901760
    %v952 = vsub.f32 %v640, %v951
    %v953 = vand.u32 %v952, 4294901760
    %954 = vmatpush.msra.mxu0 %v953
    %v955 = vand.u32 %v85, 4294901760
    %956 = vmatmul.f32.gmra.mxu0 %v955
    %v957 = vpop.f32.mrf.mxu0
    %v958 = vadd.f32 %v889, %v957
    %959 = vdwg.mxu0
    %v960 = vand.u32 %v655, 4294901760
    %961 = vmatpush.msra.mxu0 %v960
    %v962 = vand.u32 %v654, 4294901760
    %963 = vmatpush.msra.mxu0 %v962
    %v964 = vand.u32 %v653, 4294901760
    %965 = vmatpush.msra.mxu0 %v964
    %v966 = vand.u32 %v652, 4294901760
    %967 = vmatpush.msra.mxu0 %v966
    %v968 = vand.u32 %v651, 4294901760
    %969 = vmatpush.msra.mxu0 %v968
    %v970 = vand.u32 %v650, 4294901760
    %971 = vmatpush.msra.mxu0 %v970
    %v972 = vand.u32 %v649, 4294901760
    %973 = vmatpush.msra.mxu0 %v972
    %v974 = vand.u32 %v648, 4294901760
    %975 = vmatpush.msra.mxu0 %v974
    %v976 = vand.u32 %v647, 4294901760
    %977 = vmatpush.msra.mxu0 %v976
    %v978 = vand.u32 %v646, 4294901760
    %979 = vmatpush.msra.mxu0 %v978
    %v980 = vand.u32 %v645, 4294901760
    %981 = vmatpush.msra.mxu0 %v980
    %v982 = vand.u32 %v644, 4294901760
    %983 = vmatpush.msra.mxu0 %v982
    %v984 = vand.u32 %v643, 4294901760
    %985 = vmatpush.msra.mxu0 %v984
    %v986 = vand.u32 %v642, 4294901760
    %987 = vmatpush.msra.mxu0 %v986
    %v988 = vand.u32 %v641, 4294901760
    %989 = vmatpush.msra.mxu0 %v988
    %v990 = vand.u32 %v640, 4294901760
    %991 = vmatpush.msra.mxu0 %v990
    %v992 = vand.u32 %v85, 4294901760
    %993 = vmatmul.f32.gmra.mxu0 %v992
    %v994 = vpop.f32.mrf.mxu0
    %v995 = vadd.f32 %v958, %v994
    %996 = vdwg.mxu0
    %997 = vmatpush.msra.mxu0 0.0
    %998 = vmatpush.msra.mxu0 0.0
    %999 = vmatpush.msra.mxu0 0.0
    %1000 = vmatpush.msra.mxu0 0.0
    %1001 = vmatpush.msra.mxu0 0.0
    %1002 = vmatpush.msra.mxu0 0.0
    %1003 = vmatpush.msra.mxu0 0.0
    %1004 = vmatpush.msra.mxu0 0.0
    %1005 = vmatpush.msra.mxu0 0.0
    %1006 = vmatpush.msra.mxu0 0.0
    %1007 = vmatpush.msra.mxu0 0.0
    %1008 = vmatpush.msra.mxu0 0.0
    %1009 = vmatpush.msra.mxu0 0.0
    %1010 = vmatpush.msra.mxu0 0.0
    %v1011 = vand.u32 %v638, 4294901760
    %1012 = vmatpush.msra.mxu0 %v1011
    %v1013 = vand.u32 %v637, 4294901760
    %1014 = vmatpush.msra.mxu0 %v1013
    %v1015 = vand.u32 %v451, 4294901760
    %v1016 = vsub.f32 %v451, %v1015
    %v1017 = vand.u32 %v1016, 4294901760
    %v1018 = vsub.f32 %v1016, %v1017
    %v1019 = vand.u32 %v1018, 4294901760
    %1020 = vmatmul.f32.gmra.mxu0 %v1019
    %v1021 = vpop.f32.mrf.mxu0
    %v1022 = vadd.f32 %v995, %v1021
    %1023 = vdwg.mxu0
    %1024 = vmatpush.msra.mxu0 0.0
    %1025 = vmatpush.msra.mxu0 0.0
    %1026 = vmatpush.msra.mxu0 0.0
    %1027 = vmatpush.msra.mxu0 0.0
    %1028 = vmatpush.msra.mxu0 0.0
    %1029 = vmatpush.msra.mxu0 0.0
    %1030 = vmatpush.msra.mxu0 0.0
    %1031 = vmatpush.msra.mxu0 0.0
    %1032 = vmatpush.msra.mxu0 0.0
    %1033 = vmatpush.msra.mxu0 0.0
    %1034 = vmatpush.msra.mxu0 0.0
    %1035 = vmatpush.msra.mxu0 0.0
    %1036 = vmatpush.msra.mxu0 0.0
    %1037 = vmatpush.msra.mxu0 0.0
    %v1038 = vand.u32 %v638, 4294901760
    %v1039 = vsub.f32 %v638, %v1038
    %v1040 = vand.u32 %v1039, 4294901760
    %v1041 = vsub.f32 %v1039, %v1040
    %v1042 = vand.u32 %v1041, 4294901760
    %1043 = vmatpush.msra.mxu0 %v1042
    %v1044 = vand.u32 %v637, 4294901760
    %v1045 = vsub.f32 %v637, %v1044
    %v1046 = vand.u32 %v1045, 4294901760
    %v1047 = vsub.f32 %v1045, %v1046
    %v1048 = vand.u32 %v1047, 4294901760
    %1049 = vmatpush.msra.mxu0 %v1048
    %v1050 = vand.u32 %v451, 4294901760
    %1051 = vmatmul.f32.gmra.mxu0 %v1050
    %v1052 = vpop.f32.mrf.mxu0
    %v1053 = vadd.f32 %v1022, %v1052
    %1054 = vdwg.mxu0
    %1055 = vmatpush.msra.mxu0 0.0
    %1056 = vmatpush.msra.mxu0 0.0
    %1057 = vmatpush.msra.mxu0 0.0
    %1058 = vmatpush.msra.mxu0 0.0
    %1059 = vmatpush.msra.mxu0 0.0
    %1060 = vmatpush.msra.mxu0 0.0
    %1061 = vmatpush.msra.mxu0 0.0
    %1062 = vmatpush.msra.mxu0 0.0
    %1063 = vmatpush.msra.mxu0 0.0
    %1064 = vmatpush.msra.mxu0 0.0
    %1065 = vmatpush.msra.mxu0 0.0
    %1066 = vmatpush.msra.mxu0 0.0
    %1067 = vmatpush.msra.mxu0 0.0
    %1068 = vmatpush.msra.mxu0 0.0
    %v1069 = vand.u32 %v638, 4294901760
    %v1070 = vsub.f32 %v638, %v1069
    %1071 = vmatpush.msra.mxu0 %v1070
    %v1072 = vand.u32 %v637, 4294901760
    %v1073 = vsub.f32 %v637, %v1072
    %1074 = vmatpush.msra.mxu0 %v1073
    %v1075 = vand.u32 %v451, 4294901760
    %v1076 = vsub.f32 %v451, %v1075
    %1077 = vmatmul.f32.gmra.mxu0 %v1076
    %v1078 = vpop.f32.mrf.mxu0
    %v1079 = vadd.f32 %v1053, %v1078
    %1080 = vdwg.mxu0
    %1081 = vmatpush.msra.mxu0 0.0
    %1082 = vmatpush.msra.mxu0 0.0
    %1083 = vmatpush.msra.mxu0 0.0
    %1084 = vmatpush.msra.mxu0 0.0
    %1085 = vmatpush.msra.mxu0 0.0
    %1086 = vmatpush.msra.mxu0 0.0
    %1087 = vmatpush.msra.mxu0 0.0
    %1088 = vmatpush.msra.mxu0 0.0
    %1089 = vmatpush.msra.mxu0 0.0
    %1090 = vmatpush.msra.mxu0 0.0
    %1091 = vmatpush.msra.mxu0 0.0
    %1092 = vmatpush.msra.mxu0 0.0
    %1093 = vmatpush.msra.mxu0 0.0
    %1094 = vmatpush.msra.mxu0 0.0
    %v1095 = vand.u32 %v638, 4294901760
    %1096 = vmatpush.msra.mxu0 %v1095
    %v1097 = vand.u32 %v637, 4294901760
    %1098 = vmatpush.msra.mxu0 %v1097
    %v1099 = vand.u32 %v451, 4294901760
    %v1100 = vsub.f32 %v451, %v1099
    %v1101 = vand.u32 %v1100, 4294901760
    %1102 = vmatmul.f32.gmra.mxu0 %v1101
    %v1103 = vpop.f32.mrf.mxu0
    %v1104 = vadd.f32 %v1079, %v1103
    %1105 = vdwg.mxu0
    %1106 = vmatpush.msra.mxu0 0.0
    %1107 = vmatpush.msra.mxu0 0.0
    %1108 = vmatpush.msra.mxu0 0.0
    %1109 = vmatpush.msra.mxu0 0.0
    %1110 = vmatpush.msra.mxu0 0.0
    %1111 = vmatpush.msra.mxu0 0.0
    %1112 = vmatpush.msra.mxu0 0.0
    %1113 = vmatpush.msra.mxu0 0.0
    %1114 = vmatpush.msra.mxu0 0.0
    %1115 = vmatpush.msra.mxu0 0.0
    %1116 = vmatpush.msra.mxu0 0.0
    %1117 = vmatpush.msra.mxu0 0.0
    %1118 = vmatpush.msra.mxu0 0.0
    %1119 = vmatpush.msra.mxu0 0.0
    %v1120 = vand.u32 %v638, 4294901760
    %v1121 = vsub.f32 %v638, %v1120
    %v1122 = vand.u32 %v1121, 4294901760
    %1123 = vmatpush.msra.mxu0 %v1122
    %v1124 = vand.u32 %v637, 4294901760
    %v1125 = vsub.f32 %v637, %v1124
    %v1126 = vand.u32 %v1125, 4294901760
    %1127 = vmatpush.msra.mxu0 %v1126
    %v1128 = vand.u32 %v451, 4294901760
    %1129 = vmatmul.f32.gmra.mxu0 %v1128
    %v1130 = vpop.f32.mrf.mxu0
    %v1131 = vadd.f32 %v1104, %v1130
    %1132 = vdwg.mxu0
    %1133 = vmatpush.msra.mxu0 0.0
    %1134 = vmatpush.msra.mxu0 0.0
    %1135 = vmatpush.msra.mxu0 0.0
    %1136 = vmatpush.msra.mxu0 0.0
    %1137 = vmatpush.msra.mxu0 0.0
    %1138 = vmatpush.msra.mxu0 0.0
    %1139 = vmatpush.msra.mxu0 0.0
    %1140 = vmatpush.msra.mxu0 0.0
    %1141 = vmatpush.msra.mxu0 0.0
    %1142 = vmatpush.msra.mxu0 0.0
    %1143 = vmatpush.msra.mxu0 0.0
    %1144 = vmatpush.msra.mxu0 0.0
    %1145 = vmatpush.msra.mxu0 0.0
    %1146 = vmatpush.msra.mxu0 0.0
    %v1147 = vand.u32 %v638, 4294901760
    %1148 = vmatpush.msra.mxu0 %v1147
    %v1149 = vand.u32 %v637, 4294901760
    %1150 = vmatpush.msra.mxu0 %v1149
    %v1151 = vand.u32 %v451, 4294901760
    %1152 = vmatmul.f32.gmra.mxu0 %v1151
    %v1153 = vpop.f32.mrf.mxu0
    %v1154 = vadd.f32 %v1131, %v1153
    %1155 = vdwg.mxu0
    %s1156 = scalar_lea.vmem %s4, 1
    %v1157 = vld [vmem:[%s1156] sm:$0x1]
    %v1159 = vperm.slane %v1157, 0
    %v1161 = vadd.f32 %v1154, %v1159
    %v1162 = vxor.u32 %v1161, 2147483648
    %v1163 = vmul.f32 %v1162, 1.442695
    %v1164 = vpow.pop %v1163
    %v1165 = vadd.f32 %v1164, 1.0
    %v1166 = vrcp.pop %v1165
    %v1167 = vmul.f32 %v1165, %v1166
    %v1168 = vsub.f32 1.0, %v1167
    %v1169 = vmul.f32 %v1166, %v1168
    %v1170 = vadd.f32 %v1166, %v1169
    %vm1171 = vweird.f32 %v1165
    %vm1172 = vweird.f32 %v1166
    %vm1173 = vmor %vm1171, %vm1172
    %v1174 = vsel %vm1173, %v1166, %v1170
    %v1175 = vand.u32 2147483647, %v1165
    %vm1176 = vcmp.eq.f32.partialorder %v1175, 8.507059e+37
    %v1177 = vand.u32 %v1165, 2147483648
    %v1178 = vor.u32 1.1754944e-38, %v1177
    %v1179 = vsel %vm1176, %v1178, %v1174
    %v1180 = vmul.f32 1.0, %v1179
    %s1181 = scalar_lea.vmem [#allocation7], 32
    %v1182 = vld [vmem:[%s1181] sm:$0xff]
    %v1183 = vld [vmem:[%s1181 + $0x8] sm:$0xff]
    %s1184 = scalar_lea.vmem %s4, 2
    %v1185 = vld [vmem:[%s1184] sm:$0x1]
    %v1187 = vperm.slane %v1185, 0
    %1189 = vmatpush.msra.mxu0 0.0
    %1190 = vmatpush.msra.mxu0 0.0
    %1191 = vmatpush.msra.mxu0 0.0
    %1192 = vmatpush.msra.mxu0 0.0
    %1193 = vmatpush.msra.mxu0 0.0
    %1194 = vmatpush.msra.mxu0 0.0
    %1195 = vmatpush.msra.mxu0 0.0
    %1196 = vmatpush.msra.mxu0 0.0
    %1197 = vmatpush.msra.mxu0 0.0
    %1198 = vmatpush.msra.mxu0 0.0
    %1199 = vmatpush.msra.mxu0 0.0
    %1200 = vmatpush.msra.mxu0 0.0
    %1201 = vmatpush.msra.mxu0 0.0
    %1202 = vmatpush.msra.mxu0 0.0
    %v1203 = vand.u32 %v1183, 4294901760
    %1204 = vmatpush.msra.mxu0 %v1203
    %v1205 = vand.u32 %v1182, 4294901760
    %1206 = vmatpush.msra.mxu0 %v1205
    %v1207 = vand.u32 %v451, 4294901760
    %v1208 = vsub.f32 %v451, %v1207
    %v1209 = vand.u32 %v1208, 4294901760
    %v1210 = vsub.f32 %v1208, %v1209
    %v1211 = vand.u32 %v1210, 4294901760
    %1212 = vmatmul.f32.gmra.mxu0 %v1211
    %v1213 = vpop.f32.mrf.mxu0
    %v1214 = vadd.f32 %v1187, %v1213
    %1215 = vdwg.mxu0
    %1216 = vmatpush.msra.mxu0 0.0
    %1217 = vmatpush.msra.mxu0 0.0
    %1218 = vmatpush.msra.mxu0 0.0
    %1219 = vmatpush.msra.mxu0 0.0
    %1220 = vmatpush.msra.mxu0 0.0
    %1221 = vmatpush.msra.mxu0 0.0
    %1222 = vmatpush.msra.mxu0 0.0
    %1223 = vmatpush.msra.mxu0 0.0
    %1224 = vmatpush.msra.mxu0 0.0
    %1225 = vmatpush.msra.mxu0 0.0
    %1226 = vmatpush.msra.mxu0 0.0
    %1227 = vmatpush.msra.mxu0 0.0
    %1228 = vmatpush.msra.mxu0 0.0
    %1229 = vmatpush.msra.mxu0 0.0
    %v1230 = vand.u32 %v1183, 4294901760
    %v1231 = vsub.f32 %v1183, %v1230
    %v1232 = vand.u32 %v1231, 4294901760
    %v1233 = vsub.f32 %v1231, %v1232
    %v1234 = vand.u32 %v1233, 4294901760
    %1235 = vmatpush.msra.mxu0 %v1234
    %v1236 = vand.u32 %v1182, 4294901760
    %v1237 = vsub.f32 %v1182, %v1236
    %v1238 = vand.u32 %v1237, 4294901760
    %v1239 = vsub.f32 %v1237, %v1238
    %v1240 = vand.u32 %v1239, 4294901760
    %1241 = vmatpush.msra.mxu0 %v1240
    %v1242 = vand.u32 %v451, 4294901760
    %1243 = vmatmul.f32.gmra.mxu0 %v1242
    %v1244 = vpop.f32.mrf.mxu0
    %v1245 = vadd.f32 %v1214, %v1244
    %1246 = vdwg.mxu0
    %1247 = vmatpush.msra.mxu0 0.0
    %1248 = vmatpush.msra.mxu0 0.0
    %1249 = vmatpush.msra.mxu0 0.0
    %1250 = vmatpush.msra.mxu0 0.0
    %1251 = vmatpush.msra.mxu0 0.0
    %1252 = vmatpush.msra.mxu0 0.0
    %1253 = vmatpush.msra.mxu0 0.0
    %1254 = vmatpush.msra.mxu0 0.0
    %1255 = vmatpush.msra.mxu0 0.0
    %1256 = vmatpush.msra.mxu0 0.0
    %1257 = vmatpush.msra.mxu0 0.0
    %1258 = vmatpush.msra.mxu0 0.0
    %1259 = vmatpush.msra.mxu0 0.0
    %1260 = vmatpush.msra.mxu0 0.0
    %v1261 = vand.u32 %v1183, 4294901760
    %v1262 = vsub.f32 %v1183, %v1261
    %1263 = vmatpush.msra.mxu0 %v1262
    %v1264 = vand.u32 %v1182, 4294901760
    %v1265 = vsub.f32 %v1182, %v1264
    %1266 = vmatpush.msra.mxu0 %v1265
    %v1267 = vand.u32 %v451, 4294901760
    %v1268 = vsub.f32 %v451, %v1267
    %1269 = vmatmul.f32.gmra.mxu0 %v1268
    %v1270 = vpop.f32.mrf.mxu0
    %v1271 = vadd.f32 %v1245, %v1270
    %1272 = vdwg.mxu0
    %1273 = vmatpush.msra.mxu0 0.0
    %1274 = vmatpush.msra.mxu0 0.0
    %1275 = vmatpush.msra.mxu0 0.0
    %1276 = vmatpush.msra.mxu0 0.0
    %1277 = vmatpush.msra.mxu0 0.0
    %1278 = vmatpush.msra.mxu0 0.0
    %1279 = vmatpush.msra.mxu0 0.0
    %1280 = vmatpush.msra.mxu0 0.0
    %1281 = vmatpush.msra.mxu0 0.0
    %1282 = vmatpush.msra.mxu0 0.0
    %1283 = vmatpush.msra.mxu0 0.0
    %1284 = vmatpush.msra.mxu0 0.0
    %1285 = vmatpush.msra.mxu0 0.0
    %1286 = vmatpush.msra.mxu0 0.0
    %v1287 = vand.u32 %v1183, 4294901760
    %1288 = vmatpush.msra.mxu0 %v1287
    %v1289 = vand.u32 %v1182, 4294901760
    %1290 = vmatpush.msra.mxu0 %v1289
    %v1291 = vand.u32 %v451, 4294901760
    %v1292 = vsub.f32 %v451, %v1291
    %v1293 = vand.u32 %v1292, 4294901760
    %1294 = vmatmul.f32.gmra.mxu0 %v1293
    %v1295 = vpop.f32.mrf.mxu0
    %v1296 = vadd.f32 %v1271, %v1295
    %1297 = vdwg.mxu0
    %1298 = vmatpush.msra.mxu0 0.0
    %1299 = vmatpush.msra.mxu0 0.0
    %1300 = vmatpush.msra.mxu0 0.0
    %1301 = vmatpush.msra.mxu0 0.0
    %1302 = vmatpush.msra.mxu0 0.0
    %1303 = vmatpush.msra.mxu0 0.0
    %1304 = vmatpush.msra.mxu0 0.0
    %1305 = vmatpush.msra.mxu0 0.0
    %1306 = vmatpush.msra.mxu0 0.0
    %1307 = vmatpush.msra.mxu0 0.0
    %1308 = vmatpush.msra.mxu0 0.0
    %1309 = vmatpush.msra.mxu0 0.0
    %1310 = vmatpush.msra.mxu0 0.0
    %1311 = vmatpush.msra.mxu0 0.0
    %v1312 = vand.u32 %v1183, 4294901760
    %v1313 = vsub.f32 %v1183, %v1312
    %v1314 = vand.u32 %v1313, 4294901760
    %1315 = vmatpush.msra.mxu0 %v1314
    %v1316 = vand.u32 %v1182, 4294901760
    %v1317 = vsub.f32 %v1182, %v1316
    %v1318 = vand.u32 %v1317, 4294901760
    %1319 = vmatpush.msra.mxu0 %v1318
    %v1320 = vand.u32 %v451, 4294901760
    %1321 = vmatmul.f32.gmra.mxu0 %v1320
    %v1322 = vpop.f32.mrf.mxu0
    %v1323 = vadd.f32 %v1296, %v1322
    %1324 = vdwg.mxu0
    %1325 = vmatpush.msra.mxu0 0.0
    %1326 = vmatpush.msra.mxu0 0.0
    %1327 = vmatpush.msra.mxu0 0.0
    %1328 = vmatpush.msra.mxu0 0.0
    %1329 = vmatpush.msra.mxu0 0.0
    %1330 = vmatpush.msra.mxu0 0.0
    %1331 = vmatpush.msra.mxu0 0.0
    %1332 = vmatpush.msra.mxu0 0.0
    %1333 = vmatpush.msra.mxu0 0.0
    %1334 = vmatpush.msra.mxu0 0.0
    %1335 = vmatpush.msra.mxu0 0.0
    %1336 = vmatpush.msra.mxu0 0.0
    %1337 = vmatpush.msra.mxu0 0.0
    %1338 = vmatpush.msra.mxu0 0.0
    %v1339 = vand.u32 %v1183, 4294901760
    %1340 = vmatpush.msra.mxu0 %v1339
    %v1341 = vand.u32 %v1182, 4294901760
    %1342 = vmatpush.msra.mxu0 %v1341
    %v1343 = vand.u32 %v451, 4294901760
    %1344 = vmatmul.f32.gmra.mxu0 %v1343
    %v1345 = vpop.f32.mrf.mxu0
    %v1346 = vadd.f32 %v1323, %v1345
    %1347 = vdwg.mxu0
    %s1348 = scalar_lea.vmem [#allocation8], 256
    %v1349 = vld [vmem:[%s1348] sm:$0xff]
    %v1350 = vld [vmem:[%s1348 + $0x8] sm:$0xff]
    %v1351 = vld [vmem:[%s1348 + $0x10] sm:$0xff]
    %v1352 = vld [vmem:[%s1348 + $0x18] sm:$0xff]
    %v1353 = vld [vmem:[%s1348 + $0x20] sm:$0xff]
    %v1354 = vld [vmem:[%s1348 + $0x28] sm:$0xff]
    %v1355 = vld [vmem:[%s1348 + $0x30] sm:$0xff]
    %v1356 = vld [vmem:[%s1348 + $0x38] sm:$0xff]
    %v1357 = vld [vmem:[%s1348 + $0x40] sm:$0xff]
    %v1358 = vld [vmem:[%s1348 + $0x48] sm:$0xff]
    %v1359 = vld [vmem:[%s1348 + $0x50] sm:$0xff]
    %v1360 = vld [vmem:[%s1348 + $0x58] sm:$0xff]
    %v1361 = vld [vmem:[%s1348 + $0x60] sm:$0xff]
    %v1362 = vld [vmem:[%s1348 + $0x68] sm:$0xff]
    %v1363 = vld [vmem:[%s1348 + $0x70] sm:$0xff]
    %v1364 = vld [vmem:[%s1348 + $0x78] sm:$0xff]
    %v1365 = vld [vmem:[%s5] sm:$0x1]
    %v1367 = vperm.slane %v1365, 0
    %v1369 = vand.u32 %v1364, 4294901760
    %1370 = vmatpush.msra.mxu0 %v1369
    %v1371 = vand.u32 %v1363, 4294901760
    %1372 = vmatpush.msra.mxu0 %v1371
    %v1373 = vand.u32 %v1362, 4294901760
    %1374 = vmatpush.msra.mxu0 %v1373
    %v1375 = vand.u32 %v1361, 4294901760
    %1376 = vmatpush.msra.mxu0 %v1375
    %v1377 = vand.u32 %v1360, 4294901760
    %1378 = vmatpush.msra.mxu0 %v1377
    %v1379 = vand.u32 %v1359, 4294901760
    %1380 = vmatpush.msra.mxu0 %v1379
    %v1381 = vand.u32 %v1358, 4294901760
    %1382 = vmatpush.msra.mxu0 %v1381
    %v1383 = vand.u32 %v1357, 4294901760
    %1384 = vmatpush.msra.mxu0 %v1383
    %v1385 = vand.u32 %v1356, 4294901760
    %1386 = vmatpush.msra.mxu0 %v1385
    %v1387 = vand.u32 %v1355, 4294901760
    %1388 = vmatpush.msra.mxu0 %v1387
    %v1389 = vand.u32 %v1354, 4294901760
    %1390 = vmatpush.msra.mxu0 %v1389
    %v1391 = vand.u32 %v1353, 4294901760
    %1392 = vmatpush.msra.mxu0 %v1391
    %v1393 = vand.u32 %v1352, 4294901760
    %1394 = vmatpush.msra.mxu0 %v1393
    %v1395 = vand.u32 %v1351, 4294901760
    %1396 = vmatpush.msra.mxu0 %v1395
    %v1397 = vand.u32 %v1350, 4294901760
    %1398 = vmatpush.msra.mxu0 %v1397
    %v1399 = vand.u32 %v1349, 4294901760
    %1400 = vmatpush.msra.mxu0 %v1399
    %v1401 = vand.u32 %v85, 4294901760
    %v1402 = vsub.f32 %v85, %v1401
    %v1403 = vand.u32 %v1402, 4294901760
    %v1404 = vsub.f32 %v1402, %v1403
    %v1405 = vand.u32 %v1404, 4294901760
    %1406 = vmatmul.f32.gmra.mxu0 %v1405
    %v1407 = vpop.f32.mrf.mxu0
    %v1408 = vadd.f32 %v1367, %v1407
    %1409 = vdwg.mxu0
    %v1410 = vand.u32 %v1364, 4294901760
    %v1411 = vsub.f32 %v1364, %v1410
    %v1412 = vand.u32 %v1411, 4294901760
    %v1413 = vsub.f32 %v1411, %v1412
    %v1414 = vand.u32 %v1413, 4294901760
    %1415 = vmatpush.msra.mxu0 %v1414
    %v1416 = vand.u32 %v1363, 4294901760
    %v1417 = vsub.f32 %v1363, %v1416
    %v1418 = vand.u32 %v1417, 4294901760
    %v1419 = vsub.f32 %v1417, %v1418
    %v1420 = vand.u32 %v1419, 4294901760
    %1421 = vmatpush.msra.mxu0 %v1420
    %v1422 = vand.u32 %v1362, 4294901760
    %v1423 = vsub.f32 %v1362, %v1422
    %v1424 = vand.u32 %v1423, 4294901760
    %v1425 = vsub.f32 %v1423, %v1424
    %v1426 = vand.u32 %v1425, 4294901760
    %1427 = vmatpush.msra.mxu0 %v1426
    %v1428 = vand.u32 %v1361, 4294901760
    %v1429 = vsub.f32 %v1361, %v1428
    %v1430 = vand.u32 %v1429, 4294901760
    %v1431 = vsub.f32 %v1429, %v1430
    %v1432 = vand.u32 %v1431, 4294901760
    %1433 = vmatpush.msra.mxu0 %v1432
    %v1434 = vand.u32 %v1360, 4294901760
    %v1435 = vsub.f32 %v1360, %v1434
    %v1436 = vand.u32 %v1435, 4294901760
    %v1437 = vsub.f32 %v1435, %v1436
    %v1438 = vand.u32 %v1437, 4294901760
    %1439 = vmatpush.msra.mxu0 %v1438
    %v1440 = vand.u32 %v1359, 4294901760
    %v1441 = vsub.f32 %v1359, %v1440
    %v1442 = vand.u32 %v1441, 4294901760
    %v1443 = vsub.f32 %v1441, %v1442
    %v1444 = vand.u32 %v1443, 4294901760
    %1445 = vmatpush.msra.mxu0 %v1444
    %v1446 = vand.u32 %v1358, 4294901760
    %v1447 = vsub.f32 %v1358, %v1446
    %v1448 = vand.u32 %v1447, 4294901760
    %v1449 = vsub.f32 %v1447, %v1448
    %v1450 = vand.u32 %v1449, 4294901760
    %1451 = vmatpush.msra.mxu0 %v1450
    %v1452 = vand.u32 %v1357, 4294901760
    %v1453 = vsub.f32 %v1357, %v1452
    %v1454 = vand.u32 %v1453, 4294901760
    %v1455 = vsub.f32 %v1453, %v1454
    %v1456 = vand.u32 %v1455, 4294901760
    %1457 = vmatpush.msra.mxu0 %v1456
    %v1458 = vand.u32 %v1356, 4294901760
    %v1459 = vsub.f32 %v1356, %v1458
    %v1460 = vand.u32 %v1459, 4294901760
    %v1461 = vsub.f32 %v1459, %v1460
    %v1462 = vand.u32 %v1461, 4294901760
    %1463 = vmatpush.msra.mxu0 %v1462
    %v1464 = vand.u32 %v1355, 4294901760
    %v1465 = vsub.f32 %v1355, %v1464
    %v1466 = vand.u32 %v1465, 4294901760
    %v1467 = vsub.f32 %v1465, %v1466
    %v1468 = vand.u32 %v1467, 4294901760
    %1469 = vmatpush.msra.mxu0 %v1468
    %v1470 = vand.u32 %v1354, 4294901760
    %v1471 = vsub.f32 %v1354, %v1470
    %v1472 = vand.u32 %v1471, 4294901760
    %v1473 = vsub.f32 %v1471, %v1472
    %v1474 = vand.u32 %v1473, 4294901760
    %1475 = vmatpush.msra.mxu0 %v1474
    %v1476 = vand.u32 %v1353, 4294901760
    %v1477 = vsub.f32 %v1353, %v1476
    %v1478 = vand.u32 %v1477, 4294901760
    %v1479 = vsub.f32 %v1477, %v1478
    %v1480 = vand.u32 %v1479, 4294901760
    %1481 = vmatpush.msra.mxu0 %v1480
    %v1482 = vand.u32 %v1352, 4294901760
    %v1483 = vsub.f32 %v1352, %v1482
    %v1484 = vand.u32 %v1483, 4294901760
    %v1485 = vsub.f32 %v1483, %v1484
    %v1486 = vand.u32 %v1485, 4294901760
    %1487 = vmatpush.msra.mxu0 %v1486
    %v1488 = vand.u32 %v1351, 4294901760
    %v1489 = vsub.f32 %v1351, %v1488
    %v1490 = vand.u32 %v1489, 4294901760
    %v1491 = vsub.f32 %v1489, %v1490
    %v1492 = vand.u32 %v1491, 4294901760
    %1493 = vmatpush.msra.mxu0 %v1492
    %v1494 = vand.u32 %v1350, 4294901760
    %v1495 = vsub.f32 %v1350, %v1494
    %v1496 = vand.u32 %v1495, 4294901760
    %v1497 = vsub.f32 %v1495, %v1496
    %v1498 = vand.u32 %v1497, 4294901760
    %1499 = vmatpush.msra.mxu0 %v1498
    %v1500 = vand.u32 %v1349, 4294901760
    %v1501 = vsub.f32 %v1349, %v1500
    %v1502 = vand.u32 %v1501, 4294901760
    %v1503 = vsub.f32 %v1501, %v1502
    %v1504 = vand.u32 %v1503, 4294901760
    %1505 = vmatpush.msra.mxu0 %v1504
    %v1506 = vand.u32 %v85, 4294901760
    %1507 = vmatmul.f32.gmra.mxu0 %v1506
    %v1508 = vpop.f32.mrf.mxu0
    %v1509 = vadd.f32 %v1408, %v1508
    %1510 = vdwg.mxu0
    %v1511 = vand.u32 %v1364, 4294901760
    %v1512 = vsub.f32 %v1364, %v1511
    %1513 = vmatpush.msra.mxu0 %v1512
    %v1514 = vand.u32 %v1363, 4294901760
    %v1515 = vsub.f32 %v1363, %v1514
    %1516 = vmatpush.msra.mxu0 %v1515
    %v1517 = vand.u32 %v1362, 4294901760
    %v1518 = vsub.f32 %v1362, %v1517
    %1519 = vmatpush.msra.mxu0 %v1518
    %v1520 = vand.u32 %v1361, 4294901760
    %v1521 = vsub.f32 %v1361, %v1520
    %1522 = vmatpush.msra.mxu0 %v1521
    %v1523 = vand.u32 %v1360, 4294901760
    %v1524 = vsub.f32 %v1360, %v1523
    %1525 = vmatpush.msra.mxu0 %v1524
    %v1526 = vand.u32 %v1359, 4294901760
    %v1527 = vsub.f32 %v1359, %v1526
    %1528 = vmatpush.msra.mxu0 %v1527
    %v1529 = vand.u32 %v1358, 4294901760
    %v1530 = vsub.f32 %v1358, %v1529
    %1531 = vmatpush.msra.mxu0 %v1530
    %v1532 = vand.u32 %v1357, 4294901760
    %v1533 = vsub.f32 %v1357, %v1532
    %1534 = vmatpush.msra.mxu0 %v1533
    %v1535 = vand.u32 %v1356, 4294901760
    %v1536 = vsub.f32 %v1356, %v1535
    %1537 = vmatpush.msra.mxu0 %v1536
    %v1538 = vand.u32 %v1355, 4294901760
    %v1539 = vsub.f32 %v1355, %v1538
    %1540 = vmatpush.msra.mxu0 %v1539
    %v1541 = vand.u32 %v1354, 4294901760
    %v1542 = vsub.f32 %v1354, %v1541
    %1543 = vmatpush.msra.mxu0 %v1542
    %v1544 = vand.u32 %v1353, 4294901760
    %v1545 = vsub.f32 %v1353, %v1544
    %1546 = vmatpush.msra.mxu0 %v1545
    %v1547 = vand.u32 %v1352, 4294901760
    %v1548 = vsub.f32 %v1352, %v1547
    %1549 = vmatpush.msra.mxu0 %v1548
    %v1550 = vand.u32 %v1351, 4294901760
    %v1551 = vsub.f32 %v1351, %v1550
    %1552 = vmatpush.msra.mxu0 %v1551
    %v1553 = vand.u32 %v1350, 4294901760
    %v1554 = vsub.f32 %v1350, %v1553
    %1555 = vmatpush.msra.mxu0 %v1554
    %v1556 = vand.u32 %v1349, 4294901760
    %v1557 = vsub.f32 %v1349, %v1556
    %1558 = vmatpush.msra.mxu0 %v1557
    %v1559 = vand.u32 %v85, 4294901760
    %v1560 = vsub.f32 %v85, %v1559
    %1561 = vmatmul.f32.gmra.mxu0 %v1560
    %v1562 = vpop.f32.mrf.mxu0
    %v1563 = vadd.f32 %v1509, %v1562
    %1564 = vdwg.mxu0
    %v1565 = vand.u32 %v1364, 4294901760
    %1566 = vmatpush.msra.mxu0 %v1565
    %v1567 = vand.u32 %v1363, 4294901760
    %1568 = vmatpush.msra.mxu0 %v1567
    %v1569 = vand.u32 %v1362, 4294901760
    %1570 = vmatpush.msra.mxu0 %v1569
    %v1571 = vand.u32 %v1361, 4294901760
    %1572 = vmatpush.msra.mxu0 %v1571
    %v1573 = vand.u32 %v1360, 4294901760
    %1574 = vmatpush.msra.mxu0 %v1573
    %v1575 = vand.u32 %v1359, 4294901760
    %1576 = vmatpush.msra.mxu0 %v1575
    %v1577 = vand.u32 %v1358, 4294901760
    %1578 = vmatpush.msra.mxu0 %v1577
    %v1579 = vand.u32 %v1357, 4294901760
    %1580 = vmatpush.msra.mxu0 %v1579
    %v1581 = vand.u32 %v1356, 4294901760
    %1582 = vmatpush.msra.mxu0 %v1581
    %v1583 = vand.u32 %v1355, 4294901760
    %1584 = vmatpush.msra.mxu0 %v1583
    %v1585 = vand.u32 %v1354, 4294901760
    %1586 = vmatpush.msra.mxu0 %v1585
    %v1587 = vand.u32 %v1353, 4294901760
    %1588 = vmatpush.msra.mxu0 %v1587
    %v1589 = vand.u32 %v1352, 4294901760
    %1590 = vmatpush.msra.mxu0 %v1589
    %v1591 = vand.u32 %v1351, 4294901760
    %1592 = vmatpush.msra.mxu0 %v1591
    %v1593 = vand.u32 %v1350, 4294901760
    %1594 = vmatpush.msra.mxu0 %v1593
    %v1595 = vand.u32 %v1349, 4294901760
    %1596 = vmatpush.msra.mxu0 %v1595
    %v1597 = vand.u32 %v85, 4294901760
    %v1598 = vsub.f32 %v85, %v1597
    %v1599 = vand.u32 %v1598, 4294901760
    %1600 = vmatmul.f32.gmra.mxu0 %v1599
    %v1601 = vpop.f32.mrf.mxu0
    %v1602 = vadd.f32 %v1563, %v1601
    %1603 = vdwg.mxu0
    %v1604 = vand.u32 %v1364, 4294901760
    %v1605 = vsub.f32 %v1364, %v1604
    %v1606 = vand.u32 %v1605, 4294901760
    %1607 = vmatpush.msra.mxu0 %v1606
    %v1608 = vand.u32 %v1363, 4294901760
    %v1609 = vsub.f32 %v1363, %v1608
    %v1610 = vand.u32 %v1609, 4294901760
    %1611 = vmatpush.msra.mxu0 %v1610
    %v1612 = vand.u32 %v1362, 4294901760
    %v1613 = vsub.f32 %v1362, %v1612
    %v1614 = vand.u32 %v1613, 4294901760
    %1615 = vmatpush.msra.mxu0 %v1614
    %v1616 = vand.u32 %v1361, 4294901760
    %v1617 = vsub.f32 %v1361, %v1616
    %v1618 = vand.u32 %v1617, 4294901760
    %1619 = vmatpush.msra.mxu0 %v1618
    %v1620 = vand.u32 %v1360, 4294901760
    %v1621 = vsub.f32 %v1360, %v1620
    %v1622 = vand.u32 %v1621, 4294901760
    %1623 = vmatpush.msra.mxu0 %v1622
    %v1624 = vand.u32 %v1359, 4294901760
    %v1625 = vsub.f32 %v1359, %v1624
    %v1626 = vand.u32 %v1625, 4294901760
    %1627 = vmatpush.msra.mxu0 %v1626
    %v1628 = vand.u32 %v1358, 4294901760
    %v1629 = vsub.f32 %v1358, %v1628
    %v1630 = vand.u32 %v1629, 4294901760
    %1631 = vmatpush.msra.mxu0 %v1630
    %v1632 = vand.u32 %v1357, 4294901760
    %v1633 = vsub.f32 %v1357, %v1632
    %v1634 = vand.u32 %v1633, 4294901760
    %1635 = vmatpush.msra.mxu0 %v1634
    %v1636 = vand.u32 %v1356, 4294901760
    %v1637 = vsub.f32 %v1356, %v1636
    %v1638 = vand.u32 %v1637, 4294901760
    %1639 = vmatpush.msra.mxu0 %v1638
    %v1640 = vand.u32 %v1355, 4294901760
    %v1641 = vsub.f32 %v1355, %v1640
    %v1642 = vand.u32 %v1641, 4294901760
    %1643 = vmatpush.msra.mxu0 %v1642
    %v1644 = vand.u32 %v1354, 4294901760
    %v1645 = vsub.f32 %v1354, %v1644
    %v1646 = vand.u32 %v1645, 4294901760
    %1647 = vmatpush.msra.mxu0 %v1646
    %v1648 = vand.u32 %v1353, 4294901760
    %v1649 = vsub.f32 %v1353, %v1648
    %v1650 = vand.u32 %v1649, 4294901760
    %1651 = vmatpush.msra.mxu0 %v1650
    %v1652 = vand.u32 %v1352, 4294901760
    %v1653 = vsub.f32 %v1352, %v1652
    %v1654 = vand.u32 %v1653, 4294901760
    %1655 = vmatpush.msra.mxu0 %v1654
    %v1656 = vand.u32 %v1351, 4294901760
    %v1657 = vsub.f32 %v1351, %v1656
    %v1658 = vand.u32 %v1657, 4294901760
    %1659 = vmatpush.msra.mxu0 %v1658
    %v1660 = vand.u32 %v1350, 4294901760
    %v1661 = vsub.f32 %v1350, %v1660
    %v1662 = vand.u32 %v1661, 4294901760
    %1663 = vmatpush.msra.mxu0 %v1662
    %v1664 = vand.u32 %v1349, 4294901760
    %v1665 = vsub.f32 %v1349, %v1664
    %v1666 = vand.u32 %v1665, 4294901760
    %1667 = vmatpush.msra.mxu0 %v1666
    %v1668 = vand.u32 %v85, 4294901760
    %1669 = vmatmul.f32.gmra.mxu0 %v1668
    %v1670 = vpop.f32.mrf.mxu0
    %v1671 = vadd.f32 %v1602, %v1670
    %1672 = vdwg.mxu0
    %v1673 = vand.u32 %v1364, 4294901760
    %1674 = vmatpush.msra.mxu0 %v1673
    %v1675 = vand.u32 %v1363, 4294901760
    %1676 = vmatpush.msra.mxu0 %v1675
    %v1677 = vand.u32 %v1362, 4294901760
    %1678 = vmatpush.msra.mxu0 %v1677
    %v1679 = vand.u32 %v1361, 4294901760
    %1680 = vmatpush.msra.mxu0 %v1679
    %v1681 = vand.u32 %v1360, 4294901760
    %1682 = vmatpush.msra.mxu0 %v1681
    %v1683 = vand.u32 %v1359, 4294901760
    %1684 = vmatpush.msra.mxu0 %v1683
    %v1685 = vand.u32 %v1358, 4294901760
    %1686 = vmatpush.msra.mxu0 %v1685
    %v1687 = vand.u32 %v1357, 4294901760
    %1688 = vmatpush.msra.mxu0 %v1687
    %v1689 = vand.u32 %v1356, 4294901760
    %1690 = vmatpush.msra.mxu0 %v1689
    %v1691 = vand.u32 %v1355, 4294901760
    %1692 = vmatpush.msra.mxu0 %v1691
    %v1693 = vand.u32 %v1354, 4294901760
    %1694 = vmatpush.msra.mxu0 %v1693
    %v1695 = vand.u32 %v1353, 4294901760
    %1696 = vmatpush.msra.mxu0 %v1695
    %v1697 = vand.u32 %v1352, 4294901760
    %1698 = vmatpush.msra.mxu0 %v1697
    %v1699 = vand.u32 %v1351, 4294901760
    %1700 = vmatpush.msra.mxu0 %v1699
    %v1701 = vand.u32 %v1350, 4294901760
    %1702 = vmatpush.msra.mxu0 %v1701
    %v1703 = vand.u32 %v1349, 4294901760
    %1704 = vmatpush.msra.mxu0 %v1703
    %v1705 = vand.u32 %v85, 4294901760
    %1706 = vmatmul.f32.gmra.mxu0 %v1705
    %v1707 = vpop.f32.mrf.mxu0
    %v1708 = vadd.f32 %v1671, %v1707
    %1709 = vdwg.mxu0
    %v1710 = vmul.f32 %v635, %v1708
    %v1711 = vadd.f32 %v1346, %v1710
    %v1712 = vtanh.pop %v1711
    %v1713 = vsub.f32 %v89, %v1712
    %v1714 = vmul.f32 %v1180, %v1713
    %v1715 = vadd.f32 %v1712, %v1714
    %1716 = vst [vmem:[#allocation10] sm:$0xff] %v1715
    // Predicated region
    $region42: #{tpu_custom_call.1} parent=1 // pred_check
      _
    $region43: #{tpu_custom_call.1} parent=1 // pred_check_branch
      %1718 = sbr.rel (0) target = $region45
    $region44: #{tpu_custom_call.1} parent=1 // pred_region
      %1720 = vsyncadd [#allocation4], 0
      %s1722 = sshll.u32 [#allocation10], 4
      %s1723 = int_to_ptr.vmem [resolvable:$true] %s1722
      %s1724 = sshll.u32 %s6, 4
      %s1725 = int_to_ptr.hbm [resolvable:$true] %s1724
      %1727 = dma.vmem_to_hbm [thread:$0]  %s1723, 128, %s1725, [#allocation4]
    $region45: #{tpu_custom_call.1} parent=1 // pred_fallthru
      _
    // Predicated region
    $region46: #{tpu_custom_call.1} parent=1 // pred_check
      _
    $region47: #{tpu_custom_call.1} parent=1 // pred_check_branch
      %1729 = sbr.rel (0) target = $region49
    $region48: #{tpu_custom_call.1} parent=1 // pred_region
      %1731 = dma.done [#allocation4], 128
    $region49: #{tpu_custom_call.1} parent=1 // pred_fallthru
      _
    %1732 = vsyncpa [#allocation3], 1
    %1733 = vsyncpa [#allocation6], 1
    %1734 = vsyncpa [#allocation9], 1
    %1735 = vsyncpa [#allocation4], 1

</llo_original>
